<compile_context>
chip_gen: v7x
topology: tpu7x:2x2x1
jax: 0.10.0
libtpu: 0.0.40
codegen_flags: <defaults>
</compile_context>

<pallas_src>
import functools

import jax
import jax.numpy as jnp
from jax.experimental import pallas as pl
from jax.experimental.pallas import tpu as pltpu


NUM_LABELS = 10
INPUT_CHANNELS = 4
BATCH = 2
SPATIAL = 16
CP = 128                      # lane-padded channel width (TPU lane count)

CONFIG = {
    "dataset_name": "toy",
    "toy_block_out":      [[8, 8], [16, NUM_LABELS]],
    "toy_block_kernels":  [[3, 1], [3, 1]],
    "toy_block_strides":  [[1, 1], [1, 1]],
    "toy_block_paddings": [[1, 0], [1, 0]],
    "toy_dropouts":       [0.0, 0.0],
    "toy_pool_choice":    [0, 1],     # 0 -> MaxPool2d, 1 -> AvgPool2d
    "toy_pool_kernels":   [2, 8],
    "toy_pool_strides":   [2, 8],
    "toy_pool_paddings":  [0, 0],
    "toy_batch_norms":    [True, True],  # non-empty list truthy -> BN added
}


# ------------------------------------------------------------------ kernel --

def _make_block_kernel(Ho, Wo, k0, n_convs, pool_k, pool_is_avg, use_scratch):
    """Build the fused block kernel for static shapes (Ho, Wo, k0, pool_k)."""
    KK0 = k0 * k0
    Hk, Wk = Ho // pool_k, Wo // pool_k
    M = Ho * Wo

    def kernel(*refs):
        xp_ref = refs[0]                          # (Hp, Wp, CP) padded input
        s_ref = refs[1 + 2 * n_convs]             # BN scale  (1, CP)
        t_ref = refs[2 + 2 * n_convs]             # BN shift  (1, CP)
        o_ref = refs[3 + 2 * n_convs]             # (Hk*Wk, CP) output tile
        hs_ref = refs[4 + 2 * n_convs] if use_scratch else None
        C = xp_ref.shape[-1]

        # ---- conv 0 (k0 x k0, stride 1, input pre-padded):
        #      in-kernel im2col as k0*k0 shifted lane-dense MXU matmuls.
        w_ref, b_ref = refs[1], refs[2]
        acc = None
        for j in range(KK0):
            dh, dw = divmod(j, k0)
            tap = xp_ref[dh:dh + Ho, dw:dw + Wo, :]          # (Ho, Wo, C) f32
            tap = tap.reshape(M, C).astype(jnp.bfloat16)      # bf16 MXU operand
            d = jnp.dot(tap, w_ref[j], preferred_element_type=jnp.float32)
            acc = d if acc is None else acc + d
        h = jnp.maximum(acc + b_ref[...], 0.0)                # bias + ReLU (f32)

        # ---- remaining convs (1x1) + ReLU (one MXU matmul each)
        for c in range(1, n_convs):
            w_ref, b_ref = refs[1 + 2 * c], refs[2 + 2 * c]
            h = jnp.dot(h.astype(jnp.bfloat16), w_ref[0],
                        preferred_element_type=jnp.float32)
            h = jnp.maximum(h + b_ref[...], 0.0)

        # ---- BatchNorm (eval mode): per-channel scale/shift (f32 epilogue)
        h = h * s_ref[...] + t_ref[...]

        # ---- pooling epilogue (kernel == stride == pool_k, padding 0)
        if Hk == 1 and Wk == 1:
            # Window covers the whole spatial extent -> one sublane reduce.
            pooled = (jnp.sum if pool_is_avg else jnp.max)(h, axis=0,
                                                           keepdims=True)
            if pool_is_avg:
                pooled = pooled * (1.0 / (pool_k * pool_k))
        else:
            # Stage the conv output in VMEM scratch, then gather each window
            # offset with strided reads and reduce elementwise.
            hs_ref[...] = h.reshape(Ho, Wo, C)
            pooled = None
            for i in range(pool_k):
                for jj in range(pool_k):
                    v = hs_ref[pl.ds(i, Hk, stride=pool_k),
                               pl.ds(jj, Wk, stride=pool_k), :]
                    v = v.reshape(Hk * Wk, C)
                    if pooled is None:
                        pooled = v
                    elif pool_is_avg:
                        pooled = pooled + v
                    else:
                        pooled = jnp.maximum(pooled, v)
            if pool_is_avg:
                pooled = pooled * (1.0 / (pool_k * pool_k))

        o_ref[...] = pooled.astype(o_ref.dtype)

    return kernel


# ----------------------------------------------------------------- wrappers --

def nin_block(x, blk, *, kernels, paddings, strides,
              pool_is_avg, pool_k, pool_stride, pool_pad):
    """One fused NIN block.  x: (N, H, W, CP) lane-padded NHWC f32."""
    N, H, W, C = x.shape
    convs = blk["convs"]
    n_convs = len(convs)
    k0, p0 = kernels[0], paddings[0]
    assert strides[0] == 1, "TODO(synk): strided convolutions not implemented"
    for ci in range(1, n_convs):
        assert kernels[ci] == 1 and paddings[ci] == 0 and strides[ci] == 1, (
            "TODO(synk): only NIN-style kxk -> 1x1 conv stacks are fused")
    assert pool_k == pool_stride and pool_pad == 0, (
        "TODO(synk): only kernel==stride, padding=0 pooling implemented")

    Hp, Wp = H + 2 * p0, W + 2 * p0
    Ho, Wo = Hp - k0 + 1, Wp - k0 + 1
    assert Ho % pool_k == 0 and Wo % pool_k == 0
    Hk, Wk = Ho // pool_k, Wo // pool_k
    use_scratch = not (Hk == 1 and Wk == 1)

    # Tiny XLA glue: spatial zero-pad for the first conv (channels pre-padded).
    xp = jnp.pad(x, ((0, 0), (p0, p0), (p0, p0), (0, 0)))

    in_specs = [pl.BlockSpec((None, Hp, Wp, C), lambda n: (n, 0, 0, 0))]
    inputs = [xp]
    for ci, c in enumerate(convs):
        kk = kernels[ci] * kernels[ci]
        in_specs.append(pl.BlockSpec((kk, C, C), lambda n: (0, 0, 0)))
        in_specs.append(pl.BlockSpec((1, C), lambda n: (0, 0)))
        inputs.append(c["w"])
        inputs.append(c["b"])
    in_specs.append(pl.BlockSpec((1, C), lambda n: (0, 0)))   # BN scale
    in_specs.append(pl.BlockSpec((1, C), lambda n: (0, 0)))   # BN shift
    inputs.append(blk["bn_scale"])
    inputs.append(blk["bn_shift"])

    kernel = _make_block_kernel(Ho, Wo, k0, n_convs, pool_k, pool_is_avg,
                                use_scratch)

    out = pl.pallas_call(
        kernel,
        grid=(N,),
        in_specs=in_specs,
        out_specs=pl.BlockSpec((None, Hk * Wk, C), lambda n: (n, 0, 0)),
        out_shape=jax.ShapeDtypeStruct((N, Hk * Wk, C), jnp.float32),
        scratch_shapes=(
            [pltpu.VMEM((Ho, Wo, C), jnp.float32)] if use_scratch else []),
        compiler_params=pltpu.CompilerParams(
            dimension_semantics=("parallel",)),   # batch -> both v7x TCs
    )(*inputs)
    return out.reshape(N, Hk, Wk, C)


# ------------------------------------------------------------ params / model --

def init_params(key, config, input_channels):
    name = config["dataset_name"]
    block_out = config[f"{name}_block_out"]
    block_kernels = config[f"{name}_block_kernels"]

    params = {"blocks": []}
    cin = input_channels
    for b_idx, outs in enumerate(block_out):
        convs = []
        for c_idx, cout in enumerate(outs):
            k = block_kernels[b_idx][c_idx]
            key, kw_, kb_ = jax.random.split(key, 3)
            w = 0.1 * jax.random.normal(kw_, (k, k, cin, cout), jnp.float32)
            b = 0.1 * jax.random.normal(kb_, (cout,), jnp.float32)
            # Zero-pad to 128 lanes and lay out as (k*k, CP, CP): one lane-dense
            # bf16 weight slab per tap for the in-kernel im2col matmuls.
            w_p = jnp.zeros((k * k, CP, CP), jnp.float32)
            w_p = w_p.at[:, :cin, :cout].set(w.reshape(k * k, cin, cout))
            b_p = jnp.zeros((1, CP), jnp.float32).at[0, :cout].set(b)
            convs.append({"w": w_p.astype(jnp.bfloat16), "b": b_p})
            cin = cout
        # BatchNorm2d (eval): running_mean=0, running_var=1, eps=1e-5
        key, kg, kb2 = jax.random.split(key, 3)
        gamma = 1.0 + 0.1 * jax.random.normal(kg, (cin,), jnp.float32)
        beta = 0.1 * jax.random.normal(kb2, (cin,), jnp.float32)
        eps = 1e-5
        scale = jnp.ones((1, CP), jnp.float32).at[0, :cin].set(
            gamma / jnp.sqrt(1.0 + eps))
        shift = jnp.zeros((1, CP), jnp.float32).at[0, :cin].set(beta)
        params["blocks"].append(
            {"convs": convs, "bn_scale": scale, "bn_shift": shift})
    return params


def nin_forward(params, x_nhwc, config):
    name = config["dataset_name"]
    block_out = config[f"{name}_block_out"]
    block_kernels = config[f"{name}_block_kernels"]
    block_strides = config[f"{name}_block_strides"]
    block_paddings = config[f"{name}_block_paddings"]
    pool_choice = config[f"{name}_pool_choice"]
    pool_kernels = config[f"{name}_pool_kernels"]
    pool_strides = config[f"{name}_pool_strides"]
    pool_paddings = config[f"{name}_pool_paddings"]

    N, H, W, Cin = x_nhwc.shape
    assert Cin <= CP
    # Lane-pad channels once; real channels occupy the first Cin lanes and the
    # padded lanes stay exactly zero through every block (zero weight rows).
    x = jnp.pad(x_nhwc, ((0, 0), (0, 0), (0, 0), (0, CP - Cin)))

    for b_idx, blk in enumerate(params["blocks"]):
        x = nin_block(
            x, blk,
            kernels=block_kernels[b_idx],
            paddings=block_paddings[b_idx],
            strides=block_strides[b_idx],
            pool_is_avg=bool(pool_choice[b_idx]),
            pool_k=pool_kernels[b_idx],
            pool_stride=pool_strides[b_idx],
            pool_pad=pool_paddings[b_idx],
        )
        # Dropout: eval-mode identity (p = 0.0 in this config anyway).

    # Matches `input_data.view(input_data.size(0), self.num_labels)`
    real_c = block_out[-1][-1]
    flat = x[..., :real_c].reshape(N, -1)
    assert flat.shape[1] == NUM_LABELS, flat.shape
    return flat


# ------------------------------------------------------------------------ main --

if __name__ == "__main__":
    key = jax.random.PRNGKey(0)
    k_in, k_params = jax.random.split(key)

    # PyTorch-convention NCHW input: (batch, channels, height, width)
    x_nchw = jax.random.normal(k_in, (BATCH, INPUT_CHANNELS, SPATIAL, SPATIAL),
                               jnp.float32)
    # Layout glue: NCHW -> NHWC so channels sit on the TPU lane axis.
    x_nhwc = jnp.transpose(x_nchw, (0, 2, 3, 1))

    params = init_params(k_params, CONFIG, INPUT_CHANNELS)

    fwd = jax.jit(functools.partial(nin_forward, config=CONFIG))
    out = jax.block_until_ready(fwd(params, x_nhwc))

    assert out.shape == (BATCH, NUM_LABELS), out.shape
    assert jnp.all(jnp.isfinite(out))
    print("KERNEL_OK")
</pallas_src>

<mosaic_0001>
module attributes {stable_mosaic.version = 11 : i64} {
  func.func @kernel(%arg0: i32, %arg1: memref<1x18x18x128xf32, #tpu.memory_space<vmem>>, %arg2: memref<9x128x128xbf16, #tpu.memory_space<vmem>>, %arg3: memref<1x128xf32, #tpu.memory_space<vmem>>, %arg4: memref<1x128x128xbf16, #tpu.memory_space<vmem>>, %arg5: memref<1x128xf32, #tpu.memory_space<vmem>>, %arg6: memref<1x128xf32, #tpu.memory_space<vmem>>, %arg7: memref<1x128xf32, #tpu.memory_space<vmem>>, %arg8: memref<1x64x128xf32, #tpu.memory_space<vmem>>, %arg9: memref<16x16x128xf32, #tpu.memory_space<vmem>>) attributes {dimension_semantics = [#tpu.dimension_semantics<parallel>], iteration_bounds = array<i64: 2>, scalar_prefetch = 0 : i64, scratch_operands = 1 : i64, tpu.core_type = #tpu.core_type<tc>, window_params = [{transform_indices = @transform_0, window_bounds = array<i64: 1, 18, 18, 128>}, {pipeline_mode = #tpu.pipeline_mode<synchronous>, transform_indices = @transform_1, window_bounds = array<i64: 9, 128, 128>}, {pipeline_mode = #tpu.pipeline_mode<synchronous>, transform_indices = @transform_2, window_bounds = array<i64: 1, 128>}, {pipeline_mode = #tpu.pipeline_mode<synchronous>, transform_indices = @transform_3, window_bounds = array<i64: 1, 128, 128>}, {pipeline_mode = #tpu.pipeline_mode<synchronous>, transform_indices = @transform_4, window_bounds = array<i64: 1, 128>}, {pipeline_mode = #tpu.pipeline_mode<synchronous>, transform_indices = @transform_5, window_bounds = array<i64: 1, 128>}, {pipeline_mode = #tpu.pipeline_mode<synchronous>, transform_indices = @transform_6, window_bounds = array<i64: 1, 128>}, {transform_indices = @transform_7, window_bounds = array<i64: 1, 64, 128>}]} {
    %c0 = arith.constant 0 : index
    %c0_0 = arith.constant 0 : index
    %c0_1 = arith.constant 0 : index
    %c0_2 = arith.constant 0 : index
    %0 = vector.load %arg1[%c0, %c0_0, %c0_1, %c0_2] : memref<1x18x18x128xf32, #tpu.memory_space<vmem>>, vector<1x16x16x128xf32>
    %1 = vector.shape_cast %0 : vector<1x16x16x128xf32> to vector<16x16x128xf32>
    %2 = vector.shape_cast %1 : vector<16x16x128xf32> to vector<256x128xf32>
    %3 = arith.truncf %2 : vector<256x128xf32> to vector<256x128xbf16>
    %c0_3 = arith.constant 0 : index
    %c0_4 = arith.constant 0 : index
    %c0_5 = arith.constant 0 : index
    %4 = vector.load %arg2[%c0_3, %c0_4, %c0_5] : memref<9x128x128xbf16, #tpu.memory_space<vmem>>, vector<1x128x128xbf16>
    %5 = vector.shape_cast %4 : vector<1x128x128xbf16> to vector<128x128xbf16>
    %cst = arith.constant dense<0.000000e+00> : vector<256x128xf32>
    %6 = tpu.matmul %3, %5, %cst {dimension_numbers = #tpu.dot_dimension_numbers<[1], [0], [0], [1], [0, 0, 1, 1], [], []>} : vector<256x128xbf16>, vector<128x128xbf16>, vector<256x128xf32> -> vector<256x128xf32>
    %c0_6 = arith.constant 0 : index
    %c0_7 = arith.constant 0 : index
    %c1 = arith.constant 1 : index
    %c0_8 = arith.constant 0 : index
    %7 = vector.load %arg1[%c0_6, %c0_7, %c1, %c0_8] : memref<1x18x18x128xf32, #tpu.memory_space<vmem>>, vector<1x16x16x128xf32>
    %8 = vector.shape_cast %7 : vector<1x16x16x128xf32> to vector<16x16x128xf32>
    %9 = vector.shape_cast %8 : vector<16x16x128xf32> to vector<256x128xf32>
    %10 = arith.truncf %9 : vector<256x128xf32> to vector<256x128xbf16>
    %c1_9 = arith.constant 1 : index
    %c0_10 = arith.constant 0 : index
    %c0_11 = arith.constant 0 : index
    %11 = vector.load %arg2[%c1_9, %c0_10, %c0_11] : memref<9x128x128xbf16, #tpu.memory_space<vmem>>, vector<1x128x128xbf16>
    %12 = vector.shape_cast %11 : vector<1x128x128xbf16> to vector<128x128xbf16>
    %cst_12 = arith.constant dense<0.000000e+00> : vector<256x128xf32>
    %13 = tpu.matmul %10, %12, %cst_12 {dimension_numbers = #tpu.dot_dimension_numbers<[1], [0], [0], [1], [0, 0, 1, 1], [], []>} : vector<256x128xbf16>, vector<128x128xbf16>, vector<256x128xf32> -> vector<256x128xf32>
    %14 = arith.addf %6, %13 : vector<256x128xf32>
    %c0_13 = arith.constant 0 : index
    %c0_14 = arith.constant 0 : index
    %c2 = arith.constant 2 : index
    %c0_15 = arith.constant 0 : index
    %15 = vector.load %arg1[%c0_13, %c0_14, %c2, %c0_15] : memref<1x18x18x128xf32, #tpu.memory_space<vmem>>, vector<1x16x16x128xf32>
    %16 = vector.shape_cast %15 : vector<1x16x16x128xf32> to vector<16x16x128xf32>
    %17 = vector.shape_cast %16 : vector<16x16x128xf32> to vector<256x128xf32>
    %18 = arith.truncf %17 : vector<256x128xf32> to vector<256x128xbf16>
    %c2_16 = arith.constant 2 : index
    %c0_17 = arith.constant 0 : index
    %c0_18 = arith.constant 0 : index
    %19 = vector.load %arg2[%c2_16, %c0_17, %c0_18] : memref<9x128x128xbf16, #tpu.memory_space<vmem>>, vector<1x128x128xbf16>
    %20 = vector.shape_cast %19 : vector<1x128x128xbf16> to vector<128x128xbf16>
    %cst_19 = arith.constant dense<0.000000e+00> : vector<256x128xf32>
    %21 = tpu.matmul %18, %20, %cst_19 {dimension_numbers = #tpu.dot_dimension_numbers<[1], [0], [0], [1], [0, 0, 1, 1], [], []>} : vector<256x128xbf16>, vector<128x128xbf16>, vector<256x128xf32> -> vector<256x128xf32>
    %22 = arith.addf %14, %21 : vector<256x128xf32>
    %c0_20 = arith.constant 0 : index
    %c1_21 = arith.constant 1 : index
    %c0_22 = arith.constant 0 : index
    %c0_23 = arith.constant 0 : index
    %23 = vector.load %arg1[%c0_20, %c1_21, %c0_22, %c0_23] : memref<1x18x18x128xf32, #tpu.memory_space<vmem>>, vector<1x16x16x128xf32>
    %24 = vector.shape_cast %23 : vector<1x16x16x128xf32> to vector<16x16x128xf32>
    %25 = vector.shape_cast %24 : vector<16x16x128xf32> to vector<256x128xf32>
    %26 = arith.truncf %25 : vector<256x128xf32> to vector<256x128xbf16>
    %c3 = arith.constant 3 : index
    %c0_24 = arith.constant 0 : index
    %c0_25 = arith.constant 0 : index
    %27 = vector.load %arg2[%c3, %c0_24, %c0_25] : memref<9x128x128xbf16, #tpu.memory_space<vmem>>, vector<1x128x128xbf16>
    %28 = vector.shape_cast %27 : vector<1x128x128xbf16> to vector<128x128xbf16>
    %cst_26 = arith.constant dense<0.000000e+00> : vector<256x128xf32>
    %29 = tpu.matmul %26, %28, %cst_26 {dimension_numbers = #tpu.dot_dimension_numbers<[1], [0], [0], [1], [0, 0, 1, 1], [], []>} : vector<256x128xbf16>, vector<128x128xbf16>, vector<256x128xf32> -> vector<256x128xf32>
    %30 = arith.addf %22, %29 : vector<256x128xf32>
    %c0_27 = arith.constant 0 : index
    %c1_28 = arith.constant 1 : index
    %c1_29 = arith.constant 1 : index
    %c0_30 = arith.constant 0 : index
    %31 = vector.load %arg1[%c0_27, %c1_28, %c1_29, %c0_30] : memref<1x18x18x128xf32, #tpu.memory_space<vmem>>, vector<1x16x16x128xf32>
    %32 = vector.shape_cast %31 : vector<1x16x16x128xf32> to vector<16x16x128xf32>
    %33 = vector.shape_cast %32 : vector<16x16x128xf32> to vector<256x128xf32>
    %34 = arith.truncf %33 : vector<256x128xf32> to vector<256x128xbf16>
    %c4 = arith.constant 4 : index
    %c0_31 = arith.constant 0 : index
    %c0_32 = arith.constant 0 : index
    %35 = vector.load %arg2[%c4, %c0_31, %c0_32] : memref<9x128x128xbf16, #tpu.memory_space<vmem>>, vector<1x128x128xbf16>
    %36 = vector.shape_cast %35 : vector<1x128x128xbf16> to vector<128x128xbf16>
    %cst_33 = arith.constant dense<0.000000e+00> : vector<256x128xf32>
    %37 = tpu.matmul %34, %36, %cst_33 {dimension_numbers = #tpu.dot_dimension_numbers<[1], [0], [0], [1], [0, 0, 1, 1], [], []>} : vector<256x128xbf16>, vector<128x128xbf16>, vector<256x128xf32> -> vector<256x128xf32>
    %38 = arith.addf %30, %37 : vector<256x128xf32>
    %c0_34 = arith.constant 0 : index
    %c1_35 = arith.constant 1 : index
    %c2_36 = arith.constant 2 : index
    %c0_37 = arith.constant 0 : index
    %39 = vector.load %arg1[%c0_34, %c1_35, %c2_36, %c0_37] : memref<1x18x18x128xf32, #tpu.memory_space<vmem>>, vector<1x16x16x128xf32>
    %40 = vector.shape_cast %39 : vector<1x16x16x128xf32> to vector<16x16x128xf32>
    %41 = vector.shape_cast %40 : vector<16x16x128xf32> to vector<256x128xf32>
    %42 = arith.truncf %41 : vector<256x128xf32> to vector<256x128xbf16>
    %c5 = arith.constant 5 : index
    %c0_38 = arith.constant 0 : index
    %c0_39 = arith.constant 0 : index
    %43 = vector.load %arg2[%c5, %c0_38, %c0_39] : memref<9x128x128xbf16, #tpu.memory_space<vmem>>, vector<1x128x128xbf16>
    %44 = vector.shape_cast %43 : vector<1x128x128xbf16> to vector<128x128xbf16>
    %cst_40 = arith.constant dense<0.000000e+00> : vector<256x128xf32>
    %45 = tpu.matmul %42, %44, %cst_40 {dimension_numbers = #tpu.dot_dimension_numbers<[1], [0], [0], [1], [0, 0, 1, 1], [], []>} : vector<256x128xbf16>, vector<128x128xbf16>, vector<256x128xf32> -> vector<256x128xf32>
    %46 = arith.addf %38, %45 : vector<256x128xf32>
    %c0_41 = arith.constant 0 : index
    %c2_42 = arith.constant 2 : index
    %c0_43 = arith.constant 0 : index
    %c0_44 = arith.constant 0 : index
    %47 = vector.load %arg1[%c0_41, %c2_42, %c0_43, %c0_44] : memref<1x18x18x128xf32, #tpu.memory_space<vmem>>, vector<1x16x16x128xf32>
    %48 = vector.shape_cast %47 : vector<1x16x16x128xf32> to vector<16x16x128xf32>
    %49 = vector.shape_cast %48 : vector<16x16x128xf32> to vector<256x128xf32>
    %50 = arith.truncf %49 : vector<256x128xf32> to vector<256x128xbf16>
    %c6 = arith.constant 6 : index
    %c0_45 = arith.constant 0 : index
    %c0_46 = arith.constant 0 : index
    %51 = vector.load %arg2[%c6, %c0_45, %c0_46] : memref<9x128x128xbf16, #tpu.memory_space<vmem>>, vector<1x128x128xbf16>
    %52 = vector.shape_cast %51 : vector<1x128x128xbf16> to vector<128x128xbf16>
    %cst_47 = arith.constant dense<0.000000e+00> : vector<256x128xf32>
    %53 = tpu.matmul %50, %52, %cst_47 {dimension_numbers = #tpu.dot_dimension_numbers<[1], [0], [0], [1], [0, 0, 1, 1], [], []>} : vector<256x128xbf16>, vector<128x128xbf16>, vector<256x128xf32> -> vector<256x128xf32>
    %54 = arith.addf %46, %53 : vector<256x128xf32>
    %c0_48 = arith.constant 0 : index
    %c2_49 = arith.constant 2 : index
    %c1_50 = arith.constant 1 : index
    %c0_51 = arith.constant 0 : index
    %55 = vector.load %arg1[%c0_48, %c2_49, %c1_50, %c0_51] : memref<1x18x18x128xf32, #tpu.memory_space<vmem>>, vector<1x16x16x128xf32>
    %56 = vector.shape_cast %55 : vector<1x16x16x128xf32> to vector<16x16x128xf32>
    %57 = vector.shape_cast %56 : vector<16x16x128xf32> to vector<256x128xf32>
    %58 = arith.truncf %57 : vector<256x128xf32> to vector<256x128xbf16>
    %c7 = arith.constant 7 : index
    %c0_52 = arith.constant 0 : index
    %c0_53 = arith.constant 0 : index
    %59 = vector.load %arg2[%c7, %c0_52, %c0_53] : memref<9x128x128xbf16, #tpu.memory_space<vmem>>, vector<1x128x128xbf16>
    %60 = vector.shape_cast %59 : vector<1x128x128xbf16> to vector<128x128xbf16>
    %cst_54 = arith.constant dense<0.000000e+00> : vector<256x128xf32>
    %61 = tpu.matmul %58, %60, %cst_54 {dimension_numbers = #tpu.dot_dimension_numbers<[1], [0], [0], [1], [0, 0, 1, 1], [], []>} : vector<256x128xbf16>, vector<128x128xbf16>, vector<256x128xf32> -> vector<256x128xf32>
    %62 = arith.addf %54, %61 : vector<256x128xf32>
    %c0_55 = arith.constant 0 : index
    %c2_56 = arith.constant 2 : index
    %c2_57 = arith.constant 2 : index
    %c0_58 = arith.constant 0 : index
    %63 = vector.load %arg1[%c0_55, %c2_56, %c2_57, %c0_58] : memref<1x18x18x128xf32, #tpu.memory_space<vmem>>, vector<1x16x16x128xf32>
    %64 = vector.shape_cast %63 : vector<1x16x16x128xf32> to vector<16x16x128xf32>
    %65 = vector.shape_cast %64 : vector<16x16x128xf32> to vector<256x128xf32>
    %66 = arith.truncf %65 : vector<256x128xf32> to vector<256x128xbf16>
    %c8 = arith.constant 8 : index
    %c0_59 = arith.constant 0 : index
    %c0_60 = arith.constant 0 : index
    %67 = vector.load %arg2[%c8, %c0_59, %c0_60] : memref<9x128x128xbf16, #tpu.memory_space<vmem>>, vector<1x128x128xbf16>
    %68 = vector.shape_cast %67 : vector<1x128x128xbf16> to vector<128x128xbf16>
    %cst_61 = arith.constant dense<0.000000e+00> : vector<256x128xf32>
    %69 = tpu.matmul %66, %68, %cst_61 {dimension_numbers = #tpu.dot_dimension_numbers<[1], [0], [0], [1], [0, 0, 1, 1], [], []>} : vector<256x128xbf16>, vector<128x128xbf16>, vector<256x128xf32> -> vector<256x128xf32>
    %70 = arith.addf %62, %69 : vector<256x128xf32>
    %c0_62 = arith.constant 0 : index
    %c0_63 = arith.constant 0 : index
    %71 = vector.load %arg3[%c0_62, %c0_63] : memref<1x128xf32, #tpu.memory_space<vmem>>, vector<1x128xf32>
    %72 = vector.broadcast %71 : vector<1x128xf32> to vector<256x128xf32>
    %73 = arith.addf %70, %72 : vector<256x128xf32>
    %cst_64 = arith.constant 0.000000e+00 : f32
    %74 = vector.broadcast %cst_64 : f32 to vector<256x128xf32>
    %75 = arith.maximumf %73, %74 : vector<256x128xf32>
    %76 = arith.truncf %75 : vector<256x128xf32> to vector<256x128xbf16>
    %c0_65 = arith.constant 0 : index
    %c0_66 = arith.constant 0 : index
    %c0_67 = arith.constant 0 : index
    %77 = vector.load %arg4[%c0_65, %c0_66, %c0_67] : memref<1x128x128xbf16, #tpu.memory_space<vmem>>, vector<1x128x128xbf16>
    %78 = vector.shape_cast %77 : vector<1x128x128xbf16> to vector<128x128xbf16>
    %cst_68 = arith.constant dense<0.000000e+00> : vector<256x128xf32>
    %79 = tpu.matmul %76, %78, %cst_68 {dimension_numbers = #tpu.dot_dimension_numbers<[1], [0], [0], [1], [0, 0, 1, 1], [], []>} : vector<256x128xbf16>, vector<128x128xbf16>, vector<256x128xf32> -> vector<256x128xf32>
    %c0_69 = arith.constant 0 : index
    %c0_70 = arith.constant 0 : index
    %80 = vector.load %arg5[%c0_69, %c0_70] : memref<1x128xf32, #tpu.memory_space<vmem>>, vector<1x128xf32>
    %81 = vector.broadcast %80 : vector<1x128xf32> to vector<256x128xf32>
    %82 = arith.addf %79, %81 : vector<256x128xf32>
    %cst_71 = arith.constant 0.000000e+00 : f32
    %83 = vector.broadcast %cst_71 : f32 to vector<256x128xf32>
    %84 = arith.maximumf %82, %83 : vector<256x128xf32>
    %c0_72 = arith.constant 0 : index
    %c0_73 = arith.constant 0 : index
    %85 = vector.load %arg6[%c0_72, %c0_73] : memref<1x128xf32, #tpu.memory_space<vmem>>, vector<1x128xf32>
    %86 = vector.broadcast %85 : vector<1x128xf32> to vector<256x128xf32>
    %87 = arith.mulf %84, %86 : vector<256x128xf32>
    %c0_74 = arith.constant 0 : index
    %c0_75 = arith.constant 0 : index
    %88 = vector.load %arg7[%c0_74, %c0_75] : memref<1x128xf32, #tpu.memory_space<vmem>>, vector<1x128xf32>
    %89 = vector.broadcast %88 : vector<1x128xf32> to vector<256x128xf32>
    %90 = arith.addf %87, %89 : vector<256x128xf32>
    %91 = vector.shape_cast %90 : vector<256x128xf32> to vector<16x16x128xf32>
    %c0_76 = arith.constant 0 : index
    %c0_77 = arith.constant 0 : index
    %c0_78 = arith.constant 0 : index
    %92 = vector.load %arg9[%c0_76, %c0_77, %c0_78] : memref<16x16x128xf32, #tpu.memory_space<vmem>>, vector<16x16x128xf32>
    tpu.vector_store %arg9[%c0_76, %c0_77, %c0_78], %91 {strides = array<i32>} : memref<16x16x128xf32, #tpu.memory_space<vmem>>, vector<16x16x128xf32>,
    %c0_79 = arith.constant 0 : index
    %c0_80 = arith.constant 0 : index
    %c0_81 = arith.constant 0 : index
    %93 = tpu.strided_load %arg9[%c0_79, %c0_80, %c0_81] {strides = array<i32: 2, 2, 1>} : memref<16x16x128xf32, #tpu.memory_space<vmem>>, vector<8x8x128xf32>
    %94 = vector.shape_cast %93 : vector<8x8x128xf32> to vector<64x128xf32>
    %c0_82 = arith.constant 0 : index
    %c1_83 = arith.constant 1 : index
    %c0_84 = arith.constant 0 : index
    %95 = tpu.strided_load %arg9[%c0_82, %c1_83, %c0_84] {strides = array<i32: 2, 2, 1>} : memref<16x16x128xf32, #tpu.memory_space<vmem>>, vector<8x8x128xf32>
    %96 = vector.shape_cast %95 : vector<8x8x128xf32> to vector<64x128xf32>
    %97 = arith.maximumf %94, %96 : vector<64x128xf32>
    %c1_85 = arith.constant 1 : index
    %c0_86 = arith.constant 0 : index
    %c0_87 = arith.constant 0 : index
    %98 = tpu.strided_load %arg9[%c1_85, %c0_86, %c0_87] {strides = array<i32: 2, 2, 1>} : memref<16x16x128xf32, #tpu.memory_space<vmem>>, vector<8x8x128xf32>
    %99 = vector.shape_cast %98 : vector<8x8x128xf32> to vector<64x128xf32>
    %100 = arith.maximumf %97, %99 : vector<64x128xf32>
    %c1_88 = arith.constant 1 : index
    %c1_89 = arith.constant 1 : index
    %c0_90 = arith.constant 0 : index
    %101 = tpu.strided_load %arg9[%c1_88, %c1_89, %c0_90] {strides = array<i32: 2, 2, 1>} : memref<16x16x128xf32, #tpu.memory_space<vmem>>, vector<8x8x128xf32>
    %102 = vector.shape_cast %101 : vector<8x8x128xf32> to vector<64x128xf32>
    %103 = arith.maximumf %100, %102 : vector<64x128xf32>
    %c0_91 = arith.constant 0 : index
    %c0_92 = arith.constant 0 : index
    %c0_93 = arith.constant 0 : index
    %104 = vector.load %arg8[%c0_91, %c0_92, %c0_93] : memref<1x64x128xf32, #tpu.memory_space<vmem>>, vector<1x64x128xf32>
    %105 = vector.shape_cast %104 : vector<1x64x128xf32> to vector<64x128xf32>
    %106 = vector.shape_cast %103 : vector<64x128xf32> to vector<1x64x128xf32>
    tpu.vector_store %arg8[%c0_91, %c0_92, %c0_93], %106 {strides = array<i32>} : memref<1x64x128xf32, #tpu.memory_space<vmem>>, vector<1x64x128xf32>,
    return
  }
  func.func @transform_0(%arg0: i32) -> (i32, i32, i32, i32) {
    %c0_i32 = arith.constant 0 : i32
    %c0_i32_0 = arith.constant 0 : i32
    %c0_i32_1 = arith.constant 0 : i32
    %c0_i32_2 = arith.constant 0 : i32
    return %arg0, %c0_i32, %c0_i32_0, %c0_i32_1 : i32, i32, i32, i32
  }
  func.func @transform_1(%arg0: i32) -> (i32, i32, i32) {
    %c0_i32 = arith.constant 0 : i32
    %c0_i32_0 = arith.constant 0 : i32
    %c0_i32_1 = arith.constant 0 : i32
    %c0_i32_2 = arith.constant 0 : i32
    return %c0_i32, %c0_i32_0, %c0_i32_1 : i32, i32, i32
  }
  func.func @transform_2(%arg0: i32) -> (i32, i32) {
    %c0_i32 = arith.constant 0 : i32
    %c0_i32_0 = arith.constant 0 : i32
    %c0_i32_1 = arith.constant 0 : i32
    return %c0_i32, %c0_i32_0 : i32, i32
  }
  func.func @transform_3(%arg0: i32) -> (i32, i32, i32) {
    %c0_i32 = arith.constant 0 : i32
    %c0_i32_0 = arith.constant 0 : i32
    %c0_i32_1 = arith.constant 0 : i32
    %c0_i32_2 = arith.constant 0 : i32
    return %c0_i32, %c0_i32_0, %c0_i32_1 : i32, i32, i32
  }
  func.func @transform_4(%arg0: i32) -> (i32, i32) {
    %c0_i32 = arith.constant 0 : i32
    %c0_i32_0 = arith.constant 0 : i32
    %c0_i32_1 = arith.constant 0 : i32
    return %c0_i32, %c0_i32_0 : i32, i32
  }
  func.func @transform_5(%arg0: i32) -> (i32, i32) {
    %c0_i32 = arith.constant 0 : i32
    %c0_i32_0 = arith.constant 0 : i32
    %c0_i32_1 = arith.constant 0 : i32
    return %c0_i32, %c0_i32_0 : i32, i32
  }
  func.func @transform_6(%arg0: i32) -> (i32, i32) {
    %c0_i32 = arith.constant 0 : i32
    %c0_i32_0 = arith.constant 0 : i32
    %c0_i32_1 = arith.constant 0 : i32
    return %c0_i32, %c0_i32_0 : i32, i32
  }
  func.func @transform_7(%arg0: i32) -> (i32, i32, i32) {
    %c0_i32 = arith.constant 0 : i32
    %c0_i32_0 = arith.constant 0 : i32
    %c0_i32_1 = arith.constant 0 : i32
    return %arg0, %c0_i32, %c0_i32_0 : i32, i32, i32
  }
}

module attributes {stable_mosaic.version = 11 : i64} {
  func.func @kernel(%arg0: i32, %arg1: memref<1x10x10x128xf32, #tpu.memory_space<vmem>>, %arg2: memref<9x128x128xbf16, #tpu.memory_space<vmem>>, %arg3: memref<1x128xf32, #tpu.memory_space<vmem>>, %arg4: memref<1x128x128xbf16, #tpu.memory_space<vmem>>, %arg5: memref<1x128xf32, #tpu.memory_space<vmem>>, %arg6: memref<1x128xf32, #tpu.memory_space<vmem>>, %arg7: memref<1x128xf32, #tpu.memory_space<vmem>>, %arg8: memref<1x1x128xf32, #tpu.memory_space<vmem>>) attributes {dimension_semantics = [#tpu.dimension_semantics<parallel>], iteration_bounds = array<i64: 2>, scalar_prefetch = 0 : i64, scratch_operands = 0 : i64, tpu.core_type = #tpu.core_type<tc>, window_params = [{transform_indices = @transform_0, window_bounds = array<i64: 1, 10, 10, 128>}, {pipeline_mode = #tpu.pipeline_mode<synchronous>, transform_indices = @transform_1, window_bounds = array<i64: 9, 128, 128>}, {pipeline_mode = #tpu.pipeline_mode<synchronous>, transform_indices = @transform_2, window_bounds = array<i64: 1, 128>}, {pipeline_mode = #tpu.pipeline_mode<synchronous>, transform_indices = @transform_3, window_bounds = array<i64: 1, 128, 128>}, {pipeline_mode = #tpu.pipeline_mode<synchronous>, transform_indices = @transform_4, window_bounds = array<i64: 1, 128>}, {pipeline_mode = #tpu.pipeline_mode<synchronous>, transform_indices = @transform_5, window_bounds = array<i64: 1, 128>}, {pipeline_mode = #tpu.pipeline_mode<synchronous>, transform_indices = @transform_6, window_bounds = array<i64: 1, 128>}, {transform_indices = @transform_7, window_bounds = array<i64: 1, 1, 128>}]} {
    %c0 = arith.constant 0 : index
    %c0_0 = arith.constant 0 : index
    %c0_1 = arith.constant 0 : index
    %c0_2 = arith.constant 0 : index
    %0 = vector.load %arg1[%c0, %c0_0, %c0_1, %c0_2] : memref<1x10x10x128xf32, #tpu.memory_space<vmem>>, vector<1x8x8x128xf32>
    %1 = vector.shape_cast %0 : vector<1x8x8x128xf32> to vector<8x8x128xf32>
    %2 = vector.shape_cast %1 : vector<8x8x128xf32> to vector<64x128xf32>
    %3 = arith.truncf %2 : vector<64x128xf32> to vector<64x128xbf16>
    %c0_3 = arith.constant 0 : index
    %c0_4 = arith.constant 0 : index
    %c0_5 = arith.constant 0 : index
    %4 = vector.load %arg2[%c0_3, %c0_4, %c0_5] : memref<9x128x128xbf16, #tpu.memory_space<vmem>>, vector<1x128x128xbf16>
    %5 = vector.shape_cast %4 : vector<1x128x128xbf16> to vector<128x128xbf16>
    %cst = arith.constant dense<0.000000e+00> : vector<64x128xf32>
    %6 = tpu.matmul %3, %5, %cst {dimension_numbers = #tpu.dot_dimension_numbers<[1], [0], [0], [1], [0, 0, 1, 1], [], []>} : vector<64x128xbf16>, vector<128x128xbf16>, vector<64x128xf32> -> vector<64x128xf32>
    %c0_6 = arith.constant 0 : index
    %c0_7 = arith.constant 0 : index
    %c1 = arith.constant 1 : index
    %c0_8 = arith.constant 0 : index
    %7 = vector.load %arg1[%c0_6, %c0_7, %c1, %c0_8] : memref<1x10x10x128xf32, #tpu.memory_space<vmem>>, vector<1x8x8x128xf32>
    %8 = vector.shape_cast %7 : vector<1x8x8x128xf32> to vector<8x8x128xf32>
    %9 = vector.shape_cast %8 : vector<8x8x128xf32> to vector<64x128xf32>
    %10 = arith.truncf %9 : vector<64x128xf32> to vector<64x128xbf16>
    %c1_9 = arith.constant 1 : index
    %c0_10 = arith.constant 0 : index
    %c0_11 = arith.constant 0 : index
    %11 = vector.load %arg2[%c1_9, %c0_10, %c0_11] : memref<9x128x128xbf16, #tpu.memory_space<vmem>>, vector<1x128x128xbf16>
    %12 = vector.shape_cast %11 : vector<1x128x128xbf16> to vector<128x128xbf16>
    %cst_12 = arith.constant dense<0.000000e+00> : vector<64x128xf32>
    %13 = tpu.matmul %10, %12, %cst_12 {dimension_numbers = #tpu.dot_dimension_numbers<[1], [0], [0], [1], [0, 0, 1, 1], [], []>} : vector<64x128xbf16>, vector<128x128xbf16>, vector<64x128xf32> -> vector<64x128xf32>
    %14 = arith.addf %6, %13 : vector<64x128xf32>
    %c0_13 = arith.constant 0 : index
    %c0_14 = arith.constant 0 : index
    %c2 = arith.constant 2 : index
    %c0_15 = arith.constant 0 : index
    %15 = vector.load %arg1[%c0_13, %c0_14, %c2, %c0_15] : memref<1x10x10x128xf32, #tpu.memory_space<vmem>>, vector<1x8x8x128xf32>
    %16 = vector.shape_cast %15 : vector<1x8x8x128xf32> to vector<8x8x128xf32>
    %17 = vector.shape_cast %16 : vector<8x8x128xf32> to vector<64x128xf32>
    %18 = arith.truncf %17 : vector<64x128xf32> to vector<64x128xbf16>
    %c2_16 = arith.constant 2 : index
    %c0_17 = arith.constant 0 : index
    %c0_18 = arith.constant 0 : index
    %19 = vector.load %arg2[%c2_16, %c0_17, %c0_18] : memref<9x128x128xbf16, #tpu.memory_space<vmem>>, vector<1x128x128xbf16>
    %20 = vector.shape_cast %19 : vector<1x128x128xbf16> to vector<128x128xbf16>
    %cst_19 = arith.constant dense<0.000000e+00> : vector<64x128xf32>
    %21 = tpu.matmul %18, %20, %cst_19 {dimension_numbers = #tpu.dot_dimension_numbers<[1], [0], [0], [1], [0, 0, 1, 1], [], []>} : vector<64x128xbf16>, vector<128x128xbf16>, vector<64x128xf32> -> vector<64x128xf32>
    %22 = arith.addf %14, %21 : vector<64x128xf32>
    %c0_20 = arith.constant 0 : index
    %c1_21 = arith.constant 1 : index
    %c0_22 = arith.constant 0 : index
    %c0_23 = arith.constant 0 : index
    %23 = vector.load %arg1[%c0_20, %c1_21, %c0_22, %c0_23] : memref<1x10x10x128xf32, #tpu.memory_space<vmem>>, vector<1x8x8x128xf32>
    %24 = vector.shape_cast %23 : vector<1x8x8x128xf32> to vector<8x8x128xf32>
    %25 = vector.shape_cast %24 : vector<8x8x128xf32> to vector<64x128xf32>
    %26 = arith.truncf %25 : vector<64x128xf32> to vector<64x128xbf16>
    %c3 = arith.constant 3 : index
    %c0_24 = arith.constant 0 : index
    %c0_25 = arith.constant 0 : index
    %27 = vector.load %arg2[%c3, %c0_24, %c0_25] : memref<9x128x128xbf16, #tpu.memory_space<vmem>>, vector<1x128x128xbf16>
    %28 = vector.shape_cast %27 : vector<1x128x128xbf16> to vector<128x128xbf16>
    %cst_26 = arith.constant dense<0.000000e+00> : vector<64x128xf32>
    %29 = tpu.matmul %26, %28, %cst_26 {dimension_numbers = #tpu.dot_dimension_numbers<[1], [0], [0], [1], [0, 0, 1, 1], [], []>} : vector<64x128xbf16>, vector<128x128xbf16>, vector<64x128xf32> -> vector<64x128xf32>
    %30 = arith.addf %22, %29 : vector<64x128xf32>
    %c0_27 = arith.constant 0 : index
    %c1_28 = arith.constant 1 : index
    %c1_29 = arith.constant 1 : index
    %c0_30 = arith.constant 0 : index
    %31 = vector.load %arg1[%c0_27, %c1_28, %c1_29, %c0_30] : memref<1x10x10x128xf32, #tpu.memory_space<vmem>>, vector<1x8x8x128xf32>
    %32 = vector.shape_cast %31 : vector<1x8x8x128xf32> to vector<8x8x128xf32>
    %33 = vector.shape_cast %32 : vector<8x8x128xf32> to vector<64x128xf32>
    %34 = arith.truncf %33 : vector<64x128xf32> to vector<64x128xbf16>
    %c4 = arith.constant 4 : index
    %c0_31 = arith.constant 0 : index
    %c0_32 = arith.constant 0 : index
    %35 = vector.load %arg2[%c4, %c0_31, %c0_32] : memref<9x128x128xbf16, #tpu.memory_space<vmem>>, vector<1x128x128xbf16>
    %36 = vector.shape_cast %35 : vector<1x128x128xbf16> to vector<128x128xbf16>
    %cst_33 = arith.constant dense<0.000000e+00> : vector<64x128xf32>
    %37 = tpu.matmul %34, %36, %cst_33 {dimension_numbers = #tpu.dot_dimension_numbers<[1], [0], [0], [1], [0, 0, 1, 1], [], []>} : vector<64x128xbf16>, vector<128x128xbf16>, vector<64x128xf32> -> vector<64x128xf32>
    %38 = arith.addf %30, %37 : vector<64x128xf32>
    %c0_34 = arith.constant 0 : index
    %c1_35 = arith.constant 1 : index
    %c2_36 = arith.constant 2 : index
    %c0_37 = arith.constant 0 : index
    %39 = vector.load %arg1[%c0_34, %c1_35, %c2_36, %c0_37] : memref<1x10x10x128xf32, #tpu.memory_space<vmem>>, vector<1x8x8x128xf32>
    %40 = vector.shape_cast %39 : vector<1x8x8x128xf32> to vector<8x8x128xf32>
    %41 = vector.shape_cast %40 : vector<8x8x128xf32> to vector<64x128xf32>
    %42 = arith.truncf %41 : vector<64x128xf32> to vector<64x128xbf16>
    %c5 = arith.constant 5 : index
    %c0_38 = arith.constant 0 : index
    %c0_39 = arith.constant 0 : index
    %43 = vector.load %arg2[%c5, %c0_38, %c0_39] : memref<9x128x128xbf16, #tpu.memory_space<vmem>>, vector<1x128x128xbf16>
    %44 = vector.shape_cast %43 : vector<1x128x128xbf16> to vector<128x128xbf16>
    %cst_40 = arith.constant dense<0.000000e+00> : vector<64x128xf32>
    %45 = tpu.matmul %42, %44, %cst_40 {dimension_numbers = #tpu.dot_dimension_numbers<[1], [0], [0], [1], [0, 0, 1, 1], [], []>} : vector<64x128xbf16>, vector<128x128xbf16>, vector<64x128xf32> -> vector<64x128xf32>
    %46 = arith.addf %38, %45 : vector<64x128xf32>
    %c0_41 = arith.constant 0 : index
    %c2_42 = arith.constant 2 : index
    %c0_43 = arith.constant 0 : index
    %c0_44 = arith.constant 0 : index
    %47 = vector.load %arg1[%c0_41, %c2_42, %c0_43, %c0_44] : memref<1x10x10x128xf32, #tpu.memory_space<vmem>>, vector<1x8x8x128xf32>
    %48 = vector.shape_cast %47 : vector<1x8x8x128xf32> to vector<8x8x128xf32>
    %49 = vector.shape_cast %48 : vector<8x8x128xf32> to vector<64x128xf32>
    %50 = arith.truncf %49 : vector<64x128xf32> to vector<64x128xbf16>
    %c6 = arith.constant 6 : index
    %c0_45 = arith.constant 0 : index
    %c0_46 = arith.constant 0 : index
    %51 = vector.load %arg2[%c6, %c0_45, %c0_46] : memref<9x128x128xbf16, #tpu.memory_space<vmem>>, vector<1x128x128xbf16>
    %52 = vector.shape_cast %51 : vector<1x128x128xbf16> to vector<128x128xbf16>
    %cst_47 = arith.constant dense<0.000000e+00> : vector<64x128xf32>
    %53 = tpu.matmul %50, %52, %cst_47 {dimension_numbers = #tpu.dot_dimension_numbers<[1], [0], [0], [1], [0, 0, 1, 1], [], []>} : vector<64x128xbf16>, vector<128x128xbf16>, vector<64x128xf32> -> vector<64x128xf32>
    %54 = arith.addf %46, %53 : vector<64x128xf32>
    %c0_48 = arith.constant 0 : index
    %c2_49 = arith.constant 2 : index
    %c1_50 = arith.constant 1 : index
    %c0_51 = arith.constant 0 : index
    %55 = vector.load %arg1[%c0_48, %c2_49, %c1_50, %c0_51] : memref<1x10x10x128xf32, #tpu.memory_space<vmem>>, vector<1x8x8x128xf32>
    %56 = vector.shape_cast %55 : vector<1x8x8x128xf32> to vector<8x8x128xf32>
    %57 = vector.shape_cast %56 : vector<8x8x128xf32> to vector<64x128xf32>
    %58 = arith.truncf %57 : vector<64x128xf32> to vector<64x128xbf16>
    %c7 = arith.constant 7 : index
    %c0_52 = arith.constant 0 : index
    %c0_53 = arith.constant 0 : index
    %59 = vector.load %arg2[%c7, %c0_52, %c0_53] : memref<9x128x128xbf16, #tpu.memory_space<vmem>>, vector<1x128x128xbf16>
    %60 = vector.shape_cast %59 : vector<1x128x128xbf16> to vector<128x128xbf16>
    %cst_54 = arith.constant dense<0.000000e+00> : vector<64x128xf32>
    %61 = tpu.matmul %58, %60, %cst_54 {dimension_numbers = #tpu.dot_dimension_numbers<[1], [0], [0], [1], [0, 0, 1, 1], [], []>} : vector<64x128xbf16>, vector<128x128xbf16>, vector<64x128xf32> -> vector<64x128xf32>
    %62 = arith.addf %54, %61 : vector<64x128xf32>
    %c0_55 = arith.constant 0 : index
    %c2_56 = arith.constant 2 : index
    %c2_57 = arith.constant 2 : index
    %c0_58 = arith.constant 0 : index
    %63 = vector.load %arg1[%c0_55, %c2_56, %c2_57, %c0_58] : memref<1x10x10x128xf32, #tpu.memory_space<vmem>>, vector<1x8x8x128xf32>
    %64 = vector.shape_cast %63 : vector<1x8x8x128xf32> to vector<8x8x128xf32>
    %65 = vector.shape_cast %64 : vector<8x8x128xf32> to vector<64x128xf32>
    %66 = arith.truncf %65 : vector<64x128xf32> to vector<64x128xbf16>
    %c8 = arith.constant 8 : index
    %c0_59 = arith.constant 0 : index
    %c0_60 = arith.constant 0 : index
    %67 = vector.load %arg2[%c8, %c0_59, %c0_60] : memref<9x128x128xbf16, #tpu.memory_space<vmem>>, vector<1x128x128xbf16>
    %68 = vector.shape_cast %67 : vector<1x128x128xbf16> to vector<128x128xbf16>
    %cst_61 = arith.constant dense<0.000000e+00> : vector<64x128xf32>
    %69 = tpu.matmul %66, %68, %cst_61 {dimension_numbers = #tpu.dot_dimension_numbers<[1], [0], [0], [1], [0, 0, 1, 1], [], []>} : vector<64x128xbf16>, vector<128x128xbf16>, vector<64x128xf32> -> vector<64x128xf32>
    %70 = arith.addf %62, %69 : vector<64x128xf32>
    %c0_62 = arith.constant 0 : index
    %c0_63 = arith.constant 0 : index
    %71 = vector.load %arg3[%c0_62, %c0_63] : memref<1x128xf32, #tpu.memory_space<vmem>>, vector<1x128xf32>
    %72 = vector.broadcast %71 : vector<1x128xf32> to vector<64x128xf32>
    %73 = arith.addf %70, %72 : vector<64x128xf32>
    %cst_64 = arith.constant 0.000000e+00 : f32
    %74 = vector.broadcast %cst_64 : f32 to vector<64x128xf32>
    %75 = arith.maximumf %73, %74 : vector<64x128xf32>
    %76 = arith.truncf %75 : vector<64x128xf32> to vector<64x128xbf16>
    %c0_65 = arith.constant 0 : index
    %c0_66 = arith.constant 0 : index
    %c0_67 = arith.constant 0 : index
    %77 = vector.load %arg4[%c0_65, %c0_66, %c0_67] : memref<1x128x128xbf16, #tpu.memory_space<vmem>>, vector<1x128x128xbf16>
    %78 = vector.shape_cast %77 : vector<1x128x128xbf16> to vector<128x128xbf16>
    %cst_68 = arith.constant dense<0.000000e+00> : vector<64x128xf32>
    %79 = tpu.matmul %76, %78, %cst_68 {dimension_numbers = #tpu.dot_dimension_numbers<[1], [0], [0], [1], [0, 0, 1, 1], [], []>} : vector<64x128xbf16>, vector<128x128xbf16>, vector<64x128xf32> -> vector<64x128xf32>
    %c0_69 = arith.constant 0 : index
    %c0_70 = arith.constant 0 : index
    %80 = vector.load %arg5[%c0_69, %c0_70] : memref<1x128xf32, #tpu.memory_space<vmem>>, vector<1x128xf32>
    %81 = vector.broadcast %80 : vector<1x128xf32> to vector<64x128xf32>
    %82 = arith.addf %79, %81 : vector<64x128xf32>
    %cst_71 = arith.constant 0.000000e+00 : f32
    %83 = vector.broadcast %cst_71 : f32 to vector<64x128xf32>
    %84 = arith.maximumf %82, %83 : vector<64x128xf32>
    %c0_72 = arith.constant 0 : index
    %c0_73 = arith.constant 0 : index
    %85 = vector.load %arg6[%c0_72, %c0_73] : memref<1x128xf32, #tpu.memory_space<vmem>>, vector<1x128xf32>
    %86 = vector.broadcast %85 : vector<1x128xf32> to vector<64x128xf32>
    %87 = arith.mulf %84, %86 : vector<64x128xf32>
    %c0_74 = arith.constant 0 : index
    %c0_75 = arith.constant 0 : index
    %88 = vector.load %arg7[%c0_74, %c0_75] : memref<1x128xf32, #tpu.memory_space<vmem>>, vector<1x128xf32>
    %89 = vector.broadcast %88 : vector<1x128xf32> to vector<64x128xf32>
    %90 = arith.addf %87, %89 : vector<64x128xf32>
    %cst_76 = arith.constant dense<0.000000e+00> : vector<128xf32>
    %91 = vector.multi_reduction <add>, %90, %cst_76 [0] : vector<64x128xf32> to vector<128xf32>
    %92 = vector.shape_cast %91 : vector<128xf32> to vector<1x128xf32>
    %cst_77 = arith.constant 1.562500e-02 : f32
    %93 = vector.broadcast %cst_77 : f32 to vector<1x128xf32>
    %94 = arith.mulf %92, %93 : vector<1x128xf32>
    %c0_78 = arith.constant 0 : index
    %c0_79 = arith.constant 0 : index
    %c0_80 = arith.constant 0 : index
    %95 = vector.load %arg8[%c0_78, %c0_79, %c0_80] : memref<1x1x128xf32, #tpu.memory_space<vmem>>, vector<1x1x128xf32>
    %96 = vector.shape_cast %95 : vector<1x1x128xf32> to vector<1x128xf32>
    %97 = vector.shape_cast %94 : vector<1x128xf32> to vector<1x1x128xf32>
    tpu.vector_store %arg8[%c0_78, %c0_79, %c0_80], %97 {strides = array<i32>} : memref<1x1x128xf32, #tpu.memory_space<vmem>>, vector<1x1x128xf32>,
    return
  }
  func.func @transform_0(%arg0: i32) -> (i32, i32, i32, i32) {
    %c0_i32 = arith.constant 0 : i32
    %c0_i32_0 = arith.constant 0 : i32
    %c0_i32_1 = arith.constant 0 : i32
    %c0_i32_2 = arith.constant 0 : i32
    return %arg0, %c0_i32, %c0_i32_0, %c0_i32_1 : i32, i32, i32, i32
  }
  func.func @transform_1(%arg0: i32) -> (i32, i32, i32) {
    %c0_i32 = arith.constant 0 : i32
    %c0_i32_0 = arith.constant 0 : i32
    %c0_i32_1 = arith.constant 0 : i32
    %c0_i32_2 = arith.constant 0 : i32
    return %c0_i32, %c0_i32_0, %c0_i32_1 : i32, i32, i32
  }
  func.func @transform_2(%arg0: i32) -> (i32, i32) {
    %c0_i32 = arith.constant 0 : i32
    %c0_i32_0 = arith.constant 0 : i32
    %c0_i32_1 = arith.constant 0 : i32
    return %c0_i32, %c0_i32_0 : i32, i32
  }
  func.func @transform_3(%arg0: i32) -> (i32, i32, i32) {
    %c0_i32 = arith.constant 0 : i32
    %c0_i32_0 = arith.constant 0 : i32
    %c0_i32_1 = arith.constant 0 : i32
    %c0_i32_2 = arith.constant 0 : i32
    return %c0_i32, %c0_i32_0, %c0_i32_1 : i32, i32, i32
  }
  func.func @transform_4(%arg0: i32) -> (i32, i32) {
    %c0_i32 = arith.constant 0 : i32
    %c0_i32_0 = arith.constant 0 : i32
    %c0_i32_1 = arith.constant 0 : i32
    return %c0_i32, %c0_i32_0 : i32, i32
  }
  func.func @transform_5(%arg0: i32) -> (i32, i32) {
    %c0_i32 = arith.constant 0 : i32
    %c0_i32_0 = arith.constant 0 : i32
    %c0_i32_1 = arith.constant 0 : i32
    return %c0_i32, %c0_i32_0 : i32, i32
  }
  func.func @transform_6(%arg0: i32) -> (i32, i32) {
    %c0_i32 = arith.constant 0 : i32
    %c0_i32_0 = arith.constant 0 : i32
    %c0_i32_1 = arith.constant 0 : i32
    return %c0_i32, %c0_i32_0 : i32, i32
  }
  func.func @transform_7(%arg0: i32) -> (i32, i32, i32) {
    %c0_i32 = arith.constant 0 : i32
    %c0_i32_0 = arith.constant 0 : i32
    %c0_i32_1 = arith.constant 0 : i32
    return %arg0, %c0_i32, %c0_i32_0 : i32, i32, i32
  }
}

</mosaic_0001>

<llo_original>
// kernel: nin_forward.3
$region0: #{nin_forward.3}
  #allocation0 [shape = 'u32[]', space=smem, size = 0x4, offset = 0x4, fixed_abs, tag = 'smem constant byte address 0x4 - core index']
  #allocation1 [shape = 'u32[144,128]{1,0:T(1,128)}', space=vmem, size = 0x12000, scoped, tag = 'internal scratch']
  %s0 = inlined_call_operand.vmem [shape: f32[2,10,10,128], index: 0, kind: input, shape index: {}]
  %s1 = inlined_call_operand.vmem [shape: bf16[9,128,128], index: 1, kind: input, shape index: {}]
  %s2 = inlined_call_operand.vmem [shape: f32[1,128], index: 2, kind: input, shape index: {}]
  %s3 = inlined_call_operand.vmem [shape: bf16[1,128,128], index: 3, kind: input, shape index: {}]
  %s4 = inlined_call_operand.vmem [shape: f32[1,128], index: 4, kind: input, shape index: {}]
  %s5 = inlined_call_operand.vmem [shape: f32[1,128], index: 5, kind: input, shape index: {}]
  %s6 = inlined_call_operand.vmem [shape: f32[1,128], index: 6, kind: input, shape index: {}]
  %s7 = inlined_call_operand.vmem [shape: f32[2,1,128], index: 7, kind: output, shape index: {}]
  %s8 = sld [smem:[#allocation0]]
  $region61: #{nin_forward.3} parent=0
    _
  %s10 = ssub.s32 1, %s8
  %s11 = scalar_select 0, %s10, %s8
  loop: start=0, step=1, limit=4
  $region2: #{nin_forward.3} parent=0 // loop_pre_header
    _
  $region3: #{nin_forward.3} parent=0 // loop_header
    %s13 = sphi 0, %s17
    %p14 = scmp.ge.s32.totalorder %s13, 4
    %s23 = sphi 0, %s25
    %s26 = sphi 0, %s23
    %s27 = sphi 0, %s26
    %s43 = sphi 0, %s27
    %s47 = sphi 0, %s47
    %s49 = sphi 0, %s47
    %s50 = sphi 0, %s49
    %s64 = sphi 0, %s50
    %s68 = sphi 0, %s68
    %s70 = sphi 0, %s68
    %s71 = sphi 0, %s70
    %s85 = sphi 0, %s71
    %s89 = sphi 0, %s89
    %s91 = sphi 0, %s89
    %s92 = sphi 0, %s91
    %s106 = sphi 0, %s92
    %s110 = sphi 0, %s110
    %s112 = sphi 0, %s110
    %s113 = sphi 0, %s112
    %s127 = sphi 0, %s113
    %s131 = sphi 0, %s131
    %s133 = sphi 0, %s131
    %s134 = sphi 0, %s133
    %s148 = sphi 0, %s134
    %s152 = sphi 0, %s152
    %s154 = sphi 0, %s152
    %s155 = sphi 0, %s154
    %s169 = sphi 0, %s155
    %s175 = sphi 0, %s177
    %s178 = sphi 0, %s175
    %s179 = sphi 0, %s178
    %s195 = sphi 0, %s179
  $region4: #{nin_forward.3} parent=0 // loop_header_branch
    %16 = sbr.rel (%p14) target = $region8
  $region5: #{nin_forward.3} parent=0 // loop_body
    %s18 = ssub.s32 %s13, 1
    %s19 = ssub.s32 %s13, 2
    %s20 = sadd.s32 %s13, 1
    %s21 = ssub.s32 %s13, %s20
    %p22 = scmp.eq.s32.totalorder %s21, 0
    %s24 = sadd.s32 %s23, 1
    %s25 = scalar_select %p22, %s23, %s24
    %p28 = pneg %p22
    %p29 = scmp.eq.s32.totalorder %s13, 1
    %p30 = por %p28, %p29
    %p31 = scmp.ne.s32.totalorder %s23, %s26
    %p32 = scmp.eq.s32.totalorder %s13, 0
    %p33 = por %p31, %p32
    %p34 = scmp.ne.s32.totalorder %s23, %s26
    %p35 = scmp.eq.s32.totalorder %s18, 1
    %p36 = por %p34, %p35
    %p37 = scmp.ne.s32.totalorder %s26, %s27
    %p38 = scmp.eq.s32.totalorder %s18, 0
    %p39 = por %p37, %p38
    %p40 = scmp.ne.s32.totalorder %s26, %s27
    %p41 = scmp.eq.s32.totalorder %s19, 1
    %p42 = por %p40, %p41
    %p44 = scmp.ne.s32.totalorder %s27, %s43
    %p45 = scmp.eq.s32.totalorder %s19, 0
    %p46 = por %p44, %p45
    %s48 = sadd.s32 %s47, 1
    %p51 = scmp.eq.s32.totalorder %s13, 1
    %p52 = scmp.ne.s32.totalorder %s47, %s49
    %p53 = scmp.eq.s32.totalorder %s13, 0
    %p54 = por %p52, %p53
    %p55 = scmp.ne.s32.totalorder %s47, %s49
    %p56 = scmp.eq.s32.totalorder %s18, 1
    %p57 = por %p55, %p56
    %p58 = scmp.ne.s32.totalorder %s49, %s50
    %p59 = scmp.eq.s32.totalorder %s18, 0
    %p60 = por %p58, %p59
    %p61 = scmp.ne.s32.totalorder %s49, %s50
    %p62 = scmp.eq.s32.totalorder %s19, 1
    %p63 = por %p61, %p62
    %p65 = scmp.ne.s32.totalorder %s50, %s64
    %p66 = scmp.eq.s32.totalorder %s19, 0
    %p67 = por %p65, %p66
    %s69 = sadd.s32 %s68, 1
    %p72 = scmp.eq.s32.totalorder %s13, 1
    %p73 = scmp.ne.s32.totalorder %s68, %s70
    %p74 = scmp.eq.s32.totalorder %s13, 0
    %p75 = por %p73, %p74
    %p76 = scmp.ne.s32.totalorder %s68, %s70
    %p77 = scmp.eq.s32.totalorder %s18, 1
    %p78 = por %p76, %p77
    %p79 = scmp.ne.s32.totalorder %s70, %s71
    %p80 = scmp.eq.s32.totalorder %s18, 0
    %p81 = por %p79, %p80
    %p82 = scmp.ne.s32.totalorder %s70, %s71
    %p83 = scmp.eq.s32.totalorder %s19, 1
    %p84 = por %p82, %p83
    %p86 = scmp.ne.s32.totalorder %s71, %s85
    %p87 = scmp.eq.s32.totalorder %s19, 0
    %p88 = por %p86, %p87
    %s90 = sadd.s32 %s89, 1
    %p93 = scmp.eq.s32.totalorder %s13, 1
    %p94 = scmp.ne.s32.totalorder %s89, %s91
    %p95 = scmp.eq.s32.totalorder %s13, 0
    %p96 = por %p94, %p95
    %p97 = scmp.ne.s32.totalorder %s89, %s91
    %p98 = scmp.eq.s32.totalorder %s18, 1
    %p99 = por %p97, %p98
    %p100 = scmp.ne.s32.totalorder %s91, %s92
    %p101 = scmp.eq.s32.totalorder %s18, 0
    %p102 = por %p100, %p101
    %p103 = scmp.ne.s32.totalorder %s91, %s92
    %p104 = scmp.eq.s32.totalorder %s19, 1
    %p105 = por %p103, %p104
    %p107 = scmp.ne.s32.totalorder %s92, %s106
    %p108 = scmp.eq.s32.totalorder %s19, 0
    %p109 = por %p107, %p108
    %s111 = sadd.s32 %s110, 1
    %p114 = scmp.eq.s32.totalorder %s13, 1
    %p115 = scmp.ne.s32.totalorder %s110, %s112
    %p116 = scmp.eq.s32.totalorder %s13, 0
    %p117 = por %p115, %p116
    %p118 = scmp.ne.s32.totalorder %s110, %s112
    %p119 = scmp.eq.s32.totalorder %s18, 1
    %p120 = por %p118, %p119
    %p121 = scmp.ne.s32.totalorder %s112, %s113
    %p122 = scmp.eq.s32.totalorder %s18, 0
    %p123 = por %p121, %p122
    %p124 = scmp.ne.s32.totalorder %s112, %s113
    %p125 = scmp.eq.s32.totalorder %s19, 1
    %p126 = por %p124, %p125
    %p128 = scmp.ne.s32.totalorder %s113, %s127
    %p129 = scmp.eq.s32.totalorder %s19, 0
    %p130 = por %p128, %p129
    %s132 = sadd.s32 %s131, 1
    %p135 = scmp.eq.s32.totalorder %s13, 1
    %p136 = scmp.ne.s32.totalorder %s131, %s133
    %p137 = scmp.eq.s32.totalorder %s13, 0
    %p138 = por %p136, %p137
    %p139 = scmp.ne.s32.totalorder %s131, %s133
    %p140 = scmp.eq.s32.totalorder %s18, 1
    %p141 = por %p139, %p140
    %p142 = scmp.ne.s32.totalorder %s133, %s134
    %p143 = scmp.eq.s32.totalorder %s18, 0
    %p144 = por %p142, %p143
    %p145 = scmp.ne.s32.totalorder %s133, %s134
    %p146 = scmp.eq.s32.totalorder %s19, 1
    %p147 = por %p145, %p146
    %p149 = scmp.ne.s32.totalorder %s134, %s148
    %p150 = scmp.eq.s32.totalorder %s19, 0
    %p151 = por %p149, %p150
    %s153 = sadd.s32 %s152, 1
    %p156 = scmp.eq.s32.totalorder %s13, 1
    %p157 = scmp.ne.s32.totalorder %s152, %s154
    %p158 = scmp.eq.s32.totalorder %s13, 0
    %p159 = por %p157, %p158
    %p160 = scmp.ne.s32.totalorder %s152, %s154
    %p161 = scmp.eq.s32.totalorder %s18, 1
    %p162 = por %p160, %p161
    %p163 = scmp.ne.s32.totalorder %s154, %s155
    %p164 = scmp.eq.s32.totalorder %s18, 0
    %p165 = por %p163, %p164
    %p166 = scmp.ne.s32.totalorder %s154, %s155
    %p167 = scmp.eq.s32.totalorder %s19, 1
    %p168 = por %p166, %p167
    %p170 = scmp.ne.s32.totalorder %s155, %s169
    %p171 = scmp.eq.s32.totalorder %s19, 0
    %p172 = por %p170, %p171
    %s173 = ssub.s32 %s13, %s20
    %p174 = scmp.eq.s32.totalorder %s173, 0
    %s176 = sadd.s32 %s175, 1
    %s177 = scalar_select %p174, %s175, %s176
    %p180 = pneg %p174
    %p181 = scmp.eq.s32.totalorder %s13, 1
    %p182 = por %p180, %p181
    %p183 = scmp.ne.s32.totalorder %s175, %s178
    %p184 = scmp.eq.s32.totalorder %s13, 0
    %p185 = por %p183, %p184
    %p186 = scmp.ne.s32.totalorder %s175, %s178
    %p187 = scmp.eq.s32.totalorder %s18, 1
    %p188 = por %p186, %p187
    %p189 = scmp.ne.s32.totalorder %s178, %s179
    %p190 = scmp.eq.s32.totalorder %s18, 0
    %p191 = por %p189, %p190
    %p192 = scmp.ne.s32.totalorder %s178, %s179
    %p193 = scmp.eq.s32.totalorder %s19, 1
    %p194 = por %p192, %p193
    %p196 = scmp.ne.s32.totalorder %s179, %s195
    %p197 = scmp.eq.s32.totalorder %s19, 0
    %p198 = por %p196, %p197
    %p199 = scmp.le.s32.totalorder 1, %s13
    %p200 = scmp.lt.s32.totalorder %s13, 3
    %p201 = pnand %p199, %p200
    %p202 = pneg %p201
    // Predicated region
    $region9: #{nin_forward.3} parent=5 // pred_check
      _
    $region10: #{nin_forward.3} parent=5 // pred_check_branch
      %204 = sbr.rel (%p201) target = $region12
    $region11: #{nin_forward.3} parent=5 // pred_region
      %s205 = ssub.s32 %s13, 1
      // Predicated region
      $region13: #{nin_forward.3} parent=11 // pred_check
        %p206 = pneg %p60
      $region14: #{nin_forward.3} parent=11 // pred_check_branch
        %208 = sbr.rel (%p206) target = $region16
      $region15: #{nin_forward.3} parent=11 // pred_region
        _
      $region16: #{nin_forward.3} parent=11 // pred_fallthru
        _
      // Predicated region
      $region17: #{nin_forward.3} parent=11 // pred_check
        %p209 = pneg %p81
      $region18: #{nin_forward.3} parent=11 // pred_check_branch
        %211 = sbr.rel (%p209) target = $region20
      $region19: #{nin_forward.3} parent=11 // pred_region
        _
      $region20: #{nin_forward.3} parent=11 // pred_fallthru
        _
      // Predicated region
      $region21: #{nin_forward.3} parent=11 // pred_check
        %p212 = pneg %p102
      $region22: #{nin_forward.3} parent=11 // pred_check_branch
        %214 = sbr.rel (%p212) target = $region24
      $region23: #{nin_forward.3} parent=11 // pred_region
        _
      $region24: #{nin_forward.3} parent=11 // pred_fallthru
        _
      // Predicated region
      $region25: #{nin_forward.3} parent=11 // pred_check
        %p215 = pneg %p123
      $region26: #{nin_forward.3} parent=11 // pred_check_branch
        %217 = sbr.rel (%p215) target = $region28
      $region27: #{nin_forward.3} parent=11 // pred_region
        _
      $region28: #{nin_forward.3} parent=11 // pred_fallthru
        _
      // Predicated region
      $region29: #{nin_forward.3} parent=11 // pred_check
        %p218 = pneg %p144
      $region30: #{nin_forward.3} parent=11 // pred_check_branch
        %220 = sbr.rel (%p218) target = $region32
      $region31: #{nin_forward.3} parent=11 // pred_region
        _
      $region32: #{nin_forward.3} parent=11 // pred_fallthru
        _
      // Predicated region
      $region33: #{nin_forward.3} parent=11 // pred_check
        %p221 = pneg %p165
      $region34: #{nin_forward.3} parent=11 // pred_check_branch
        %223 = sbr.rel (%p221) target = $region36
      $region35: #{nin_forward.3} parent=11 // pred_region
        _
      $region36: #{nin_forward.3} parent=11 // pred_fallthru
        _
    $region12: #{nin_forward.3} parent=5 // pred_fallthru
      _
    %p224 = scmp.lt.s32.totalorder %s13, 2
    // Predicated region
    $region37: #{nin_forward.3} parent=5 // pred_check
      %p225 = pneg %p224
    $region38: #{nin_forward.3} parent=5 // pred_check_branch
      %227 = sbr.rel (%p225) target = $region40
    $region39: #{nin_forward.3} parent=5 // pred_region
      // Predicated region
      $region41: #{nin_forward.3} parent=39 // pred_check
        %p228 = pneg %p33
      $region42: #{nin_forward.3} parent=39 // pred_check_branch
        %230 = sbr.rel (%p228) target = $region44
      $region43: #{nin_forward.3} parent=39 // pred_region
        %p231 = scmp.lt.s32.totalorder %s13, 1
        %s232 = scalar_select %p231, %s13, 1
        %s233 = smul.addr %s232, 20
        %s234 = smul.addr %s233, 8
        %s235 = scalar_lea.vmem %s0, %s234
      $region44: #{nin_forward.3} parent=39 // pred_fallthru
        _
    $region40: #{nin_forward.3} parent=5 // pred_fallthru
      _
    %p236 = scmp.le.s32.totalorder 1, %s13
    %p237 = scmp.lt.s32.totalorder %s13, 3
    %p238 = pnand %p236, %p237
    %p239 = pneg %p238
    // Predicated region
    $region45: #{nin_forward.3} parent=5 // pred_check
      _
    $region46: #{nin_forward.3} parent=5 // pred_check_branch
      %241 = sbr.rel (%p238) target = $region48
    $region47: #{nin_forward.3} parent=5 // pred_region
      %s242 = ssub.s32 %s13, 1
      %p243 = scmp.lt.s32.totalorder %s18, 1
      %s244 = scalar_select %p243, %s18, 1
      %s245 = smul.addr %s244, 20
      %s246 = smul.addr %s245, 8
      %s247 = scalar_lea.vmem %s0, %s246
      %p248 = pneg %p39
      %p249 = pneg %p36
      %p250 = pneg %p60
      %p251 = pneg %p57
      %p252 = pneg %p81
      %p253 = pneg %p78
      %p254 = pneg %p102
      %p255 = pneg %p99
      %p256 = pneg %p123
      %p257 = pneg %p120
      %p258 = pneg %p144
      %p259 = pneg %p141
      %p260 = pneg %p165
      %p261 = pneg %p162
      %p262 = pneg %p191
      %p263 = pneg %p188
      %p264 = scmp.lt.s32.totalorder %s18, 1
      %s265 = scalar_select %p264, %s18, 1
      %s266 = scalar_lea.vmem %s7, %s265
      %p267 = scmp.lt.s32.totalorder %s18, 1
      %s268 = scalar_select %p267, %s18, 1
      %s269 = smul.addr %s268, 20
      %s270 = smul.addr %s269, 8
      %s271 = scalar_lea.vmem %s0, %s270
      %p272 = scmp.lt.s32.totalorder %s18, 1
      %s273 = scalar_select %p272, %s18, 1
      %s274 = scalar_lea.vmem %s7, %s273
      %v276 = vld [vmem:[%s271] sm:$0xff]
      %v277 = vld [vmem:[%s271 + $0x10] sm:$0xff]
      %v278 = vld [vmem:[%s271 + $0x20] sm:$0xff]
      %v279 = vld [vmem:[%s271 + $0x30] sm:$0xff]
      %v280 = vld [vmem:[%s271 + $0x40] sm:$0xff]
      %v281 = vld [vmem:[%s271 + $0x50] sm:$0xff]
      %v282 = vld [vmem:[%s271 + $0x60] sm:$0xff]
      %v283 = vld [vmem:[%s271 + $0x70] sm:$0xff]
      %v284 = vpack.c.bf16 %v277, %v276
      %v285 = vpack.c.bf16 %v279, %v278
      %v286 = vpack.c.bf16 %v281, %v280
      %v287 = vpack.c.bf16 %v283, %v282
      %v288 = vld [vmem:[%s1] sm:$0xf]
      %v289 = vld [vmem:[%s1 + $0x4] sm:$0xf]
      %v290 = vld [vmem:[%s1 + $0x8] sm:$0xf]
      %v291 = vld [vmem:[%s1 + $0xc] sm:$0xf]
      %v292 = vld [vmem:[%s1 + $0x10] sm:$0xf]
      %v293 = vld [vmem:[%s1 + $0x14] sm:$0xf]
      %v294 = vld [vmem:[%s1 + $0x18] sm:$0xf]
      %v295 = vld [vmem:[%s1 + $0x1c] sm:$0xf]
      %v296 = vld [vmem:[%s1 + $0x20] sm:$0xf]
      %v297 = vld [vmem:[%s1 + $0x24] sm:$0xf]
      %v298 = vld [vmem:[%s1 + $0x28] sm:$0xf]
      %v299 = vld [vmem:[%s1 + $0x2c] sm:$0xf]
      %v300 = vld [vmem:[%s1 + $0x30] sm:$0xf]
      %v301 = vld [vmem:[%s1 + $0x34] sm:$0xf]
      %v302 = vld [vmem:[%s1 + $0x38] sm:$0xf]
      %v303 = vld [vmem:[%s1 + $0x3c] sm:$0xf]
      %v304 = vld [vmem:[%s271 + $0x1] sm:$0xff]
      %v305 = vld [vmem:[%s271 + $0x11] sm:$0xff]
      %v306 = vld [vmem:[%s271 + $0x21] sm:$0xff]
      %v307 = vld [vmem:[%s271 + $0x31] sm:$0xff]
      %v308 = vld [vmem:[%s271 + $0x41] sm:$0xff]
      %v309 = vld [vmem:[%s271 + $0x51] sm:$0xff]
      %v310 = vld [vmem:[%s271 + $0x61] sm:$0xff]
      %v311 = vld [vmem:[%s271 + $0x71] sm:$0xff]
      %v312 = vpack.c.bf16 %v305, %v304
      %v313 = vpack.c.bf16 %v307, %v306
      %v314 = vpack.c.bf16 %v309, %v308
      %v315 = vpack.c.bf16 %v311, %v310
      %s316 = scalar_lea.vmem %s1, 64
      %v317 = vld [vmem:[%s316] sm:$0xf]
      %v318 = vld [vmem:[%s316 + $0x4] sm:$0xf]
      %v319 = vld [vmem:[%s316 + $0x8] sm:$0xf]
      %v320 = vld [vmem:[%s316 + $0xc] sm:$0xf]
      %v321 = vld [vmem:[%s316 + $0x10] sm:$0xf]
      %v322 = vld [vmem:[%s316 + $0x14] sm:$0xf]
      %v323 = vld [vmem:[%s316 + $0x18] sm:$0xf]
      %v324 = vld [vmem:[%s316 + $0x1c] sm:$0xf]
      %v325 = vld [vmem:[%s316 + $0x20] sm:$0xf]
      %v326 = vld [vmem:[%s316 + $0x24] sm:$0xf]
      %v327 = vld [vmem:[%s316 + $0x28] sm:$0xf]
      %v328 = vld [vmem:[%s316 + $0x2c] sm:$0xf]
      %v329 = vld [vmem:[%s316 + $0x30] sm:$0xf]
      %v330 = vld [vmem:[%s316 + $0x34] sm:$0xf]
      %v331 = vld [vmem:[%s316 + $0x38] sm:$0xf]
      %v332 = vld [vmem:[%s316 + $0x3c] sm:$0xf]
      %v349 = vunpack.c.l.b16 %v317
      %v350 = vunpack.c.l.b16 %v318
      %v351 = vunpack.c.l.b16 %v319
      %v352 = vunpack.c.l.b16 %v320
      %v353 = vunpack.c.l.b16 %v321
      %v354 = vunpack.c.l.b16 %v322
      %v355 = vunpack.c.l.b16 %v323
      %v356 = vunpack.c.l.b16 %v324
      %v357 = vunpack.c.l.b16 %v325
      %v358 = vunpack.c.l.b16 %v326
      %v359 = vunpack.c.l.b16 %v327
      %v360 = vunpack.c.l.b16 %v328
      %v361 = vunpack.c.l.b16 %v329
      %v362 = vunpack.c.l.b16 %v330
      %v363 = vunpack.c.l.b16 %v331
      %v364 = vunpack.c.l.b16 %v332
      %v365 = vpack.c.b16 %v350, %v349
      %v366 = vpack.c.b16 %v352, %v351
      %v367 = vpack.c.b16 %v354, %v353
      %v368 = vpack.c.b16 %v356, %v355
      %v369 = vpack.c.b16 %v358, %v357
      %v370 = vpack.c.b16 %v360, %v359
      %v371 = vpack.c.b16 %v362, %v361
      %v372 = vpack.c.b16 %v364, %v363
      %381 = vmatprep.subr.bf16.mxu0 0
      %382 = vmatpush1.bf16.msra.mxu0 %v365
      %383 = vmatprep.subr.bf16.mxu0 0
      %384 = vmatpush1.bf16.msra.mxu0 %v366
      %385 = vmatprep.subr.bf16.mxu0 0
      %386 = vmatpush1.bf16.msra.mxu0 %v367
      %387 = vmatprep.subr.bf16.mxu0 0
      %388 = vmatpush1.bf16.msra.mxu0 %v368
      %389 = vmatprep.subr.bf16.mxu0 0
      %390 = vmatpush1.bf16.msra.mxu0 %v369
      %391 = vmatprep.subr.bf16.mxu0 0
      %392 = vmatpush1.bf16.msra.mxu0 %v370
      %393 = vmatprep.subr.bf16.mxu0 0
      %394 = vmatpush1.bf16.msra.mxu0 %v371
      %395 = vmatprep.subr.bf16.mxu0 0
      %396 = vmatpush1.bf16.msra.mxu0 %v372
      %397 = vmatprep.subr.bf16.mxu0 0
      %398 = vmatpush1.bf16.msra.mxu0 0
      %399 = vmatprep.subr.bf16.mxu0 0
      %400 = vmatpush1.bf16.msra.mxu0 0
      %401 = vmatprep.subr.bf16.mxu0 0
      %402 = vmatpush1.bf16.msra.mxu0 0
      %403 = vmatprep.subr.bf16.mxu0 0
      %404 = vmatpush1.bf16.msra.mxu0 0
      %405 = vmatprep.subr.bf16.mxu0 0
      %406 = vmatpush1.bf16.msra.mxu0 0
      %407 = vmatprep.subr.bf16.mxu0 0
      %408 = vmatpush1.bf16.msra.mxu0 0
      %409 = vmatprep.subr.bf16.mxu0 0
      %410 = vmatpush1.bf16.msra.mxu0 0
      %411 = vmatprep.subr.bf16.mxu0 0
      %412 = vmatpush1.bf16.msra.mxu0 0
      %413 = vmatprep.mubr.bf16.mxu0 0
      %414 = vmatmul.mubr.bf16.gmra.mrb[0].mxu0 %v312
      %v415 = vpop.f32.mrb[0].mxu0
      %v416 = vadd.f32 0.0, %v415
      %v417 = vpop.f32.mrb[0].mxu0
      %v418 = vpop.f32.mrb[0].mxu0
      %v419 = vadd.f32 0.0, %v418
      %v420 = vpop.f32.mrb[0].mxu0
      %421 = vmatprep.mubr.bf16.mxu0 0
      %422 = vmatmul.mubr.bf16.gmra.mrb[0].mxu0 %v313
      %v423 = vpop.f32.mrb[0].mxu0
      %v424 = vadd.f32 0.0, %v423
      %v425 = vpop.f32.mrb[0].mxu0
      %v426 = vpop.f32.mrb[0].mxu0
      %v427 = vadd.f32 0.0, %v426
      %v428 = vpop.f32.mrb[0].mxu0
      %429 = vmatprep.mubr.bf16.mxu0 0
      %430 = vmatmul.mubr.bf16.gmra.mrb[0].mxu0 %v314
      %v431 = vpop.f32.mrb[0].mxu0
      %v432 = vadd.f32 0.0, %v431
      %v433 = vpop.f32.mrb[0].mxu0
      %v434 = vpop.f32.mrb[0].mxu0
      %v435 = vadd.f32 0.0, %v434
      %v436 = vpop.f32.mrb[0].mxu0
      %437 = vmatprep.mubr.bf16.mxu0 0
      %438 = vmatmul.mubr.bf16.gmra.mrb[0].mxu0 %v315
      %v439 = vpop.f32.mrb[0].mxu0
      %v440 = vadd.f32 0.0, %v439
      %v441 = vpop.f32.mrb[0].mxu0
      %v442 = vpop.f32.mrb[0].mxu0
      %v443 = vadd.f32 0.0, %v442
      %v444 = vpop.f32.mrb[0].mxu0
      %445 = vdwg.mxu0
      %v462 = vunpack.c.l.b16 %v288
      %v463 = vunpack.c.l.b16 %v289
      %v464 = vunpack.c.l.b16 %v290
      %v465 = vunpack.c.l.b16 %v291
      %v466 = vunpack.c.l.b16 %v292
      %v467 = vunpack.c.l.b16 %v293
      %v468 = vunpack.c.l.b16 %v294
      %v469 = vunpack.c.l.b16 %v295
      %v470 = vunpack.c.l.b16 %v296
      %v471 = vunpack.c.l.b16 %v297
      %v472 = vunpack.c.l.b16 %v298
      %v473 = vunpack.c.l.b16 %v299
      %v474 = vunpack.c.l.b16 %v300
      %v475 = vunpack.c.l.b16 %v301
      %v476 = vunpack.c.l.b16 %v302
      %v477 = vunpack.c.l.b16 %v303
      %v478 = vpack.c.b16 %v463, %v462
      %v479 = vpack.c.b16 %v465, %v464
      %v480 = vpack.c.b16 %v467, %v466
      %v481 = vpack.c.b16 %v469, %v468
      %v482 = vpack.c.b16 %v471, %v470
      %v483 = vpack.c.b16 %v473, %v472
      %v484 = vpack.c.b16 %v475, %v474
      %v485 = vpack.c.b16 %v477, %v476
      %494 = vmatprep.subr.bf16.mxu0 0
      %495 = vmatpush1.bf16.msra.mxu0 %v478
      %496 = vmatprep.subr.bf16.mxu0 0
      %497 = vmatpush1.bf16.msra.mxu0 %v479
      %498 = vmatprep.subr.bf16.mxu0 0
      %499 = vmatpush1.bf16.msra.mxu0 %v480
      %500 = vmatprep.subr.bf16.mxu0 0
      %501 = vmatpush1.bf16.msra.mxu0 %v481
      %502 = vmatprep.subr.bf16.mxu0 0
      %503 = vmatpush1.bf16.msra.mxu0 %v482
      %504 = vmatprep.subr.bf16.mxu0 0
      %505 = vmatpush1.bf16.msra.mxu0 %v483
      %506 = vmatprep.subr.bf16.mxu0 0
      %507 = vmatpush1.bf16.msra.mxu0 %v484
      %508 = vmatprep.subr.bf16.mxu0 0
      %509 = vmatpush1.bf16.msra.mxu0 %v485
      %510 = vmatprep.subr.bf16.mxu0 0
      %511 = vmatpush1.bf16.msra.mxu0 0
      %512 = vmatprep.subr.bf16.mxu0 0
      %513 = vmatpush1.bf16.msra.mxu0 0
      %514 = vmatprep.subr.bf16.mxu0 0
      %515 = vmatpush1.bf16.msra.mxu0 0
      %516 = vmatprep.subr.bf16.mxu0 0
      %517 = vmatpush1.bf16.msra.mxu0 0
      %518 = vmatprep.subr.bf16.mxu0 0
      %519 = vmatpush1.bf16.msra.mxu0 0
      %520 = vmatprep.subr.bf16.mxu0 0
      %521 = vmatpush1.bf16.msra.mxu0 0
      %522 = vmatprep.subr.bf16.mxu0 0
      %523 = vmatpush1.bf16.msra.mxu0 0
      %524 = vmatprep.subr.bf16.mxu0 0
      %525 = vmatpush1.bf16.msra.mxu0 0
      %526 = vmatprep.mubr.bf16.mxu0 0
      %527 = vmatmul.mubr.bf16.gmra.mrb[0].mxu0 %v284
      %v528 = vpop.f32.mrb[0].mxu0
      %v529 = vadd.f32 %v416, %v528
      %v530 = vpop.f32.mrb[0].mxu0
      %v531 = vpop.f32.mrb[0].mxu0
      %v532 = vadd.f32 %v419, %v531
      %v533 = vpop.f32.mrb[0].mxu0
      %534 = vmatprep.mubr.bf16.mxu0 0
      %535 = vmatmul.mubr.bf16.gmra.mrb[0].mxu0 %v285
      %v536 = vpop.f32.mrb[0].mxu0
      %v537 = vadd.f32 %v424, %v536
      %v538 = vpop.f32.mrb[0].mxu0
      %v539 = vpop.f32.mrb[0].mxu0
      %v540 = vadd.f32 %v427, %v539
      %v541 = vpop.f32.mrb[0].mxu0
      %542 = vmatprep.mubr.bf16.mxu0 0
      %543 = vmatmul.mubr.bf16.gmra.mrb[0].mxu0 %v286
      %v544 = vpop.f32.mrb[0].mxu0
      %v545 = vadd.f32 %v432, %v544
      %v546 = vpop.f32.mrb[0].mxu0
      %v547 = vpop.f32.mrb[0].mxu0
      %v548 = vadd.f32 %v435, %v547
      %v549 = vpop.f32.mrb[0].mxu0
      %550 = vmatprep.mubr.bf16.mxu0 0
      %551 = vmatmul.mubr.bf16.gmra.mrb[0].mxu0 %v287
      %v552 = vpop.f32.mrb[0].mxu0
      %v553 = vadd.f32 %v440, %v552
      %v554 = vpop.f32.mrb[0].mxu0
      %v555 = vpop.f32.mrb[0].mxu0
      %v556 = vadd.f32 %v443, %v555
      %v557 = vpop.f32.mrb[0].mxu0
      %558 = vdwg.mxu0
      %v559 = vld [vmem:[%s271 + $0x2] sm:$0xff]
      %v560 = vld [vmem:[%s271 + $0x12] sm:$0xff]
      %v561 = vld [vmem:[%s271 + $0x22] sm:$0xff]
      %v562 = vld [vmem:[%s271 + $0x32] sm:$0xff]
      %v563 = vld [vmem:[%s271 + $0x42] sm:$0xff]
      %v564 = vld [vmem:[%s271 + $0x52] sm:$0xff]
      %v565 = vld [vmem:[%s271 + $0x62] sm:$0xff]
      %v566 = vld [vmem:[%s271 + $0x72] sm:$0xff]
      %v567 = vpack.c.bf16 %v560, %v559
      %v568 = vpack.c.bf16 %v562, %v561
      %v569 = vpack.c.bf16 %v564, %v563
      %v570 = vpack.c.bf16 %v566, %v565
      %s571 = scalar_lea.vmem %s1, 128
      %v572 = vld [vmem:[%s571] sm:$0xf]
      %v573 = vld [vmem:[%s571 + $0x4] sm:$0xf]
      %v574 = vld [vmem:[%s571 + $0x8] sm:$0xf]
      %v575 = vld [vmem:[%s571 + $0xc] sm:$0xf]
      %v576 = vld [vmem:[%s571 + $0x10] sm:$0xf]
      %v577 = vld [vmem:[%s571 + $0x14] sm:$0xf]
      %v578 = vld [vmem:[%s571 + $0x18] sm:$0xf]
      %v579 = vld [vmem:[%s571 + $0x1c] sm:$0xf]
      %v580 = vld [vmem:[%s571 + $0x20] sm:$0xf]
      %v581 = vld [vmem:[%s571 + $0x24] sm:$0xf]
      %v582 = vld [vmem:[%s571 + $0x28] sm:$0xf]
      %v583 = vld [vmem:[%s571 + $0x2c] sm:$0xf]
      %v584 = vld [vmem:[%s571 + $0x30] sm:$0xf]
      %v585 = vld [vmem:[%s571 + $0x34] sm:$0xf]
      %v586 = vld [vmem:[%s571 + $0x38] sm:$0xf]
      %v587 = vld [vmem:[%s571 + $0x3c] sm:$0xf]
      %v604 = vunpack.c.l.b16 %v572
      %v605 = vunpack.c.l.b16 %v573
      %v606 = vunpack.c.l.b16 %v574
      %v607 = vunpack.c.l.b16 %v575
      %v608 = vunpack.c.l.b16 %v576
      %v609 = vunpack.c.l.b16 %v577
      %v610 = vunpack.c.l.b16 %v578
      %v611 = vunpack.c.l.b16 %v579
      %v612 = vunpack.c.l.b16 %v580
      %v613 = vunpack.c.l.b16 %v581
      %v614 = vunpack.c.l.b16 %v582
      %v615 = vunpack.c.l.b16 %v583
      %v616 = vunpack.c.l.b16 %v584
      %v617 = vunpack.c.l.b16 %v585
      %v618 = vunpack.c.l.b16 %v586
      %v619 = vunpack.c.l.b16 %v587
      %v620 = vpack.c.b16 %v605, %v604
      %v621 = vpack.c.b16 %v607, %v606
      %v622 = vpack.c.b16 %v609, %v608
      %v623 = vpack.c.b16 %v611, %v610
      %v624 = vpack.c.b16 %v613, %v612
      %v625 = vpack.c.b16 %v615, %v614
      %v626 = vpack.c.b16 %v617, %v616
      %v627 = vpack.c.b16 %v619, %v618
      %636 = vmatprep.subr.bf16.mxu0 0
      %637 = vmatpush1.bf16.msra.mxu0 %v620
      %638 = vmatprep.subr.bf16.mxu0 0
      %639 = vmatpush1.bf16.msra.mxu0 %v621
      %640 = vmatprep.subr.bf16.mxu0 0
      %641 = vmatpush1.bf16.msra.mxu0 %v622
      %642 = vmatprep.subr.bf16.mxu0 0
      %643 = vmatpush1.bf16.msra.mxu0 %v623
      %644 = vmatprep.subr.bf16.mxu0 0
      %645 = vmatpush1.bf16.msra.mxu0 %v624
      %646 = vmatprep.subr.bf16.mxu0 0
      %647 = vmatpush1.bf16.msra.mxu0 %v625
      %648 = vmatprep.subr.bf16.mxu0 0
      %649 = vmatpush1.bf16.msra.mxu0 %v626
      %650 = vmatprep.subr.bf16.mxu0 0
      %651 = vmatpush1.bf16.msra.mxu0 %v627
      %652 = vmatprep.subr.bf16.mxu0 0
      %653 = vmatpush1.bf16.msra.mxu0 0
      %654 = vmatprep.subr.bf16.mxu0 0
      %655 = vmatpush1.bf16.msra.mxu0 0
      %656 = vmatprep.subr.bf16.mxu0 0
      %657 = vmatpush1.bf16.msra.mxu0 0
      %658 = vmatprep.subr.bf16.mxu0 0
      %659 = vmatpush1.bf16.msra.mxu0 0
      %660 = vmatprep.subr.bf16.mxu0 0
      %661 = vmatpush1.bf16.msra.mxu0 0
      %662 = vmatprep.subr.bf16.mxu0 0
      %663 = vmatpush1.bf16.msra.mxu0 0
      %664 = vmatprep.subr.bf16.mxu0 0
      %665 = vmatpush1.bf16.msra.mxu0 0
      %666 = vmatprep.subr.bf16.mxu0 0
      %667 = vmatpush1.bf16.msra.mxu0 0
      %668 = vmatprep.mubr.bf16.mxu0 0
      %669 = vmatmul.mubr.bf16.gmra.mrb[0].mxu0 %v567
      %v670 = vpop.f32.mrb[0].mxu0
      %v671 = vadd.f32 0.0, %v670
      %v672 = vpop.f32.mrb[0].mxu0
      %v673 = vpop.f32.mrb[0].mxu0
      %v674 = vadd.f32 0.0, %v673
      %v675 = vpop.f32.mrb[0].mxu0
      %676 = vmatprep.mubr.bf16.mxu0 0
      %677 = vmatmul.mubr.bf16.gmra.mrb[0].mxu0 %v568
      %v678 = vpop.f32.mrb[0].mxu0
      %v679 = vadd.f32 0.0, %v678
      %v680 = vpop.f32.mrb[0].mxu0
      %v681 = vpop.f32.mrb[0].mxu0
      %v682 = vadd.f32 0.0, %v681
      %v683 = vpop.f32.mrb[0].mxu0
      %684 = vmatprep.mubr.bf16.mxu0 0
      %685 = vmatmul.mubr.bf16.gmra.mrb[0].mxu0 %v569
      %v686 = vpop.f32.mrb[0].mxu0
      %v687 = vadd.f32 0.0, %v686
      %v688 = vpop.f32.mrb[0].mxu0
      %v689 = vpop.f32.mrb[0].mxu0
      %v690 = vadd.f32 0.0, %v689
      %v691 = vpop.f32.mrb[0].mxu0
      %692 = vmatprep.mubr.bf16.mxu0 0
      %693 = vmatmul.mubr.bf16.gmra.mrb[0].mxu0 %v570
      %v694 = vpop.f32.mrb[0].mxu0
      %v695 = vadd.f32 0.0, %v694
      %v696 = vpop.f32.mrb[0].mxu0
      %v697 = vpop.f32.mrb[0].mxu0
      %v698 = vadd.f32 0.0, %v697
      %v699 = vpop.f32.mrb[0].mxu0
      %700 = vdwg.mxu0
      %v701 = vadd.f32 %v529, %v671
      %v702 = vadd.f32 %v532, %v674
      %v703 = vadd.f32 %v537, %v679
      %v704 = vadd.f32 %v540, %v682
      %v705 = vadd.f32 %v545, %v687
      %v706 = vadd.f32 %v548, %v690
      %v707 = vadd.f32 %v553, %v695
      %v708 = vadd.f32 %v556, %v698
      %s709 = scalar_lea.vmem %s271, 16
      %v710 = vld [vmem:[%s709] sm:$0xff]
      %v711 = vld [vmem:[%s709 + $0x10] sm:$0xff]
      %v712 = vld [vmem:[%s709 + $0x20] sm:$0xff]
      %v713 = vld [vmem:[%s709 + $0x30] sm:$0xff]
      %v714 = vld [vmem:[%s709 + $0x40] sm:$0xff]
      %v715 = vld [vmem:[%s709 + $0x50] sm:$0xff]
      %v716 = vld [vmem:[%s709 + $0x60] sm:$0xff]
      %v717 = vld [vmem:[%s709 + $0x70] sm:$0xff]
      %v718 = vpack.c.bf16 %v711, %v710
      %v719 = vpack.c.bf16 %v713, %v712
      %v720 = vpack.c.bf16 %v715, %v714
      %v721 = vpack.c.bf16 %v717, %v716
      %s722 = scalar_lea.vmem %s1, 192
      %v723 = vld [vmem:[%s722] sm:$0xf]
      %v724 = vld [vmem:[%s722 + $0x4] sm:$0xf]
      %v725 = vld [vmem:[%s722 + $0x8] sm:$0xf]
      %v726 = vld [vmem:[%s722 + $0xc] sm:$0xf]
      %v727 = vld [vmem:[%s722 + $0x10] sm:$0xf]
      %v728 = vld [vmem:[%s722 + $0x14] sm:$0xf]
      %v729 = vld [vmem:[%s722 + $0x18] sm:$0xf]
      %v730 = vld [vmem:[%s722 + $0x1c] sm:$0xf]
      %v731 = vld [vmem:[%s722 + $0x20] sm:$0xf]
      %v732 = vld [vmem:[%s722 + $0x24] sm:$0xf]
      %v733 = vld [vmem:[%s722 + $0x28] sm:$0xf]
      %v734 = vld [vmem:[%s722 + $0x2c] sm:$0xf]
      %v735 = vld [vmem:[%s722 + $0x30] sm:$0xf]
      %v736 = vld [vmem:[%s722 + $0x34] sm:$0xf]
      %v737 = vld [vmem:[%s722 + $0x38] sm:$0xf]
      %v738 = vld [vmem:[%s722 + $0x3c] sm:$0xf]
      %v755 = vunpack.c.l.b16 %v723
      %v756 = vunpack.c.l.b16 %v724
      %v757 = vunpack.c.l.b16 %v725
      %v758 = vunpack.c.l.b16 %v726
      %v759 = vunpack.c.l.b16 %v727
      %v760 = vunpack.c.l.b16 %v728
      %v761 = vunpack.c.l.b16 %v729
      %v762 = vunpack.c.l.b16 %v730
      %v763 = vunpack.c.l.b16 %v731
      %v764 = vunpack.c.l.b16 %v732
      %v765 = vunpack.c.l.b16 %v733
      %v766 = vunpack.c.l.b16 %v734
      %v767 = vunpack.c.l.b16 %v735
      %v768 = vunpack.c.l.b16 %v736
      %v769 = vunpack.c.l.b16 %v737
      %v770 = vunpack.c.l.b16 %v738
      %v771 = vpack.c.b16 %v756, %v755
      %v772 = vpack.c.b16 %v758, %v757
      %v773 = vpack.c.b16 %v760, %v759
      %v774 = vpack.c.b16 %v762, %v761
      %v775 = vpack.c.b16 %v764, %v763
      %v776 = vpack.c.b16 %v766, %v765
      %v777 = vpack.c.b16 %v768, %v767
      %v778 = vpack.c.b16 %v770, %v769
      %787 = vmatprep.subr.bf16.mxu0 0
      %788 = vmatpush1.bf16.msra.mxu0 %v771
      %789 = vmatprep.subr.bf16.mxu0 0
      %790 = vmatpush1.bf16.msra.mxu0 %v772
      %791 = vmatprep.subr.bf16.mxu0 0
      %792 = vmatpush1.bf16.msra.mxu0 %v773
      %793 = vmatprep.subr.bf16.mxu0 0
      %794 = vmatpush1.bf16.msra.mxu0 %v774
      %795 = vmatprep.subr.bf16.mxu0 0
      %796 = vmatpush1.bf16.msra.mxu0 %v775
      %797 = vmatprep.subr.bf16.mxu0 0
      %798 = vmatpush1.bf16.msra.mxu0 %v776
      %799 = vmatprep.subr.bf16.mxu0 0
      %800 = vmatpush1.bf16.msra.mxu0 %v777
      %801 = vmatprep.subr.bf16.mxu0 0
      %802 = vmatpush1.bf16.msra.mxu0 %v778
      %803 = vmatprep.subr.bf16.mxu0 0
      %804 = vmatpush1.bf16.msra.mxu0 0
      %805 = vmatprep.subr.bf16.mxu0 0
      %806 = vmatpush1.bf16.msra.mxu0 0
      %807 = vmatprep.subr.bf16.mxu0 0
      %808 = vmatpush1.bf16.msra.mxu0 0
      %809 = vmatprep.subr.bf16.mxu0 0
      %810 = vmatpush1.bf16.msra.mxu0 0
      %811 = vmatprep.subr.bf16.mxu0 0
      %812 = vmatpush1.bf16.msra.mxu0 0
      %813 = vmatprep.subr.bf16.mxu0 0
      %814 = vmatpush1.bf16.msra.mxu0 0
      %815 = vmatprep.subr.bf16.mxu0 0
      %816 = vmatpush1.bf16.msra.mxu0 0
      %817 = vmatprep.subr.bf16.mxu0 0
      %818 = vmatpush1.bf16.msra.mxu0 0
      %819 = vmatprep.mubr.bf16.mxu0 0
      %820 = vmatmul.mubr.bf16.gmra.mrb[0].mxu0 %v718
      %v821 = vpop.f32.mrb[0].mxu0
      %v822 = vadd.f32 0.0, %v821
      %v823 = vpop.f32.mrb[0].mxu0
      %v824 = vpop.f32.mrb[0].mxu0
      %v825 = vadd.f32 0.0, %v824
      %v826 = vpop.f32.mrb[0].mxu0
      %827 = vmatprep.mubr.bf16.mxu0 0
      %828 = vmatmul.mubr.bf16.gmra.mrb[0].mxu0 %v719
      %v829 = vpop.f32.mrb[0].mxu0
      %v830 = vadd.f32 0.0, %v829
      %v831 = vpop.f32.mrb[0].mxu0
      %v832 = vpop.f32.mrb[0].mxu0
      %v833 = vadd.f32 0.0, %v832
      %v834 = vpop.f32.mrb[0].mxu0
      %835 = vmatprep.mubr.bf16.mxu0 0
      %836 = vmatmul.mubr.bf16.gmra.mrb[0].mxu0 %v720
      %v837 = vpop.f32.mrb[0].mxu0
      %v838 = vadd.f32 0.0, %v837
      %v839 = vpop.f32.mrb[0].mxu0
      %v840 = vpop.f32.mrb[0].mxu0
      %v841 = vadd.f32 0.0, %v840
      %v842 = vpop.f32.mrb[0].mxu0
      %843 = vmatprep.mubr.bf16.mxu0 0
      %844 = vmatmul.mubr.bf16.gmra.mrb[0].mxu0 %v721
      %v845 = vpop.f32.mrb[0].mxu0
      %v846 = vadd.f32 0.0, %v845
      %v847 = vpop.f32.mrb[0].mxu0
      %v848 = vpop.f32.mrb[0].mxu0
      %v849 = vadd.f32 0.0, %v848
      %v850 = vpop.f32.mrb[0].mxu0
      %851 = vdwg.mxu0
      %v852 = vadd.f32 %v701, %v822
      %v853 = vadd.f32 %v702, %v825
      %v854 = vadd.f32 %v703, %v830
      %v855 = vadd.f32 %v704, %v833
      %v856 = vadd.f32 %v705, %v838
      %v857 = vadd.f32 %v706, %v841
      %v858 = vadd.f32 %v707, %v846
      %v859 = vadd.f32 %v708, %v849
      %v860 = vld [vmem:[%s709 + $0x1] sm:$0xff]
      %v861 = vld [vmem:[%s709 + $0x11] sm:$0xff]
      %v862 = vld [vmem:[%s709 + $0x21] sm:$0xff]
      %v863 = vld [vmem:[%s709 + $0x31] sm:$0xff]
      %v864 = vld [vmem:[%s709 + $0x41] sm:$0xff]
      %v865 = vld [vmem:[%s709 + $0x51] sm:$0xff]
      %v866 = vld [vmem:[%s709 + $0x61] sm:$0xff]
      %v867 = vld [vmem:[%s709 + $0x71] sm:$0xff]
      %v868 = vpack.c.bf16 %v861, %v860
      %v869 = vpack.c.bf16 %v863, %v862
      %v870 = vpack.c.bf16 %v865, %v864
      %v871 = vpack.c.bf16 %v867, %v866
      %s872 = scalar_lea.vmem %s1, 256
      %v873 = vld [vmem:[%s872] sm:$0xf]
      %v874 = vld [vmem:[%s872 + $0x4] sm:$0xf]
      %v875 = vld [vmem:[%s872 + $0x8] sm:$0xf]
      %v876 = vld [vmem:[%s872 + $0xc] sm:$0xf]
      %v877 = vld [vmem:[%s872 + $0x10] sm:$0xf]
      %v878 = vld [vmem:[%s872 + $0x14] sm:$0xf]
      %v879 = vld [vmem:[%s872 + $0x18] sm:$0xf]
      %v880 = vld [vmem:[%s872 + $0x1c] sm:$0xf]
      %v881 = vld [vmem:[%s872 + $0x20] sm:$0xf]
      %v882 = vld [vmem:[%s872 + $0x24] sm:$0xf]
      %v883 = vld [vmem:[%s872 + $0x28] sm:$0xf]
      %v884 = vld [vmem:[%s872 + $0x2c] sm:$0xf]
      %v885 = vld [vmem:[%s872 + $0x30] sm:$0xf]
      %v886 = vld [vmem:[%s872 + $0x34] sm:$0xf]
      %v887 = vld [vmem:[%s872 + $0x38] sm:$0xf]
      %v888 = vld [vmem:[%s872 + $0x3c] sm:$0xf]
      %v905 = vunpack.c.l.b16 %v873
      %v906 = vunpack.c.l.b16 %v874
      %v907 = vunpack.c.l.b16 %v875
      %v908 = vunpack.c.l.b16 %v876
      %v909 = vunpack.c.l.b16 %v877
      %v910 = vunpack.c.l.b16 %v878
      %v911 = vunpack.c.l.b16 %v879
      %v912 = vunpack.c.l.b16 %v880
      %v913 = vunpack.c.l.b16 %v881
      %v914 = vunpack.c.l.b16 %v882
      %v915 = vunpack.c.l.b16 %v883
      %v916 = vunpack.c.l.b16 %v884
      %v917 = vunpack.c.l.b16 %v885
      %v918 = vunpack.c.l.b16 %v886
      %v919 = vunpack.c.l.b16 %v887
      %v920 = vunpack.c.l.b16 %v888
      %v921 = vpack.c.b16 %v906, %v905
      %v922 = vpack.c.b16 %v908, %v907
      %v923 = vpack.c.b16 %v910, %v909
      %v924 = vpack.c.b16 %v912, %v911
      %v925 = vpack.c.b16 %v914, %v913
      %v926 = vpack.c.b16 %v916, %v915
      %v927 = vpack.c.b16 %v918, %v917
      %v928 = vpack.c.b16 %v920, %v919
      %937 = vmatprep.subr.bf16.mxu0 0
      %938 = vmatpush1.bf16.msra.mxu0 %v921
      %939 = vmatprep.subr.bf16.mxu0 0
      %940 = vmatpush1.bf16.msra.mxu0 %v922
      %941 = vmatprep.subr.bf16.mxu0 0
      %942 = vmatpush1.bf16.msra.mxu0 %v923
      %943 = vmatprep.subr.bf16.mxu0 0
      %944 = vmatpush1.bf16.msra.mxu0 %v924
      %945 = vmatprep.subr.bf16.mxu0 0
      %946 = vmatpush1.bf16.msra.mxu0 %v925
      %947 = vmatprep.subr.bf16.mxu0 0
      %948 = vmatpush1.bf16.msra.mxu0 %v926
      %949 = vmatprep.subr.bf16.mxu0 0
      %950 = vmatpush1.bf16.msra.mxu0 %v927
      %951 = vmatprep.subr.bf16.mxu0 0
      %952 = vmatpush1.bf16.msra.mxu0 %v928
      %953 = vmatprep.subr.bf16.mxu0 0
      %954 = vmatpush1.bf16.msra.mxu0 0
      %955 = vmatprep.subr.bf16.mxu0 0
      %956 = vmatpush1.bf16.msra.mxu0 0
      %957 = vmatprep.subr.bf16.mxu0 0
      %958 = vmatpush1.bf16.msra.mxu0 0
      %959 = vmatprep.subr.bf16.mxu0 0
      %960 = vmatpush1.bf16.msra.mxu0 0
      %961 = vmatprep.subr.bf16.mxu0 0
      %962 = vmatpush1.bf16.msra.mxu0 0
      %963 = vmatprep.subr.bf16.mxu0 0
      %964 = vmatpush1.bf16.msra.mxu0 0
      %965 = vmatprep.subr.bf16.mxu0 0
      %966 = vmatpush1.bf16.msra.mxu0 0
      %967 = vmatprep.subr.bf16.mxu0 0
      %968 = vmatpush1.bf16.msra.mxu0 0
      %969 = vmatprep.mubr.bf16.mxu0 0
      %970 = vmatmul.mubr.bf16.gmra.mrb[0].mxu0 %v868
      %v971 = vpop.f32.mrb[0].mxu0
      %v972 = vadd.f32 0.0, %v971
      %v973 = vpop.f32.mrb[0].mxu0
      %v974 = vpop.f32.mrb[0].mxu0
      %v975 = vadd.f32 0.0, %v974
      %v976 = vpop.f32.mrb[0].mxu0
      %977 = vmatprep.mubr.bf16.mxu0 0
      %978 = vmatmul.mubr.bf16.gmra.mrb[0].mxu0 %v869
      %v979 = vpop.f32.mrb[0].mxu0
      %v980 = vadd.f32 0.0, %v979
      %v981 = vpop.f32.mrb[0].mxu0
      %v982 = vpop.f32.mrb[0].mxu0
      %v983 = vadd.f32 0.0, %v982
      %v984 = vpop.f32.mrb[0].mxu0
      %985 = vmatprep.mubr.bf16.mxu0 0
      %986 = vmatmul.mubr.bf16.gmra.mrb[0].mxu0 %v870
      %v987 = vpop.f32.mrb[0].mxu0
      %v988 = vadd.f32 0.0, %v987
      %v989 = vpop.f32.mrb[0].mxu0
      %v990 = vpop.f32.mrb[0].mxu0
      %v991 = vadd.f32 0.0, %v990
      %v992 = vpop.f32.mrb[0].mxu0
      %993 = vmatprep.mubr.bf16.mxu0 0
      %994 = vmatmul.mubr.bf16.gmra.mrb[0].mxu0 %v871
      %v995 = vpop.f32.mrb[0].mxu0
      %v996 = vadd.f32 0.0, %v995
      %v997 = vpop.f32.mrb[0].mxu0
      %v998 = vpop.f32.mrb[0].mxu0
      %v999 = vadd.f32 0.0, %v998
      %v1000 = vpop.f32.mrb[0].mxu0
      %1001 = vdwg.mxu0
      %v1002 = vadd.f32 %v852, %v972
      %v1003 = vadd.f32 %v853, %v975
      %v1004 = vadd.f32 %v854, %v980
      %v1005 = vadd.f32 %v855, %v983
      %v1006 = vadd.f32 %v856, %v988
      %v1007 = vadd.f32 %v857, %v991
      %v1008 = vadd.f32 %v858, %v996
      %v1009 = vadd.f32 %v859, %v999
      %v1010 = vld [vmem:[%s709 + $0x2] sm:$0xff]
      %v1011 = vld [vmem:[%s709 + $0x12] sm:$0xff]
      %v1012 = vld [vmem:[%s709 + $0x22] sm:$0xff]
      %v1013 = vld [vmem:[%s709 + $0x32] sm:$0xff]
      %v1014 = vld [vmem:[%s709 + $0x42] sm:$0xff]
      %v1015 = vld [vmem:[%s709 + $0x52] sm:$0xff]
      %v1016 = vld [vmem:[%s709 + $0x62] sm:$0xff]
      %v1017 = vld [vmem:[%s709 + $0x72] sm:$0xff]
      %v1018 = vpack.c.bf16 %v1011, %v1010
      %v1019 = vpack.c.bf16 %v1013, %v1012
      %v1020 = vpack.c.bf16 %v1015, %v1014
      %v1021 = vpack.c.bf16 %v1017, %v1016
      %s1022 = scalar_lea.vmem %s1, 320
      %v1023 = vld [vmem:[%s1022] sm:$0xf]
      %v1024 = vld [vmem:[%s1022 + $0x4] sm:$0xf]
      %v1025 = vld [vmem:[%s1022 + $0x8] sm:$0xf]
      %v1026 = vld [vmem:[%s1022 + $0xc] sm:$0xf]
      %v1027 = vld [vmem:[%s1022 + $0x10] sm:$0xf]
      %v1028 = vld [vmem:[%s1022 + $0x14] sm:$0xf]
      %v1029 = vld [vmem:[%s1022 + $0x18] sm:$0xf]
      %v1030 = vld [vmem:[%s1022 + $0x1c] sm:$0xf]
      %v1031 = vld [vmem:[%s1022 + $0x20] sm:$0xf]
      %v1032 = vld [vmem:[%s1022 + $0x24] sm:$0xf]
      %v1033 = vld [vmem:[%s1022 + $0x28] sm:$0xf]
      %v1034 = vld [vmem:[%s1022 + $0x2c] sm:$0xf]
      %v1035 = vld [vmem:[%s1022 + $0x30] sm:$0xf]
      %v1036 = vld [vmem:[%s1022 + $0x34] sm:$0xf]
      %v1037 = vld [vmem:[%s1022 + $0x38] sm:$0xf]
      %v1038 = vld [vmem:[%s1022 + $0x3c] sm:$0xf]
      %v1055 = vunpack.c.l.b16 %v1023
      %v1056 = vunpack.c.l.b16 %v1024
      %v1057 = vunpack.c.l.b16 %v1025
      %v1058 = vunpack.c.l.b16 %v1026
      %v1059 = vunpack.c.l.b16 %v1027
      %v1060 = vunpack.c.l.b16 %v1028
      %v1061 = vunpack.c.l.b16 %v1029
      %v1062 = vunpack.c.l.b16 %v1030
      %v1063 = vunpack.c.l.b16 %v1031
      %v1064 = vunpack.c.l.b16 %v1032
      %v1065 = vunpack.c.l.b16 %v1033
      %v1066 = vunpack.c.l.b16 %v1034
      %v1067 = vunpack.c.l.b16 %v1035
      %v1068 = vunpack.c.l.b16 %v1036
      %v1069 = vunpack.c.l.b16 %v1037
      %v1070 = vunpack.c.l.b16 %v1038
      %v1071 = vpack.c.b16 %v1056, %v1055
      %v1072 = vpack.c.b16 %v1058, %v1057
      %v1073 = vpack.c.b16 %v1060, %v1059
      %v1074 = vpack.c.b16 %v1062, %v1061
      %v1075 = vpack.c.b16 %v1064, %v1063
      %v1076 = vpack.c.b16 %v1066, %v1065
      %v1077 = vpack.c.b16 %v1068, %v1067
      %v1078 = vpack.c.b16 %v1070, %v1069
      %1087 = vmatprep.subr.bf16.mxu0 0
      %1088 = vmatpush1.bf16.msra.mxu0 %v1071
      %1089 = vmatprep.subr.bf16.mxu0 0
      %1090 = vmatpush1.bf16.msra.mxu0 %v1072
      %1091 = vmatprep.subr.bf16.mxu0 0
      %1092 = vmatpush1.bf16.msra.mxu0 %v1073
      %1093 = vmatprep.subr.bf16.mxu0 0
      %1094 = vmatpush1.bf16.msra.mxu0 %v1074
      %1095 = vmatprep.subr.bf16.mxu0 0
      %1096 = vmatpush1.bf16.msra.mxu0 %v1075
      %1097 = vmatprep.subr.bf16.mxu0 0
      %1098 = vmatpush1.bf16.msra.mxu0 %v1076
      %1099 = vmatprep.subr.bf16.mxu0 0
      %1100 = vmatpush1.bf16.msra.mxu0 %v1077
      %1101 = vmatprep.subr.bf16.mxu0 0
      %1102 = vmatpush1.bf16.msra.mxu0 %v1078
      %1103 = vmatprep.subr.bf16.mxu0 0
      %1104 = vmatpush1.bf16.msra.mxu0 0
      %1105 = vmatprep.subr.bf16.mxu0 0
      %1106 = vmatpush1.bf16.msra.mxu0 0
      %1107 = vmatprep.subr.bf16.mxu0 0
      %1108 = vmatpush1.bf16.msra.mxu0 0
      %1109 = vmatprep.subr.bf16.mxu0 0
      %1110 = vmatpush1.bf16.msra.mxu0 0
      %1111 = vmatprep.subr.bf16.mxu0 0
      %1112 = vmatpush1.bf16.msra.mxu0 0
      %1113 = vmatprep.subr.bf16.mxu0 0
      %1114 = vmatpush1.bf16.msra.mxu0 0
      %1115 = vmatprep.subr.bf16.mxu0 0
      %1116 = vmatpush1.bf16.msra.mxu0 0
      %1117 = vmatprep.subr.bf16.mxu0 0
      %1118 = vmatpush1.bf16.msra.mxu0 0
      %1119 = vmatprep.mubr.bf16.mxu0 0
      %1120 = vmatmul.mubr.bf16.gmra.mrb[0].mxu0 %v1018
      %v1121 = vpop.f32.mrb[0].mxu0
      %v1122 = vadd.f32 0.0, %v1121
      %v1123 = vpop.f32.mrb[0].mxu0
      %v1124 = vpop.f32.mrb[0].mxu0
      %v1125 = vadd.f32 0.0, %v1124
      %v1126 = vpop.f32.mrb[0].mxu0
      %1127 = vmatprep.mubr.bf16.mxu0 0
      %1128 = vmatmul.mubr.bf16.gmra.mrb[0].mxu0 %v1019
      %v1129 = vpop.f32.mrb[0].mxu0
      %v1130 = vadd.f32 0.0, %v1129
      %v1131 = vpop.f32.mrb[0].mxu0
      %v1132 = vpop.f32.mrb[0].mxu0
      %v1133 = vadd.f32 0.0, %v1132
      %v1134 = vpop.f32.mrb[0].mxu0
      %1135 = vmatprep.mubr.bf16.mxu0 0
      %1136 = vmatmul.mubr.bf16.gmra.mrb[0].mxu0 %v1020
      %v1137 = vpop.f32.mrb[0].mxu0
      %v1138 = vadd.f32 0.0, %v1137
      %v1139 = vpop.f32.mrb[0].mxu0
      %v1140 = vpop.f32.mrb[0].mxu0
      %v1141 = vadd.f32 0.0, %v1140
      %v1142 = vpop.f32.mrb[0].mxu0
      %1143 = vmatprep.mubr.bf16.mxu0 0
      %1144 = vmatmul.mubr.bf16.gmra.mrb[0].mxu0 %v1021
      %v1145 = vpop.f32.mrb[0].mxu0
      %v1146 = vadd.f32 0.0, %v1145
      %v1147 = vpop.f32.mrb[0].mxu0
      %v1148 = vpop.f32.mrb[0].mxu0
      %v1149 = vadd.f32 0.0, %v1148
      %v1150 = vpop.f32.mrb[0].mxu0
      %1151 = vdwg.mxu0
      %v1152 = vadd.f32 %v1002, %v1122
      %v1153 = vadd.f32 %v1003, %v1125
      %v1154 = vadd.f32 %v1004, %v1130
      %v1155 = vadd.f32 %v1005, %v1133
      %v1156 = vadd.f32 %v1006, %v1138
      %v1157 = vadd.f32 %v1007, %v1141
      %v1158 = vadd.f32 %v1008, %v1146
      %v1159 = vadd.f32 %v1009, %v1149
      %s1160 = scalar_lea.vmem %s271, 32
      %v1161 = vld [vmem:[%s1160] sm:$0xff]
      %v1162 = vld [vmem:[%s1160 + $0x10] sm:$0xff]
      %v1163 = vld [vmem:[%s1160 + $0x20] sm:$0xff]
      %v1164 = vld [vmem:[%s1160 + $0x30] sm:$0xff]
      %v1165 = vld [vmem:[%s1160 + $0x40] sm:$0xff]
      %v1166 = vld [vmem:[%s1160 + $0x50] sm:$0xff]
      %v1167 = vld [vmem:[%s1160 + $0x60] sm:$0xff]
      %v1168 = vld [vmem:[%s1160 + $0x70] sm:$0xff]
      %v1169 = vpack.c.bf16 %v1162, %v1161
      %v1170 = vpack.c.bf16 %v1164, %v1163
      %v1171 = vpack.c.bf16 %v1166, %v1165
      %v1172 = vpack.c.bf16 %v1168, %v1167
      %s1173 = scalar_lea.vmem %s1, 384
      %v1174 = vld [vmem:[%s1173] sm:$0xf]
      %v1175 = vld [vmem:[%s1173 + $0x4] sm:$0xf]
      %v1176 = vld [vmem:[%s1173 + $0x8] sm:$0xf]
      %v1177 = vld [vmem:[%s1173 + $0xc] sm:$0xf]
      %v1178 = vld [vmem:[%s1173 + $0x10] sm:$0xf]
      %v1179 = vld [vmem:[%s1173 + $0x14] sm:$0xf]
      %v1180 = vld [vmem:[%s1173 + $0x18] sm:$0xf]
      %v1181 = vld [vmem:[%s1173 + $0x1c] sm:$0xf]
      %v1182 = vld [vmem:[%s1173 + $0x20] sm:$0xf]
      %v1183 = vld [vmem:[%s1173 + $0x24] sm:$0xf]
      %v1184 = vld [vmem:[%s1173 + $0x28] sm:$0xf]
      %v1185 = vld [vmem:[%s1173 + $0x2c] sm:$0xf]
      %v1186 = vld [vmem:[%s1173 + $0x30] sm:$0xf]
      %v1187 = vld [vmem:[%s1173 + $0x34] sm:$0xf]
      %v1188 = vld [vmem:[%s1173 + $0x38] sm:$0xf]
      %v1189 = vld [vmem:[%s1173 + $0x3c] sm:$0xf]
      %v1206 = vunpack.c.l.b16 %v1174
      %v1207 = vunpack.c.l.b16 %v1175
      %v1208 = vunpack.c.l.b16 %v1176
      %v1209 = vunpack.c.l.b16 %v1177
      %v1210 = vunpack.c.l.b16 %v1178
      %v1211 = vunpack.c.l.b16 %v1179
      %v1212 = vunpack.c.l.b16 %v1180
      %v1213 = vunpack.c.l.b16 %v1181
      %v1214 = vunpack.c.l.b16 %v1182
      %v1215 = vunpack.c.l.b16 %v1183
      %v1216 = vunpack.c.l.b16 %v1184
      %v1217 = vunpack.c.l.b16 %v1185
      %v1218 = vunpack.c.l.b16 %v1186
      %v1219 = vunpack.c.l.b16 %v1187
      %v1220 = vunpack.c.l.b16 %v1188
      %v1221 = vunpack.c.l.b16 %v1189
      %v1222 = vpack.c.b16 %v1207, %v1206
      %v1223 = vpack.c.b16 %v1209, %v1208
      %v1224 = vpack.c.b16 %v1211, %v1210
      %v1225 = vpack.c.b16 %v1213, %v1212
      %v1226 = vpack.c.b16 %v1215, %v1214
      %v1227 = vpack.c.b16 %v1217, %v1216
      %v1228 = vpack.c.b16 %v1219, %v1218
      %v1229 = vpack.c.b16 %v1221, %v1220
      %1238 = vmatprep.subr.bf16.mxu0 0
      %1239 = vmatpush1.bf16.msra.mxu0 %v1222
      %1240 = vmatprep.subr.bf16.mxu0 0
      %1241 = vmatpush1.bf16.msra.mxu0 %v1223
      %1242 = vmatprep.subr.bf16.mxu0 0
      %1243 = vmatpush1.bf16.msra.mxu0 %v1224
      %1244 = vmatprep.subr.bf16.mxu0 0
      %1245 = vmatpush1.bf16.msra.mxu0 %v1225
      %1246 = vmatprep.subr.bf16.mxu0 0
      %1247 = vmatpush1.bf16.msra.mxu0 %v1226
      %1248 = vmatprep.subr.bf16.mxu0 0
      %1249 = vmatpush1.bf16.msra.mxu0 %v1227
      %1250 = vmatprep.subr.bf16.mxu0 0
      %1251 = vmatpush1.bf16.msra.mxu0 %v1228
      %1252 = vmatprep.subr.bf16.mxu0 0
      %1253 = vmatpush1.bf16.msra.mxu0 %v1229
      %1254 = vmatprep.subr.bf16.mxu0 0
      %1255 = vmatpush1.bf16.msra.mxu0 0
      %1256 = vmatprep.subr.bf16.mxu0 0
      %1257 = vmatpush1.bf16.msra.mxu0 0
      %1258 = vmatprep.subr.bf16.mxu0 0
      %1259 = vmatpush1.bf16.msra.mxu0 0
      %1260 = vmatprep.subr.bf16.mxu0 0
      %1261 = vmatpush1.bf16.msra.mxu0 0
      %1262 = vmatprep.subr.bf16.mxu0 0
      %1263 = vmatpush1.bf16.msra.mxu0 0
      %1264 = vmatprep.subr.bf16.mxu0 0
      %1265 = vmatpush1.bf16.msra.mxu0 0
      %1266 = vmatprep.subr.bf16.mxu0 0
      %1267 = vmatpush1.bf16.msra.mxu0 0
      %1268 = vmatprep.subr.bf16.mxu0 0
      %1269 = vmatpush1.bf16.msra.mxu0 0
      %1270 = vmatprep.mubr.bf16.mxu0 0
      %1271 = vmatmul.mubr.bf16.gmra.mrb[0].mxu0 %v1169
      %v1272 = vpop.f32.mrb[0].mxu0
      %v1273 = vadd.f32 0.0, %v1272
      %v1274 = vpop.f32.mrb[0].mxu0
      %v1275 = vpop.f32.mrb[0].mxu0
      %v1276 = vadd.f32 0.0, %v1275
      %v1277 = vpop.f32.mrb[0].mxu0
      %1278 = vmatprep.mubr.bf16.mxu0 0
      %1279 = vmatmul.mubr.bf16.gmra.mrb[0].mxu0 %v1170
      %v1280 = vpop.f32.mrb[0].mxu0
      %v1281 = vadd.f32 0.0, %v1280
      %v1282 = vpop.f32.mrb[0].mxu0
      %v1283 = vpop.f32.mrb[0].mxu0
      %v1284 = vadd.f32 0.0, %v1283
      %v1285 = vpop.f32.mrb[0].mxu0
      %1286 = vmatprep.mubr.bf16.mxu0 0
      %1287 = vmatmul.mubr.bf16.gmra.mrb[0].mxu0 %v1171
      %v1288 = vpop.f32.mrb[0].mxu0
      %v1289 = vadd.f32 0.0, %v1288
      %v1290 = vpop.f32.mrb[0].mxu0
      %v1291 = vpop.f32.mrb[0].mxu0
      %v1292 = vadd.f32 0.0, %v1291
      %v1293 = vpop.f32.mrb[0].mxu0
      %1294 = vmatprep.mubr.bf16.mxu0 0
      %1295 = vmatmul.mubr.bf16.gmra.mrb[0].mxu0 %v1172
      %v1296 = vpop.f32.mrb[0].mxu0
      %v1297 = vadd.f32 0.0, %v1296
      %v1298 = vpop.f32.mrb[0].mxu0
      %v1299 = vpop.f32.mrb[0].mxu0
      %v1300 = vadd.f32 0.0, %v1299
      %v1301 = vpop.f32.mrb[0].mxu0
      %1302 = vdwg.mxu0
      %v1303 = vadd.f32 %v1152, %v1273
      %v1304 = vadd.f32 %v1153, %v1276
      %v1305 = vadd.f32 %v1154, %v1281
      %v1306 = vadd.f32 %v1155, %v1284
      %v1307 = vadd.f32 %v1156, %v1289
      %v1308 = vadd.f32 %v1157, %v1292
      %v1309 = vadd.f32 %v1158, %v1297
      %v1310 = vadd.f32 %v1159, %v1300
      %v1311 = vld [vmem:[%s1160 + $0x1] sm:$0xff]
      %v1312 = vld [vmem:[%s1160 + $0x11] sm:$0xff]
      %v1313 = vld [vmem:[%s1160 + $0x21] sm:$0xff]
      %v1314 = vld [vmem:[%s1160 + $0x31] sm:$0xff]
      %v1315 = vld [vmem:[%s1160 + $0x41] sm:$0xff]
      %v1316 = vld [vmem:[%s1160 + $0x51] sm:$0xff]
      %v1317 = vld [vmem:[%s1160 + $0x61] sm:$0xff]
      %v1318 = vld [vmem:[%s1160 + $0x71] sm:$0xff]
      %v1319 = vpack.c.bf16 %v1312, %v1311
      %v1320 = vpack.c.bf16 %v1314, %v1313
      %v1321 = vpack.c.bf16 %v1316, %v1315
      %v1322 = vpack.c.bf16 %v1318, %v1317
      %s1323 = scalar_lea.vmem %s1, 448
      %v1324 = vld [vmem:[%s1323] sm:$0xf]
      %v1325 = vld [vmem:[%s1323 + $0x4] sm:$0xf]
      %v1326 = vld [vmem:[%s1323 + $0x8] sm:$0xf]
      %v1327 = vld [vmem:[%s1323 + $0xc] sm:$0xf]
      %v1328 = vld [vmem:[%s1323 + $0x10] sm:$0xf]
      %v1329 = vld [vmem:[%s1323 + $0x14] sm:$0xf]
      %v1330 = vld [vmem:[%s1323 + $0x18] sm:$0xf]
      %v1331 = vld [vmem:[%s1323 + $0x1c] sm:$0xf]
      %v1332 = vld [vmem:[%s1323 + $0x20] sm:$0xf]
      %v1333 = vld [vmem:[%s1323 + $0x24] sm:$0xf]
      %v1334 = vld [vmem:[%s1323 + $0x28] sm:$0xf]
      %v1335 = vld [vmem:[%s1323 + $0x2c] sm:$0xf]
      %v1336 = vld [vmem:[%s1323 + $0x30] sm:$0xf]
      %v1337 = vld [vmem:[%s1323 + $0x34] sm:$0xf]
      %v1338 = vld [vmem:[%s1323 + $0x38] sm:$0xf]
      %v1339 = vld [vmem:[%s1323 + $0x3c] sm:$0xf]
      %v1356 = vunpack.c.l.b16 %v1324
      %v1357 = vunpack.c.l.b16 %v1325
      %v1358 = vunpack.c.l.b16 %v1326
      %v1359 = vunpack.c.l.b16 %v1327
      %v1360 = vunpack.c.l.b16 %v1328
      %v1361 = vunpack.c.l.b16 %v1329
      %v1362 = vunpack.c.l.b16 %v1330
      %v1363 = vunpack.c.l.b16 %v1331
      %v1364 = vunpack.c.l.b16 %v1332
      %v1365 = vunpack.c.l.b16 %v1333
      %v1366 = vunpack.c.l.b16 %v1334
      %v1367 = vunpack.c.l.b16 %v1335
      %v1368 = vunpack.c.l.b16 %v1336
      %v1369 = vunpack.c.l.b16 %v1337
      %v1370 = vunpack.c.l.b16 %v1338
      %v1371 = vunpack.c.l.b16 %v1339
      %v1372 = vpack.c.b16 %v1357, %v1356
      %v1373 = vpack.c.b16 %v1359, %v1358
      %v1374 = vpack.c.b16 %v1361, %v1360
      %v1375 = vpack.c.b16 %v1363, %v1362
      %v1376 = vpack.c.b16 %v1365, %v1364
      %v1377 = vpack.c.b16 %v1367, %v1366
      %v1378 = vpack.c.b16 %v1369, %v1368
      %v1379 = vpack.c.b16 %v1371, %v1370
      %1388 = vmatprep.subr.bf16.mxu0 0
      %1389 = vmatpush1.bf16.msra.mxu0 %v1372
      %1390 = vmatprep.subr.bf16.mxu0 0
      %1391 = vmatpush1.bf16.msra.mxu0 %v1373
      %1392 = vmatprep.subr.bf16.mxu0 0
      %1393 = vmatpush1.bf16.msra.mxu0 %v1374
      %1394 = vmatprep.subr.bf16.mxu0 0
      %1395 = vmatpush1.bf16.msra.mxu0 %v1375
      %1396 = vmatprep.subr.bf16.mxu0 0
      %1397 = vmatpush1.bf16.msra.mxu0 %v1376
      %1398 = vmatprep.subr.bf16.mxu0 0
      %1399 = vmatpush1.bf16.msra.mxu0 %v1377
      %1400 = vmatprep.subr.bf16.mxu0 0
      %1401 = vmatpush1.bf16.msra.mxu0 %v1378
      %1402 = vmatprep.subr.bf16.mxu0 0
      %1403 = vmatpush1.bf16.msra.mxu0 %v1379
      %1404 = vmatprep.subr.bf16.mxu0 0
      %1405 = vmatpush1.bf16.msra.mxu0 0
      %1406 = vmatprep.subr.bf16.mxu0 0
      %1407 = vmatpush1.bf16.msra.mxu0 0
      %1408 = vmatprep.subr.bf16.mxu0 0
      %1409 = vmatpush1.bf16.msra.mxu0 0
      %1410 = vmatprep.subr.bf16.mxu0 0
      %1411 = vmatpush1.bf16.msra.mxu0 0
      %1412 = vmatprep.subr.bf16.mxu0 0
      %1413 = vmatpush1.bf16.msra.mxu0 0
      %1414 = vmatprep.subr.bf16.mxu0 0
      %1415 = vmatpush1.bf16.msra.mxu0 0
      %1416 = vmatprep.subr.bf16.mxu0 0
      %1417 = vmatpush1.bf16.msra.mxu0 0
      %1418 = vmatprep.subr.bf16.mxu0 0
      %1419 = vmatpush1.bf16.msra.mxu0 0
      %1420 = vmatprep.mubr.bf16.mxu0 0
      %1421 = vmatmul.mubr.bf16.gmra.mrb[0].mxu0 %v1319
      %v1422 = vpop.f32.mrb[0].mxu0
      %v1423 = vadd.f32 0.0, %v1422
      %v1424 = vpop.f32.mrb[0].mxu0
      %v1425 = vpop.f32.mrb[0].mxu0
      %v1426 = vadd.f32 0.0, %v1425
      %v1427 = vpop.f32.mrb[0].mxu0
      %1428 = vmatprep.mubr.bf16.mxu0 0
      %1429 = vmatmul.mubr.bf16.gmra.mrb[0].mxu0 %v1320
      %v1430 = vpop.f32.mrb[0].mxu0
      %v1431 = vadd.f32 0.0, %v1430
      %v1432 = vpop.f32.mrb[0].mxu0
      %v1433 = vpop.f32.mrb[0].mxu0
      %v1434 = vadd.f32 0.0, %v1433
      %v1435 = vpop.f32.mrb[0].mxu0
      %1436 = vmatprep.mubr.bf16.mxu0 0
      %1437 = vmatmul.mubr.bf16.gmra.mrb[0].mxu0 %v1321
      %v1438 = vpop.f32.mrb[0].mxu0
      %v1439 = vadd.f32 0.0, %v1438
      %v1440 = vpop.f32.mrb[0].mxu0
      %v1441 = vpop.f32.mrb[0].mxu0
      %v1442 = vadd.f32 0.0, %v1441
      %v1443 = vpop.f32.mrb[0].mxu0
      %1444 = vmatprep.mubr.bf16.mxu0 0
      %1445 = vmatmul.mubr.bf16.gmra.mrb[0].mxu0 %v1322
      %v1446 = vpop.f32.mrb[0].mxu0
      %v1447 = vadd.f32 0.0, %v1446
      %v1448 = vpop.f32.mrb[0].mxu0
      %v1449 = vpop.f32.mrb[0].mxu0
      %v1450 = vadd.f32 0.0, %v1449
      %v1451 = vpop.f32.mrb[0].mxu0
      %1452 = vdwg.mxu0
      %v1453 = vadd.f32 %v1303, %v1423
      %v1454 = vadd.f32 %v1304, %v1426
      %v1455 = vadd.f32 %v1305, %v1431
      %v1456 = vadd.f32 %v1306, %v1434
      %v1457 = vadd.f32 %v1307, %v1439
      %v1458 = vadd.f32 %v1308, %v1442
      %v1459 = vadd.f32 %v1309, %v1447
      %v1460 = vadd.f32 %v1310, %v1450
      %v1461 = vld [vmem:[%s1160 + $0x2] sm:$0xff]
      %v1462 = vld [vmem:[%s1160 + $0x12] sm:$0xff]
      %v1463 = vld [vmem:[%s1160 + $0x22] sm:$0xff]
      %v1464 = vld [vmem:[%s1160 + $0x32] sm:$0xff]
      %v1465 = vld [vmem:[%s1160 + $0x42] sm:$0xff]
      %v1466 = vld [vmem:[%s1160 + $0x52] sm:$0xff]
      %v1467 = vld [vmem:[%s1160 + $0x62] sm:$0xff]
      %v1468 = vld [vmem:[%s1160 + $0x72] sm:$0xff]
      %v1469 = vpack.c.bf16 %v1462, %v1461
      %v1470 = vpack.c.bf16 %v1464, %v1463
      %v1471 = vpack.c.bf16 %v1466, %v1465
      %v1472 = vpack.c.bf16 %v1468, %v1467
      %s1473 = scalar_lea.vmem %s1, 512
      %v1474 = vld [vmem:[%s1473] sm:$0xf]
      %v1475 = vld [vmem:[%s1473 + $0x4] sm:$0xf]
      %v1476 = vld [vmem:[%s1473 + $0x8] sm:$0xf]
      %v1477 = vld [vmem:[%s1473 + $0xc] sm:$0xf]
      %v1478 = vld [vmem:[%s1473 + $0x10] sm:$0xf]
      %v1479 = vld [vmem:[%s1473 + $0x14] sm:$0xf]
      %v1480 = vld [vmem:[%s1473 + $0x18] sm:$0xf]
      %v1481 = vld [vmem:[%s1473 + $0x1c] sm:$0xf]
      %v1482 = vld [vmem:[%s1473 + $0x20] sm:$0xf]
      %v1483 = vld [vmem:[%s1473 + $0x24] sm:$0xf]
      %v1484 = vld [vmem:[%s1473 + $0x28] sm:$0xf]
      %v1485 = vld [vmem:[%s1473 + $0x2c] sm:$0xf]
      %v1486 = vld [vmem:[%s1473 + $0x30] sm:$0xf]
      %v1487 = vld [vmem:[%s1473 + $0x34] sm:$0xf]
      %v1488 = vld [vmem:[%s1473 + $0x38] sm:$0xf]
      %v1489 = vld [vmem:[%s1473 + $0x3c] sm:$0xf]
      %v1506 = vunpack.c.l.b16 %v1474
      %v1507 = vunpack.c.l.b16 %v1475
      %v1508 = vunpack.c.l.b16 %v1476
      %v1509 = vunpack.c.l.b16 %v1477
      %v1510 = vunpack.c.l.b16 %v1478
      %v1511 = vunpack.c.l.b16 %v1479
      %v1512 = vunpack.c.l.b16 %v1480
      %v1513 = vunpack.c.l.b16 %v1481
      %v1514 = vunpack.c.l.b16 %v1482
      %v1515 = vunpack.c.l.b16 %v1483
      %v1516 = vunpack.c.l.b16 %v1484
      %v1517 = vunpack.c.l.b16 %v1485
      %v1518 = vunpack.c.l.b16 %v1486
      %v1519 = vunpack.c.l.b16 %v1487
      %v1520 = vunpack.c.l.b16 %v1488
      %v1521 = vunpack.c.l.b16 %v1489
      %v1522 = vpack.c.b16 %v1507, %v1506
      %v1523 = vpack.c.b16 %v1509, %v1508
      %v1524 = vpack.c.b16 %v1511, %v1510
      %v1525 = vpack.c.b16 %v1513, %v1512
      %v1526 = vpack.c.b16 %v1515, %v1514
      %v1527 = vpack.c.b16 %v1517, %v1516
      %v1528 = vpack.c.b16 %v1519, %v1518
      %v1529 = vpack.c.b16 %v1521, %v1520
      %1538 = vmatprep.subr.bf16.mxu0 0
      %1539 = vmatpush1.bf16.msra.mxu0 %v1522
      %1540 = vmatprep.subr.bf16.mxu0 0
      %1541 = vmatpush1.bf16.msra.mxu0 %v1523
      %1542 = vmatprep.subr.bf16.mxu0 0
      %1543 = vmatpush1.bf16.msra.mxu0 %v1524
      %1544 = vmatprep.subr.bf16.mxu0 0
      %1545 = vmatpush1.bf16.msra.mxu0 %v1525
      %1546 = vmatprep.subr.bf16.mxu0 0
      %1547 = vmatpush1.bf16.msra.mxu0 %v1526
      %1548 = vmatprep.subr.bf16.mxu0 0
      %1549 = vmatpush1.bf16.msra.mxu0 %v1527
      %1550 = vmatprep.subr.bf16.mxu0 0
      %1551 = vmatpush1.bf16.msra.mxu0 %v1528
      %1552 = vmatprep.subr.bf16.mxu0 0
      %1553 = vmatpush1.bf16.msra.mxu0 %v1529
      %1554 = vmatprep.subr.bf16.mxu0 0
      %1555 = vmatpush1.bf16.msra.mxu0 0
      %1556 = vmatprep.subr.bf16.mxu0 0
      %1557 = vmatpush1.bf16.msra.mxu0 0
      %1558 = vmatprep.subr.bf16.mxu0 0
      %1559 = vmatpush1.bf16.msra.mxu0 0
      %1560 = vmatprep.subr.bf16.mxu0 0
      %1561 = vmatpush1.bf16.msra.mxu0 0
      %1562 = vmatprep.subr.bf16.mxu0 0
      %1563 = vmatpush1.bf16.msra.mxu0 0
      %1564 = vmatprep.subr.bf16.mxu0 0
      %1565 = vmatpush1.bf16.msra.mxu0 0
      %1566 = vmatprep.subr.bf16.mxu0 0
      %1567 = vmatpush1.bf16.msra.mxu0 0
      %1568 = vmatprep.subr.bf16.mxu0 0
      %1569 = vmatpush1.bf16.msra.mxu0 0
      %1570 = vmatprep.mubr.bf16.mxu0 0
      %1571 = vmatmul.mubr.bf16.gmra.mrb[0].mxu0 %v1469
      %v1572 = vpop.f32.mrb[0].mxu0
      %v1573 = vadd.f32 0.0, %v1572
      %v1574 = vpop.f32.mrb[0].mxu0
      %v1575 = vpop.f32.mrb[0].mxu0
      %v1576 = vadd.f32 0.0, %v1575
      %v1577 = vpop.f32.mrb[0].mxu0
      %1578 = vmatprep.mubr.bf16.mxu0 0
      %1579 = vmatmul.mubr.bf16.gmra.mrb[0].mxu0 %v1470
      %v1580 = vpop.f32.mrb[0].mxu0
      %v1581 = vadd.f32 0.0, %v1580
      %v1582 = vpop.f32.mrb[0].mxu0
      %v1583 = vpop.f32.mrb[0].mxu0
      %v1584 = vadd.f32 0.0, %v1583
      %v1585 = vpop.f32.mrb[0].mxu0
      %1586 = vmatprep.mubr.bf16.mxu0 0
      %1587 = vmatmul.mubr.bf16.gmra.mrb[0].mxu0 %v1471
      %v1588 = vpop.f32.mrb[0].mxu0
      %v1589 = vadd.f32 0.0, %v1588
      %v1590 = vpop.f32.mrb[0].mxu0
      %v1591 = vpop.f32.mrb[0].mxu0
      %v1592 = vadd.f32 0.0, %v1591
      %v1593 = vpop.f32.mrb[0].mxu0
      %1594 = vmatprep.mubr.bf16.mxu0 0
      %1595 = vmatmul.mubr.bf16.gmra.mrb[0].mxu0 %v1472
      %v1596 = vpop.f32.mrb[0].mxu0
      %v1597 = vadd.f32 0.0, %v1596
      %v1598 = vpop.f32.mrb[0].mxu0
      %v1599 = vpop.f32.mrb[0].mxu0
      %v1600 = vadd.f32 0.0, %v1599
      %v1601 = vpop.f32.mrb[0].mxu0
      %1602 = vdwg.mxu0
      %v1603 = vadd.f32 %v1453, %v1573
      %v1604 = vadd.f32 %v1454, %v1576
      %v1605 = vadd.f32 %v1455, %v1581
      %v1606 = vadd.f32 %v1456, %v1584
      %v1607 = vadd.f32 %v1457, %v1589
      %v1608 = vadd.f32 %v1458, %v1592
      %v1609 = vadd.f32 %v1459, %v1597
      %v1610 = vadd.f32 %v1460, %v1600
      %v1611 = vld [vmem:[%s2] sm:$0x1]
      %v1613 = vlaneseq
      %v1614 = vshrl.u32 %v1613, 7
      %v1615 = vsub.s32 0, %v1614
      %v1616 = vrot.slane %v1611, %v1615
      %v1618 = vadd.f32 %v1603, %v1616
      %v1619 = vadd.f32 %v1604, %v1616
      %v1620 = vadd.f32 %v1605, %v1616
      %v1621 = vadd.f32 %v1606, %v1616
      %v1622 = vadd.f32 %v1607, %v1616
      %v1623 = vadd.f32 %v1608, %v1616
      %v1624 = vadd.f32 %v1609, %v1616
      %v1625 = vadd.f32 %v1610, %v1616
      %v1626 = vmax.f32 %v1618, 0.0
      %v1627 = vmax.f32 %v1619, 0.0
      %v1628 = vmax.f32 %v1620, 0.0
      %v1629 = vmax.f32 %v1621, 0.0
      %v1630 = vmax.f32 %v1622, 0.0
      %v1631 = vmax.f32 %v1623, 0.0
      %v1632 = vmax.f32 %v1624, 0.0
      %v1633 = vmax.f32 %v1625, 0.0
      %v1634 = vpack.c.bf16 %v1627, %v1626
      %v1635 = vpack.c.bf16 %v1629, %v1628
      %v1636 = vpack.c.bf16 %v1631, %v1630
      %v1637 = vpack.c.bf16 %v1633, %v1632
      %v1638 = vld [vmem:[%s3] sm:$0xf]
      %v1639 = vld [vmem:[%s3 + $0x4] sm:$0xf]
      %v1640 = vld [vmem:[%s3 + $0x8] sm:$0xf]
      %v1641 = vld [vmem:[%s3 + $0xc] sm:$0xf]
      %v1642 = vld [vmem:[%s3 + $0x10] sm:$0xf]
      %v1643 = vld [vmem:[%s3 + $0x14] sm:$0xf]
      %v1644 = vld [vmem:[%s3 + $0x18] sm:$0xf]
      %v1645 = vld [vmem:[%s3 + $0x1c] sm:$0xf]
      %v1646 = vld [vmem:[%s3 + $0x20] sm:$0xf]
      %v1647 = vld [vmem:[%s3 + $0x24] sm:$0xf]
      %v1648 = vld [vmem:[%s3 + $0x28] sm:$0xf]
      %v1649 = vld [vmem:[%s3 + $0x2c] sm:$0xf]
      %v1650 = vld [vmem:[%s3 + $0x30] sm:$0xf]
      %v1651 = vld [vmem:[%s3 + $0x34] sm:$0xf]
      %v1652 = vld [vmem:[%s3 + $0x38] sm:$0xf]
      %v1653 = vld [vmem:[%s3 + $0x3c] sm:$0xf]
      %v1654 = vld [vmem:[%s4] sm:$0x1]
      %v1656 = vlaneseq
      %v1657 = vshrl.u32 %v1656, 7
      %v1658 = vsub.s32 0, %v1657
      %v1659 = vrot.slane %v1654, %v1658
      %v1677 = vunpack.c.l.b16 %v1638
      %v1678 = vunpack.c.l.b16 %v1639
      %v1679 = vunpack.c.l.b16 %v1640
      %v1680 = vunpack.c.l.b16 %v1641
      %v1681 = vunpack.c.l.b16 %v1642
      %v1682 = vunpack.c.l.b16 %v1643
      %v1683 = vunpack.c.l.b16 %v1644
      %v1684 = vunpack.c.l.b16 %v1645
      %v1685 = vunpack.c.l.b16 %v1646
      %v1686 = vunpack.c.l.b16 %v1647
      %v1687 = vunpack.c.l.b16 %v1648
      %v1688 = vunpack.c.l.b16 %v1649
      %v1689 = vunpack.c.l.b16 %v1650
      %v1690 = vunpack.c.l.b16 %v1651
      %v1691 = vunpack.c.l.b16 %v1652
      %v1692 = vunpack.c.l.b16 %v1653
      %v1693 = vpack.c.b16 %v1678, %v1677
      %v1694 = vpack.c.b16 %v1680, %v1679
      %v1695 = vpack.c.b16 %v1682, %v1681
      %v1696 = vpack.c.b16 %v1684, %v1683
      %v1697 = vpack.c.b16 %v1686, %v1685
      %v1698 = vpack.c.b16 %v1688, %v1687
      %v1699 = vpack.c.b16 %v1690, %v1689
      %v1700 = vpack.c.b16 %v1692, %v1691
      %1709 = vmatprep.subr.bf16.mxu0 0
      %1710 = vmatpush1.bf16.msra.mxu0 %v1693
      %1711 = vmatprep.subr.bf16.mxu0 0
      %1712 = vmatpush1.bf16.msra.mxu0 %v1694
      %1713 = vmatprep.subr.bf16.mxu0 0
      %1714 = vmatpush1.bf16.msra.mxu0 %v1695
      %1715 = vmatprep.subr.bf16.mxu0 0
      %1716 = vmatpush1.bf16.msra.mxu0 %v1696
      %1717 = vmatprep.subr.bf16.mxu0 0
      %1718 = vmatpush1.bf16.msra.mxu0 %v1697
      %1719 = vmatprep.subr.bf16.mxu0 0
      %1720 = vmatpush1.bf16.msra.mxu0 %v1698
      %1721 = vmatprep.subr.bf16.mxu0 0
      %1722 = vmatpush1.bf16.msra.mxu0 %v1699
      %1723 = vmatprep.subr.bf16.mxu0 0
      %1724 = vmatpush1.bf16.msra.mxu0 %v1700
      %1725 = vmatprep.subr.bf16.mxu0 0
      %1726 = vmatpush1.bf16.msra.mxu0 0
      %1727 = vmatprep.subr.bf16.mxu0 0
      %1728 = vmatpush1.bf16.msra.mxu0 0
      %1729 = vmatprep.subr.bf16.mxu0 0
      %1730 = vmatpush1.bf16.msra.mxu0 0
      %1731 = vmatprep.subr.bf16.mxu0 0
      %1732 = vmatpush1.bf16.msra.mxu0 0
      %1733 = vmatprep.subr.bf16.mxu0 0
      %1734 = vmatpush1.bf16.msra.mxu0 0
      %1735 = vmatprep.subr.bf16.mxu0 0
      %1736 = vmatpush1.bf16.msra.mxu0 0
      %1737 = vmatprep.subr.bf16.mxu0 0
      %1738 = vmatpush1.bf16.msra.mxu0 0
      %1739 = vmatprep.subr.bf16.mxu0 0
      %1740 = vmatpush1.bf16.msra.mxu0 0
      %1741 = vmatprep.mubr.bf16.mxu0 0
      %1742 = vmatmul.mubr.bf16.gmra.mrb[0].mxu0 %v1634
      %v1743 = vpop.f32.mrb[0].mxu0
      %v1744 = vadd.f32 %v1659, %v1743
      %v1745 = vpop.f32.mrb[0].mxu0
      %v1746 = vpop.f32.mrb[0].mxu0
      %v1747 = vadd.f32 %v1659, %v1746
      %v1748 = vpop.f32.mrb[0].mxu0
      %1749 = vmatprep.mubr.bf16.mxu0 0
      %1750 = vmatmul.mubr.bf16.gmra.mrb[0].mxu0 %v1635
      %v1751 = vpop.f32.mrb[0].mxu0
      %v1752 = vadd.f32 %v1659, %v1751
      %v1753 = vpop.f32.mrb[0].mxu0
      %v1754 = vpop.f32.mrb[0].mxu0
      %v1755 = vadd.f32 %v1659, %v1754
      %v1756 = vpop.f32.mrb[0].mxu0
      %1757 = vmatprep.mubr.bf16.mxu0 0
      %1758 = vmatmul.mubr.bf16.gmra.mrb[0].mxu0 %v1636
      %v1759 = vpop.f32.mrb[0].mxu0
      %v1760 = vadd.f32 %v1659, %v1759
      %v1761 = vpop.f32.mrb[0].mxu0
      %v1762 = vpop.f32.mrb[0].mxu0
      %v1763 = vadd.f32 %v1659, %v1762
      %v1764 = vpop.f32.mrb[0].mxu0
      %1765 = vmatprep.mubr.bf16.mxu0 0
      %1766 = vmatmul.mubr.bf16.gmra.mrb[0].mxu0 %v1637
      %v1767 = vpop.f32.mrb[0].mxu0
      %v1768 = vadd.f32 %v1659, %v1767
      %v1769 = vpop.f32.mrb[0].mxu0
      %v1770 = vpop.f32.mrb[0].mxu0
      %v1771 = vadd.f32 %v1659, %v1770
      %v1772 = vpop.f32.mrb[0].mxu0
      %1773 = vdwg.mxu0
      %v1774 = vmax.f32 %v1744, 0.0
      %v1775 = vmax.f32 %v1747, 0.0
      %v1776 = vmax.f32 %v1752, 0.0
      %v1777 = vmax.f32 %v1755, 0.0
      %v1778 = vmax.f32 %v1760, 0.0
      %v1779 = vmax.f32 %v1763, 0.0
      %v1780 = vmax.f32 %v1768, 0.0
      %v1781 = vmax.f32 %v1771, 0.0
      %v1782 = vld [vmem:[%s5] sm:$0x1]
      %v1784 = vlaneseq
      %v1785 = vshrl.u32 %v1784, 7
      %v1786 = vsub.s32 0, %v1785
      %v1787 = vrot.slane %v1782, %v1786
      %v1789 = vmul.f32 %v1774, %v1787
      %v1790 = vmul.f32 %v1775, %v1787
      %v1791 = vmul.f32 %v1776, %v1787
      %v1792 = vmul.f32 %v1777, %v1787
      %v1793 = vmul.f32 %v1778, %v1787
      %v1794 = vmul.f32 %v1779, %v1787
      %v1795 = vmul.f32 %v1780, %v1787
      %v1796 = vmul.f32 %v1781, %v1787
      %v1797 = vld [vmem:[%s6] sm:$0x1]
      %v1799 = vlaneseq
      %v1800 = vshrl.u32 %v1799, 7
      %v1801 = vsub.s32 0, %v1800
      %v1802 = vrot.slane %v1797, %v1801
      %v1804 = vadd.f32 %v1789, %v1802
      %v1805 = vadd.f32 %v1790, %v1802
      %v1806 = vadd.f32 %v1791, %v1802
      %v1807 = vadd.f32 %v1792, %v1802
      %v1808 = vadd.f32 %v1793, %v1802
      %v1809 = vadd.f32 %v1794, %v1802
      %v1810 = vadd.f32 %v1795, %v1802
      %v1811 = vadd.f32 %v1796, %v1802
      %v1812 = vadd.f32 %v1804, %v1805
      %v1813 = vadd.f32 %v1812, %v1806
      %v1814 = vadd.f32 %v1813, %v1807
      %v1815 = vadd.f32 %v1814, %v1808
      %v1816 = vadd.f32 %v1815, %v1809
      %v1817 = vadd.f32 %v1816, %v1810
      %v1818 = vadd.f32 %v1817, %v1811
      %v1819 = vrot.slane %v1818, 4
      %v1820 = vadd.f32 %v1818, %v1819
      %v1821 = vrot.slane %v1820, 2
      %v1822 = vadd.f32 %v1820, %v1821
      %v1823 = vrot.slane %v1822, 1
      %v1824 = vadd.f32 %v1822, %v1823
      %v1825 = vmul.f32 %v1824, 0.015625
      %1826 = vst [vmem:[%s274] sm:$0x1] %v1825
      %p1827 = scmp.lt.s32.totalorder %s18, 1
      %s1828 = scalar_select %p1827, %s18, 1
      %s1829 = scalar_lea.vmem %s7, %s1828
      // Predicated region
      $region49: #{nin_forward.3} parent=47 // pred_check
        %p1830 = pneg %p188
      $region50: #{nin_forward.3} parent=47 // pred_check_branch
        %1832 = sbr.rel (%p1830) target = $region52
      $region51: #{nin_forward.3} parent=47 // pred_region
        _
      $region52: #{nin_forward.3} parent=47 // pred_fallthru
        _
    $region48: #{nin_forward.3} parent=5 // pred_fallthru
      _
    %p1833 = scmp.le.s32.totalorder 2, %s13
    // Predicated region
    $region53: #{nin_forward.3} parent=5 // pred_check
      %p1834 = pneg %p1833
    $region54: #{nin_forward.3} parent=5 // pred_check_branch
      %1836 = sbr.rel (%p1834) target = $region56
    $region55: #{nin_forward.3} parent=5 // pred_region
      %s1837 = ssub.s32 %s13, 2
      // Predicated region
      $region57: #{nin_forward.3} parent=55 // pred_check
        %p1838 = pneg %p194
      $region58: #{nin_forward.3} parent=55 // pred_check_branch
        %1840 = sbr.rel (%p1838) target = $region60
      $region59: #{nin_forward.3} parent=55 // pred_region
        %p1841 = scmp.lt.s32.totalorder %s19, 1
        %s1842 = scalar_select %p1841, %s19, 1
        %s1843 = scalar_lea.vmem %s7, %s1842
      $region60: #{nin_forward.3} parent=55 // pred_fallthru
        _
    $region56: #{nin_forward.3} parent=5 // pred_fallthru
      _
  $region6: #{nin_forward.3} parent=0 // loop_footer
    %s17 = sadd.s32 1, %s13
  $region7: #{nin_forward.3} parent=0 // loop_footer_branch
    %12 = sbr.rel target = $region3
  $region8: #{nin_forward.3} parent=0 // loop_exit
    _

// kernel: nin_forward.2
$region0: #{nin_forward.2}
  #allocation0 [shape = 'u32[]', space=smem, size = 0x4, offset = 0x4, fixed_abs, tag = 'smem constant byte address 0x4 - core index']
  #allocation1 [shape = 'u32[144,128]{1,0:T(1,128)}', space=vmem, size = 0x12000, scoped, tag = 'internal scratch']
  #allocation2 [shape = 'f32[16,16,128]{2,1,0:T(8,128)}', space=vmem, size = 0x20000, scoped, tag = 'scratch operand']
  %s0 = inlined_call_operand.vmem [shape: f32[2,18,18,128], index: 0, kind: input, shape index: {}]
  %s1 = inlined_call_operand.vmem [shape: bf16[9,128,128], index: 1, kind: input, shape index: {}]
  %s2 = inlined_call_operand.vmem [shape: f32[1,128], index: 2, kind: input, shape index: {}]
  %s3 = inlined_call_operand.vmem [shape: bf16[1,128,128], index: 3, kind: input, shape index: {}]
  %s4 = inlined_call_operand.vmem [shape: f32[1,128], index: 4, kind: input, shape index: {}]
  %s5 = inlined_call_operand.vmem [shape: f32[1,128], index: 5, kind: input, shape index: {}]
  %s6 = inlined_call_operand.vmem [shape: f32[1,128], index: 6, kind: input, shape index: {}]
  %s7 = inlined_call_operand.vmem [shape: f32[2,64,128], index: 7, kind: output, shape index: {}]
  %s8 = sld [smem:[#allocation0]]
  $region61: #{nin_forward.2} parent=0
    _
  %s10 = ssub.s32 1, %s8
  %s11 = scalar_select 0, %s10, %s8
  loop: start=0, step=1, limit=4
  $region2: #{nin_forward.2} parent=0 // loop_pre_header
    _
  $region3: #{nin_forward.2} parent=0 // loop_header
    %s13 = sphi 0, %s17
    %p14 = scmp.ge.s32.totalorder %s13, 4
    %s23 = sphi 0, %s25
    %s26 = sphi 0, %s23
    %s27 = sphi 0, %s26
    %s43 = sphi 0, %s27
    %s47 = sphi 0, %s47
    %s49 = sphi 0, %s47
    %s50 = sphi 0, %s49
    %s64 = sphi 0, %s50
    %s68 = sphi 0, %s68
    %s70 = sphi 0, %s68
    %s71 = sphi 0, %s70
    %s85 = sphi 0, %s71
    %s89 = sphi 0, %s89
    %s91 = sphi 0, %s89
    %s92 = sphi 0, %s91
    %s106 = sphi 0, %s92
    %s110 = sphi 0, %s110
    %s112 = sphi 0, %s110
    %s113 = sphi 0, %s112
    %s127 = sphi 0, %s113
    %s131 = sphi 0, %s131
    %s133 = sphi 0, %s131
    %s134 = sphi 0, %s133
    %s148 = sphi 0, %s134
    %s152 = sphi 0, %s152
    %s154 = sphi 0, %s152
    %s155 = sphi 0, %s154
    %s169 = sphi 0, %s155
    %s175 = sphi 0, %s177
    %s178 = sphi 0, %s175
    %s179 = sphi 0, %s178
    %s195 = sphi 0, %s179
  $region4: #{nin_forward.2} parent=0 // loop_header_branch
    %16 = sbr.rel (%p14) target = $region8
  $region5: #{nin_forward.2} parent=0 // loop_body
    %s18 = ssub.s32 %s13, 1
    %s19 = ssub.s32 %s13, 2
    %s20 = sadd.s32 %s13, 1
    %s21 = ssub.s32 %s13, %s20
    %p22 = scmp.eq.s32.totalorder %s21, 0
    %s24 = sadd.s32 %s23, 1
    %s25 = scalar_select %p22, %s23, %s24
    %p28 = pneg %p22
    %p29 = scmp.eq.s32.totalorder %s13, 1
    %p30 = por %p28, %p29
    %p31 = scmp.ne.s32.totalorder %s23, %s26
    %p32 = scmp.eq.s32.totalorder %s13, 0
    %p33 = por %p31, %p32
    %p34 = scmp.ne.s32.totalorder %s23, %s26
    %p35 = scmp.eq.s32.totalorder %s18, 1
    %p36 = por %p34, %p35
    %p37 = scmp.ne.s32.totalorder %s26, %s27
    %p38 = scmp.eq.s32.totalorder %s18, 0
    %p39 = por %p37, %p38
    %p40 = scmp.ne.s32.totalorder %s26, %s27
    %p41 = scmp.eq.s32.totalorder %s19, 1
    %p42 = por %p40, %p41
    %p44 = scmp.ne.s32.totalorder %s27, %s43
    %p45 = scmp.eq.s32.totalorder %s19, 0
    %p46 = por %p44, %p45
    %s48 = sadd.s32 %s47, 1
    %p51 = scmp.eq.s32.totalorder %s13, 1
    %p52 = scmp.ne.s32.totalorder %s47, %s49
    %p53 = scmp.eq.s32.totalorder %s13, 0
    %p54 = por %p52, %p53
    %p55 = scmp.ne.s32.totalorder %s47, %s49
    %p56 = scmp.eq.s32.totalorder %s18, 1
    %p57 = por %p55, %p56
    %p58 = scmp.ne.s32.totalorder %s49, %s50
    %p59 = scmp.eq.s32.totalorder %s18, 0
    %p60 = por %p58, %p59
    %p61 = scmp.ne.s32.totalorder %s49, %s50
    %p62 = scmp.eq.s32.totalorder %s19, 1
    %p63 = por %p61, %p62
    %p65 = scmp.ne.s32.totalorder %s50, %s64
    %p66 = scmp.eq.s32.totalorder %s19, 0
    %p67 = por %p65, %p66
    %s69 = sadd.s32 %s68, 1
    %p72 = scmp.eq.s32.totalorder %s13, 1
    %p73 = scmp.ne.s32.totalorder %s68, %s70
    %p74 = scmp.eq.s32.totalorder %s13, 0
    %p75 = por %p73, %p74
    %p76 = scmp.ne.s32.totalorder %s68, %s70
    %p77 = scmp.eq.s32.totalorder %s18, 1
    %p78 = por %p76, %p77
    %p79 = scmp.ne.s32.totalorder %s70, %s71
    %p80 = scmp.eq.s32.totalorder %s18, 0
    %p81 = por %p79, %p80
    %p82 = scmp.ne.s32.totalorder %s70, %s71
    %p83 = scmp.eq.s32.totalorder %s19, 1
    %p84 = por %p82, %p83
    %p86 = scmp.ne.s32.totalorder %s71, %s85
    %p87 = scmp.eq.s32.totalorder %s19, 0
    %p88 = por %p86, %p87
    %s90 = sadd.s32 %s89, 1
    %p93 = scmp.eq.s32.totalorder %s13, 1
    %p94 = scmp.ne.s32.totalorder %s89, %s91
    %p95 = scmp.eq.s32.totalorder %s13, 0
    %p96 = por %p94, %p95
    %p97 = scmp.ne.s32.totalorder %s89, %s91
    %p98 = scmp.eq.s32.totalorder %s18, 1
    %p99 = por %p97, %p98
    %p100 = scmp.ne.s32.totalorder %s91, %s92
    %p101 = scmp.eq.s32.totalorder %s18, 0
    %p102 = por %p100, %p101
    %p103 = scmp.ne.s32.totalorder %s91, %s92
    %p104 = scmp.eq.s32.totalorder %s19, 1
    %p105 = por %p103, %p104
    %p107 = scmp.ne.s32.totalorder %s92, %s106
    %p108 = scmp.eq.s32.totalorder %s19, 0
    %p109 = por %p107, %p108
    %s111 = sadd.s32 %s110, 1
    %p114 = scmp.eq.s32.totalorder %s13, 1
    %p115 = scmp.ne.s32.totalorder %s110, %s112
    %p116 = scmp.eq.s32.totalorder %s13, 0
    %p117 = por %p115, %p116
    %p118 = scmp.ne.s32.totalorder %s110, %s112
    %p119 = scmp.eq.s32.totalorder %s18, 1
    %p120 = por %p118, %p119
    %p121 = scmp.ne.s32.totalorder %s112, %s113
    %p122 = scmp.eq.s32.totalorder %s18, 0
    %p123 = por %p121, %p122
    %p124 = scmp.ne.s32.totalorder %s112, %s113
    %p125 = scmp.eq.s32.totalorder %s19, 1
    %p126 = por %p124, %p125
    %p128 = scmp.ne.s32.totalorder %s113, %s127
    %p129 = scmp.eq.s32.totalorder %s19, 0
    %p130 = por %p128, %p129
    %s132 = sadd.s32 %s131, 1
    %p135 = scmp.eq.s32.totalorder %s13, 1
    %p136 = scmp.ne.s32.totalorder %s131, %s133
    %p137 = scmp.eq.s32.totalorder %s13, 0
    %p138 = por %p136, %p137
    %p139 = scmp.ne.s32.totalorder %s131, %s133
    %p140 = scmp.eq.s32.totalorder %s18, 1
    %p141 = por %p139, %p140
    %p142 = scmp.ne.s32.totalorder %s133, %s134
    %p143 = scmp.eq.s32.totalorder %s18, 0
    %p144 = por %p142, %p143
    %p145 = scmp.ne.s32.totalorder %s133, %s134
    %p146 = scmp.eq.s32.totalorder %s19, 1
    %p147 = por %p145, %p146
    %p149 = scmp.ne.s32.totalorder %s134, %s148
    %p150 = scmp.eq.s32.totalorder %s19, 0
    %p151 = por %p149, %p150
    %s153 = sadd.s32 %s152, 1
    %p156 = scmp.eq.s32.totalorder %s13, 1
    %p157 = scmp.ne.s32.totalorder %s152, %s154
    %p158 = scmp.eq.s32.totalorder %s13, 0
    %p159 = por %p157, %p158
    %p160 = scmp.ne.s32.totalorder %s152, %s154
    %p161 = scmp.eq.s32.totalorder %s18, 1
    %p162 = por %p160, %p161
    %p163 = scmp.ne.s32.totalorder %s154, %s155
    %p164 = scmp.eq.s32.totalorder %s18, 0
    %p165 = por %p163, %p164
    %p166 = scmp.ne.s32.totalorder %s154, %s155
    %p167 = scmp.eq.s32.totalorder %s19, 1
    %p168 = por %p166, %p167
    %p170 = scmp.ne.s32.totalorder %s155, %s169
    %p171 = scmp.eq.s32.totalorder %s19, 0
    %p172 = por %p170, %p171
    %s173 = ssub.s32 %s13, %s20
    %p174 = scmp.eq.s32.totalorder %s173, 0
    %s176 = sadd.s32 %s175, 1
    %s177 = scalar_select %p174, %s175, %s176
    %p180 = pneg %p174
    %p181 = scmp.eq.s32.totalorder %s13, 1
    %p182 = por %p180, %p181
    %p183 = scmp.ne.s32.totalorder %s175, %s178
    %p184 = scmp.eq.s32.totalorder %s13, 0
    %p185 = por %p183, %p184
    %p186 = scmp.ne.s32.totalorder %s175, %s178
    %p187 = scmp.eq.s32.totalorder %s18, 1
    %p188 = por %p186, %p187
    %p189 = scmp.ne.s32.totalorder %s178, %s179
    %p190 = scmp.eq.s32.totalorder %s18, 0
    %p191 = por %p189, %p190
    %p192 = scmp.ne.s32.totalorder %s178, %s179
    %p193 = scmp.eq.s32.totalorder %s19, 1
    %p194 = por %p192, %p193
    %p196 = scmp.ne.s32.totalorder %s179, %s195
    %p197 = scmp.eq.s32.totalorder %s19, 0
    %p198 = por %p196, %p197
    %p199 = scmp.le.s32.totalorder 1, %s13
    %p200 = scmp.lt.s32.totalorder %s13, 3
    %p201 = pnand %p199, %p200
    %p202 = pneg %p201
    // Predicated region
    $region9: #{nin_forward.2} parent=5 // pred_check
      _
    $region10: #{nin_forward.2} parent=5 // pred_check_branch
      %204 = sbr.rel (%p201) target = $region12
    $region11: #{nin_forward.2} parent=5 // pred_region
      %s205 = ssub.s32 %s13, 1
      // Predicated region
      $region13: #{nin_forward.2} parent=11 // pred_check
        %p206 = pneg %p60
      $region14: #{nin_forward.2} parent=11 // pred_check_branch
        %208 = sbr.rel (%p206) target = $region16
      $region15: #{nin_forward.2} parent=11 // pred_region
        _
      $region16: #{nin_forward.2} parent=11 // pred_fallthru
        _
      // Predicated region
      $region17: #{nin_forward.2} parent=11 // pred_check
        %p209 = pneg %p81
      $region18: #{nin_forward.2} parent=11 // pred_check_branch
        %211 = sbr.rel (%p209) target = $region20
      $region19: #{nin_forward.2} parent=11 // pred_region
        _
      $region20: #{nin_forward.2} parent=11 // pred_fallthru
        _
      // Predicated region
      $region21: #{nin_forward.2} parent=11 // pred_check
        %p212 = pneg %p102
      $region22: #{nin_forward.2} parent=11 // pred_check_branch
        %214 = sbr.rel (%p212) target = $region24
      $region23: #{nin_forward.2} parent=11 // pred_region
        _
      $region24: #{nin_forward.2} parent=11 // pred_fallthru
        _
      // Predicated region
      $region25: #{nin_forward.2} parent=11 // pred_check
        %p215 = pneg %p123
      $region26: #{nin_forward.2} parent=11 // pred_check_branch
        %217 = sbr.rel (%p215) target = $region28
      $region27: #{nin_forward.2} parent=11 // pred_region
        _
      $region28: #{nin_forward.2} parent=11 // pred_fallthru
        _
      // Predicated region
      $region29: #{nin_forward.2} parent=11 // pred_check
        %p218 = pneg %p144
      $region30: #{nin_forward.2} parent=11 // pred_check_branch
        %220 = sbr.rel (%p218) target = $region32
      $region31: #{nin_forward.2} parent=11 // pred_region
        _
      $region32: #{nin_forward.2} parent=11 // pred_fallthru
        _
      // Predicated region
      $region33: #{nin_forward.2} parent=11 // pred_check
        %p221 = pneg %p165
      $region34: #{nin_forward.2} parent=11 // pred_check_branch
        %223 = sbr.rel (%p221) target = $region36
      $region35: #{nin_forward.2} parent=11 // pred_region
        _
      $region36: #{nin_forward.2} parent=11 // pred_fallthru
        _
    $region12: #{nin_forward.2} parent=5 // pred_fallthru
      _
    %p224 = scmp.lt.s32.totalorder %s13, 2
    // Predicated region
    $region37: #{nin_forward.2} parent=5 // pred_check
      %p225 = pneg %p224
    $region38: #{nin_forward.2} parent=5 // pred_check_branch
      %227 = sbr.rel (%p225) target = $region40
    $region39: #{nin_forward.2} parent=5 // pred_region
      // Predicated region
      $region41: #{nin_forward.2} parent=39 // pred_check
        %p228 = pneg %p33
      $region42: #{nin_forward.2} parent=39 // pred_check_branch
        %230 = sbr.rel (%p228) target = $region44
      $region43: #{nin_forward.2} parent=39 // pred_region
        %p231 = scmp.lt.s32.totalorder %s13, 1
        %s232 = scalar_select %p231, %s13, 1
        %s233 = smul.addr %s232, 54
        %s234 = smul.addr %s233, 8
        %s235 = scalar_lea.vmem %s0, %s234
      $region44: #{nin_forward.2} parent=39 // pred_fallthru
        _
    $region40: #{nin_forward.2} parent=5 // pred_fallthru
      _
    %p236 = scmp.le.s32.totalorder 1, %s13
    %p237 = scmp.lt.s32.totalorder %s13, 3
    %p238 = pnand %p236, %p237
    %p239 = pneg %p238
    // Predicated region
    $region45: #{nin_forward.2} parent=5 // pred_check
      _
    $region46: #{nin_forward.2} parent=5 // pred_check_branch
      %241 = sbr.rel (%p238) target = $region48
    $region47: #{nin_forward.2} parent=5 // pred_region
      %s242 = ssub.s32 %s13, 1
      %p243 = scmp.lt.s32.totalorder %s18, 1
      %s244 = scalar_select %p243, %s18, 1
      %s245 = smul.addr %s244, 54
      %s246 = smul.addr %s245, 8
      %s247 = scalar_lea.vmem %s0, %s246
      %p248 = pneg %p39
      %p249 = pneg %p36
      %p250 = pneg %p60
      %p251 = pneg %p57
      %p252 = pneg %p81
      %p253 = pneg %p78
      %p254 = pneg %p102
      %p255 = pneg %p99
      %p256 = pneg %p123
      %p257 = pneg %p120
      %p258 = pneg %p144
      %p259 = pneg %p141
      %p260 = pneg %p165
      %p261 = pneg %p162
      %p262 = pneg %p191
      %p263 = pneg %p188
      %p264 = scmp.lt.s32.totalorder %s18, 1
      %s265 = scalar_select %p264, %s18, 1
      %s266 = smul.addr %s265, 8
      %s267 = smul.addr %s266, 8
      %s268 = scalar_lea.vmem %s7, %s267
      %p269 = scmp.lt.s32.totalorder %s18, 1
      %s270 = scalar_select %p269, %s18, 1
      %s271 = smul.addr %s270, 54
      %s272 = smul.addr %s271, 8
      %s273 = scalar_lea.vmem %s0, %s272
      %p274 = scmp.lt.s32.totalorder %s18, 1
      %s275 = scalar_select %p274, %s18, 1
      %s276 = smul.addr %s275, 8
      %s277 = smul.addr %s276, 8
      %s278 = scalar_lea.vmem %s7, %s277
      %v280 = vld [vmem:[%s273] sm:$0xff]
      %v281 = vld [vmem:[%s273 + $0x8] sm:$0xff]
      %v282 = vld [vmem:[%s273 + $0x18] sm:$0xff]
      %v283 = vld [vmem:[%s273 + $0x20] sm:$0xff]
      %v284 = vld [vmem:[%s273 + $0x30] sm:$0xff]
      %v285 = vld [vmem:[%s273 + $0x38] sm:$0xff]
      %v286 = vld [vmem:[%s273 + $0x48] sm:$0xff]
      %v287 = vld [vmem:[%s273 + $0x50] sm:$0xff]
      %v288 = vld [vmem:[%s273 + $0x60] sm:$0xff]
      %v289 = vld [vmem:[%s273 + $0x68] sm:$0xff]
      %v290 = vld [vmem:[%s273 + $0x78] sm:$0xff]
      %v291 = vld [vmem:[%s273 + $0x80] sm:$0xff]
      %v292 = vld [vmem:[%s273 + $0x90] sm:$0xff]
      %v293 = vld [vmem:[%s273 + $0x98] sm:$0xff]
      %v294 = vld [vmem:[%s273 + $0xa8] sm:$0xff]
      %v295 = vld [vmem:[%s273 + $0xb0] sm:$0xff]
      %v296 = vld [vmem:[%s273 + $0xc0] sm:$0xff]
      %v297 = vld [vmem:[%s273 + $0xc8] sm:$0xff]
      %v298 = vld [vmem:[%s273 + $0xd8] sm:$0xff]
      %v299 = vld [vmem:[%s273 + $0xe0] sm:$0xff]
      %v300 = vld [vmem:[%s273 + $0xf0] sm:$0xff]
      %v301 = vld [vmem:[%s273 + $0xf8] sm:$0xff]
      %v302 = vld [vmem:[%s273 + $0x108] sm:$0xff]
      %v303 = vld [vmem:[%s273 + $0x110] sm:$0xff]
      %v304 = vld [vmem:[%s273 + $0x120] sm:$0xff]
      %v305 = vld [vmem:[%s273 + $0x128] sm:$0xff]
      %v306 = vld [vmem:[%s273 + $0x138] sm:$0xff]
      %v307 = vld [vmem:[%s273 + $0x140] sm:$0xff]
      %v308 = vld [vmem:[%s273 + $0x150] sm:$0xff]
      %v309 = vld [vmem:[%s273 + $0x158] sm:$0xff]
      %v310 = vld [vmem:[%s273 + $0x168] sm:$0xff]
      %v311 = vld [vmem:[%s273 + $0x170] sm:$0xff]
      %v312 = vpack.c.bf16 %v281, %v280
      %v313 = vpack.c.bf16 %v283, %v282
      %v314 = vpack.c.bf16 %v285, %v284
      %v315 = vpack.c.bf16 %v287, %v286
      %v316 = vpack.c.bf16 %v289, %v288
      %v317 = vpack.c.bf16 %v291, %v290
      %v318 = vpack.c.bf16 %v293, %v292
      %v319 = vpack.c.bf16 %v295, %v294
      %v320 = vpack.c.bf16 %v297, %v296
      %v321 = vpack.c.bf16 %v299, %v298
      %v322 = vpack.c.bf16 %v301, %v300
      %v323 = vpack.c.bf16 %v303, %v302
      %v324 = vpack.c.bf16 %v305, %v304
      %v325 = vpack.c.bf16 %v307, %v306
      %v326 = vpack.c.bf16 %v309, %v308
      %v327 = vpack.c.bf16 %v311, %v310
      %v328 = vld [vmem:[%s1] sm:$0xf]
      %v329 = vld [vmem:[%s1 + $0x4] sm:$0xf]
      %v330 = vld [vmem:[%s1 + $0x8] sm:$0xf]
      %v331 = vld [vmem:[%s1 + $0xc] sm:$0xf]
      %v332 = vld [vmem:[%s1 + $0x10] sm:$0xf]
      %v333 = vld [vmem:[%s1 + $0x14] sm:$0xf]
      %v334 = vld [vmem:[%s1 + $0x18] sm:$0xf]
      %v335 = vld [vmem:[%s1 + $0x1c] sm:$0xf]
      %v336 = vld [vmem:[%s1 + $0x20] sm:$0xf]
      %v337 = vld [vmem:[%s1 + $0x24] sm:$0xf]
      %v338 = vld [vmem:[%s1 + $0x28] sm:$0xf]
      %v339 = vld [vmem:[%s1 + $0x2c] sm:$0xf]
      %v340 = vld [vmem:[%s1 + $0x30] sm:$0xf]
      %v341 = vld [vmem:[%s1 + $0x34] sm:$0xf]
      %v342 = vld [vmem:[%s1 + $0x38] sm:$0xf]
      %v343 = vld [vmem:[%s1 + $0x3c] sm:$0xf]
      %v344 = vld [vmem:[%s273 + $0x1] sm:$0xff]
      %v345 = vld [vmem:[%s273 + $0x9] sm:$0xff]
      %v346 = vld [vmem:[%s273 + $0x19] sm:$0xff]
      %v347 = vld [vmem:[%s273 + $0x21] sm:$0xff]
      %v348 = vld [vmem:[%s273 + $0x31] sm:$0xff]
      %v349 = vld [vmem:[%s273 + $0x39] sm:$0xff]
      %v350 = vld [vmem:[%s273 + $0x49] sm:$0xff]
      %v351 = vld [vmem:[%s273 + $0x51] sm:$0xff]
      %v352 = vld [vmem:[%s273 + $0x61] sm:$0xff]
      %v353 = vld [vmem:[%s273 + $0x69] sm:$0xff]
      %v354 = vld [vmem:[%s273 + $0x79] sm:$0xff]
      %v355 = vld [vmem:[%s273 + $0x81] sm:$0xff]
      %v356 = vld [vmem:[%s273 + $0x91] sm:$0xff]
      %v357 = vld [vmem:[%s273 + $0x99] sm:$0xff]
      %v358 = vld [vmem:[%s273 + $0xa9] sm:$0xff]
      %v359 = vld [vmem:[%s273 + $0xb1] sm:$0xff]
      %v360 = vld [vmem:[%s273 + $0xc1] sm:$0xff]
      %v361 = vld [vmem:[%s273 + $0xc9] sm:$0xff]
      %v362 = vld [vmem:[%s273 + $0xd9] sm:$0xff]
      %v363 = vld [vmem:[%s273 + $0xe1] sm:$0xff]
      %v364 = vld [vmem:[%s273 + $0xf1] sm:$0xff]
      %v365 = vld [vmem:[%s273 + $0xf9] sm:$0xff]
      %v366 = vld [vmem:[%s273 + $0x109] sm:$0xff]
      %v367 = vld [vmem:[%s273 + $0x111] sm:$0xff]
      %v368 = vld [vmem:[%s273 + $0x121] sm:$0xff]
      %v369 = vld [vmem:[%s273 + $0x129] sm:$0xff]
      %v370 = vld [vmem:[%s273 + $0x139] sm:$0xff]
      %v371 = vld [vmem:[%s273 + $0x141] sm:$0xff]
      %v372 = vld [vmem:[%s273 + $0x151] sm:$0xff]
      %v373 = vld [vmem:[%s273 + $0x159] sm:$0xff]
      %v374 = vld [vmem:[%s273 + $0x169] sm:$0xff]
      %v375 = vld [vmem:[%s273 + $0x171] sm:$0xff]
      %v376 = vpack.c.bf16 %v345, %v344
      %v377 = vpack.c.bf16 %v347, %v346
      %v378 = vpack.c.bf16 %v349, %v348
      %v379 = vpack.c.bf16 %v351, %v350
      %v380 = vpack.c.bf16 %v353, %v352
      %v381 = vpack.c.bf16 %v355, %v354
      %v382 = vpack.c.bf16 %v357, %v356
      %v383 = vpack.c.bf16 %v359, %v358
      %v384 = vpack.c.bf16 %v361, %v360
      %v385 = vpack.c.bf16 %v363, %v362
      %v386 = vpack.c.bf16 %v365, %v364
      %v387 = vpack.c.bf16 %v367, %v366
      %v388 = vpack.c.bf16 %v369, %v368
      %v389 = vpack.c.bf16 %v371, %v370
      %v390 = vpack.c.bf16 %v373, %v372
      %v391 = vpack.c.bf16 %v375, %v374
      %s392 = scalar_lea.vmem %s1, 64
      %v393 = vld [vmem:[%s392] sm:$0xf]
      %v394 = vld [vmem:[%s392 + $0x4] sm:$0xf]
      %v395 = vld [vmem:[%s392 + $0x8] sm:$0xf]
      %v396 = vld [vmem:[%s392 + $0xc] sm:$0xf]
      %v397 = vld [vmem:[%s392 + $0x10] sm:$0xf]
      %v398 = vld [vmem:[%s392 + $0x14] sm:$0xf]
      %v399 = vld [vmem:[%s392 + $0x18] sm:$0xf]
      %v400 = vld [vmem:[%s392 + $0x1c] sm:$0xf]
      %v401 = vld [vmem:[%s392 + $0x20] sm:$0xf]
      %v402 = vld [vmem:[%s392 + $0x24] sm:$0xf]
      %v403 = vld [vmem:[%s392 + $0x28] sm:$0xf]
      %v404 = vld [vmem:[%s392 + $0x2c] sm:$0xf]
      %v405 = vld [vmem:[%s392 + $0x30] sm:$0xf]
      %v406 = vld [vmem:[%s392 + $0x34] sm:$0xf]
      %v407 = vld [vmem:[%s392 + $0x38] sm:$0xf]
      %v408 = vld [vmem:[%s392 + $0x3c] sm:$0xf]
      %v425 = vunpack.c.l.b16 %v393
      %v426 = vunpack.c.l.b16 %v394
      %v427 = vunpack.c.l.b16 %v395
      %v428 = vunpack.c.l.b16 %v396
      %v429 = vunpack.c.l.b16 %v397
      %v430 = vunpack.c.l.b16 %v398
      %v431 = vunpack.c.l.b16 %v399
      %v432 = vunpack.c.l.b16 %v400
      %v433 = vunpack.c.l.b16 %v401
      %v434 = vunpack.c.l.b16 %v402
      %v435 = vunpack.c.l.b16 %v403
      %v436 = vunpack.c.l.b16 %v404
      %v437 = vunpack.c.l.b16 %v405
      %v438 = vunpack.c.l.b16 %v406
      %v439 = vunpack.c.l.b16 %v407
      %v440 = vunpack.c.l.b16 %v408
      %v441 = vpack.c.b16 %v426, %v425
      %v442 = vpack.c.b16 %v428, %v427
      %v443 = vpack.c.b16 %v430, %v429
      %v444 = vpack.c.b16 %v432, %v431
      %v445 = vpack.c.b16 %v434, %v433
      %v446 = vpack.c.b16 %v436, %v435
      %v447 = vpack.c.b16 %v438, %v437
      %v448 = vpack.c.b16 %v440, %v439
      %457 = vmatprep.subr.bf16.mxu0 0
      %458 = vmatpush1.bf16.msra.mxu0 %v441
      %459 = vmatprep.subr.bf16.mxu0 0
      %460 = vmatpush1.bf16.msra.mxu0 %v442
      %461 = vmatprep.subr.bf16.mxu0 0
      %462 = vmatpush1.bf16.msra.mxu0 %v443
      %463 = vmatprep.subr.bf16.mxu0 0
      %464 = vmatpush1.bf16.msra.mxu0 %v444
      %465 = vmatprep.subr.bf16.mxu0 0
      %466 = vmatpush1.bf16.msra.mxu0 %v445
      %467 = vmatprep.subr.bf16.mxu0 0
      %468 = vmatpush1.bf16.msra.mxu0 %v446
      %469 = vmatprep.subr.bf16.mxu0 0
      %470 = vmatpush1.bf16.msra.mxu0 %v447
      %471 = vmatprep.subr.bf16.mxu0 0
      %472 = vmatpush1.bf16.msra.mxu0 %v448
      %473 = vmatprep.subr.bf16.mxu0 0
      %474 = vmatpush1.bf16.msra.mxu0 0
      %475 = vmatprep.subr.bf16.mxu0 0
      %476 = vmatpush1.bf16.msra.mxu0 0
      %477 = vmatprep.subr.bf16.mxu0 0
      %478 = vmatpush1.bf16.msra.mxu0 0
      %479 = vmatprep.subr.bf16.mxu0 0
      %480 = vmatpush1.bf16.msra.mxu0 0
      %481 = vmatprep.subr.bf16.mxu0 0
      %482 = vmatpush1.bf16.msra.mxu0 0
      %483 = vmatprep.subr.bf16.mxu0 0
      %484 = vmatpush1.bf16.msra.mxu0 0
      %485 = vmatprep.subr.bf16.mxu0 0
      %486 = vmatpush1.bf16.msra.mxu0 0
      %487 = vmatprep.subr.bf16.mxu0 0
      %488 = vmatpush1.bf16.msra.mxu0 0
      %489 = vmatprep.mubr.bf16.mxu0 0
      %490 = vmatmul.mubr.bf16.gmra.mrb[0].mxu0 %v376
      %v491 = vpop.f32.mrb[0].mxu0
      %v492 = vadd.f32 0.0, %v491
      %v493 = vpop.f32.mrb[0].mxu0
      %v494 = vpop.f32.mrb[0].mxu0
      %v495 = vadd.f32 0.0, %v494
      %v496 = vpop.f32.mrb[0].mxu0
      %497 = vmatprep.mubr.bf16.mxu0 0
      %498 = vmatmul.mubr.bf16.gmra.mrb[0].mxu0 %v377
      %v499 = vpop.f32.mrb[0].mxu0
      %v500 = vadd.f32 0.0, %v499
      %v501 = vpop.f32.mrb[0].mxu0
      %v502 = vpop.f32.mrb[0].mxu0
      %v503 = vadd.f32 0.0, %v502
      %v504 = vpop.f32.mrb[0].mxu0
      %505 = vmatprep.mubr.bf16.mxu0 0
      %506 = vmatmul.mubr.bf16.gmra.mrb[0].mxu0 %v378
      %v507 = vpop.f32.mrb[0].mxu0
      %v508 = vadd.f32 0.0, %v507
      %v509 = vpop.f32.mrb[0].mxu0
      %v510 = vpop.f32.mrb[0].mxu0
      %v511 = vadd.f32 0.0, %v510
      %v512 = vpop.f32.mrb[0].mxu0
      %513 = vmatprep.mubr.bf16.mxu0 0
      %514 = vmatmul.mubr.bf16.gmra.mrb[0].mxu0 %v379
      %v515 = vpop.f32.mrb[0].mxu0
      %v516 = vadd.f32 0.0, %v515
      %v517 = vpop.f32.mrb[0].mxu0
      %v518 = vpop.f32.mrb[0].mxu0
      %v519 = vadd.f32 0.0, %v518
      %v520 = vpop.f32.mrb[0].mxu0
      %521 = vmatprep.mubr.bf16.mxu0 0
      %522 = vmatmul.mubr.bf16.gmra.mrb[0].mxu0 %v380
      %v523 = vpop.f32.mrb[0].mxu0
      %v524 = vadd.f32 0.0, %v523
      %v525 = vpop.f32.mrb[0].mxu0
      %v526 = vpop.f32.mrb[0].mxu0
      %v527 = vadd.f32 0.0, %v526
      %v528 = vpop.f32.mrb[0].mxu0
      %529 = vmatprep.mubr.bf16.mxu0 0
      %530 = vmatmul.mubr.bf16.gmra.mrb[0].mxu0 %v381
      %v531 = vpop.f32.mrb[0].mxu0
      %v532 = vadd.f32 0.0, %v531
      %v533 = vpop.f32.mrb[0].mxu0
      %v534 = vpop.f32.mrb[0].mxu0
      %v535 = vadd.f32 0.0, %v534
      %v536 = vpop.f32.mrb[0].mxu0
      %537 = vmatprep.mubr.bf16.mxu0 0
      %538 = vmatmul.mubr.bf16.gmra.mrb[0].mxu0 %v382
      %v539 = vpop.f32.mrb[0].mxu0
      %v540 = vadd.f32 0.0, %v539
      %v541 = vpop.f32.mrb[0].mxu0
      %v542 = vpop.f32.mrb[0].mxu0
      %v543 = vadd.f32 0.0, %v542
      %v544 = vpop.f32.mrb[0].mxu0
      %545 = vmatprep.mubr.bf16.mxu0 0
      %546 = vmatmul.mubr.bf16.gmra.mrb[0].mxu0 %v383
      %v547 = vpop.f32.mrb[0].mxu0
      %v548 = vadd.f32 0.0, %v547
      %v549 = vpop.f32.mrb[0].mxu0
      %v550 = vpop.f32.mrb[0].mxu0
      %v551 = vadd.f32 0.0, %v550
      %v552 = vpop.f32.mrb[0].mxu0
      %553 = vmatprep.mubr.bf16.mxu0 0
      %554 = vmatmul.mubr.bf16.gmra.mrb[0].mxu0 %v384
      %v555 = vpop.f32.mrb[0].mxu0
      %v556 = vadd.f32 0.0, %v555
      %v557 = vpop.f32.mrb[0].mxu0
      %v558 = vpop.f32.mrb[0].mxu0
      %v559 = vadd.f32 0.0, %v558
      %v560 = vpop.f32.mrb[0].mxu0
      %561 = vmatprep.mubr.bf16.mxu0 0
      %562 = vmatmul.mubr.bf16.gmra.mrb[0].mxu0 %v385
      %v563 = vpop.f32.mrb[0].mxu0
      %v564 = vadd.f32 0.0, %v563
      %v565 = vpop.f32.mrb[0].mxu0
      %v566 = vpop.f32.mrb[0].mxu0
      %v567 = vadd.f32 0.0, %v566
      %v568 = vpop.f32.mrb[0].mxu0
      %569 = vmatprep.mubr.bf16.mxu0 0
      %570 = vmatmul.mubr.bf16.gmra.mrb[0].mxu0 %v386
      %v571 = vpop.f32.mrb[0].mxu0
      %v572 = vadd.f32 0.0, %v571
      %v573 = vpop.f32.mrb[0].mxu0
      %v574 = vpop.f32.mrb[0].mxu0
      %v575 = vadd.f32 0.0, %v574
      %v576 = vpop.f32.mrb[0].mxu0
      %577 = vmatprep.mubr.bf16.mxu0 0
      %578 = vmatmul.mubr.bf16.gmra.mrb[0].mxu0 %v387
      %v579 = vpop.f32.mrb[0].mxu0
      %v580 = vadd.f32 0.0, %v579
      %v581 = vpop.f32.mrb[0].mxu0
      %v582 = vpop.f32.mrb[0].mxu0
      %v583 = vadd.f32 0.0, %v582
      %v584 = vpop.f32.mrb[0].mxu0
      %585 = vmatprep.mubr.bf16.mxu0 0
      %586 = vmatmul.mubr.bf16.gmra.mrb[0].mxu0 %v388
      %v587 = vpop.f32.mrb[0].mxu0
      %v588 = vadd.f32 0.0, %v587
      %v589 = vpop.f32.mrb[0].mxu0
      %v590 = vpop.f32.mrb[0].mxu0
      %v591 = vadd.f32 0.0, %v590
      %v592 = vpop.f32.mrb[0].mxu0
      %593 = vmatprep.mubr.bf16.mxu0 0
      %594 = vmatmul.mubr.bf16.gmra.mrb[0].mxu0 %v389
      %v595 = vpop.f32.mrb[0].mxu0
      %v596 = vadd.f32 0.0, %v595
      %v597 = vpop.f32.mrb[0].mxu0
      %v598 = vpop.f32.mrb[0].mxu0
      %v599 = vadd.f32 0.0, %v598
      %v600 = vpop.f32.mrb[0].mxu0
      %601 = vmatprep.mubr.bf16.mxu0 0
      %602 = vmatmul.mubr.bf16.gmra.mrb[0].mxu0 %v390
      %v603 = vpop.f32.mrb[0].mxu0
      %v604 = vadd.f32 0.0, %v603
      %v605 = vpop.f32.mrb[0].mxu0
      %v606 = vpop.f32.mrb[0].mxu0
      %v607 = vadd.f32 0.0, %v606
      %v608 = vpop.f32.mrb[0].mxu0
      %609 = vmatprep.mubr.bf16.mxu0 0
      %610 = vmatmul.mubr.bf16.gmra.mrb[0].mxu0 %v391
      %v611 = vpop.f32.mrb[0].mxu0
      %v612 = vadd.f32 0.0, %v611
      %v613 = vpop.f32.mrb[0].mxu0
      %v614 = vpop.f32.mrb[0].mxu0
      %v615 = vadd.f32 0.0, %v614
      %v616 = vpop.f32.mrb[0].mxu0
      %617 = vdwg.mxu0
      %v634 = vunpack.c.l.b16 %v328
      %v635 = vunpack.c.l.b16 %v329
      %v636 = vunpack.c.l.b16 %v330
      %v637 = vunpack.c.l.b16 %v331
      %v638 = vunpack.c.l.b16 %v332
      %v639 = vunpack.c.l.b16 %v333
      %v640 = vunpack.c.l.b16 %v334
      %v641 = vunpack.c.l.b16 %v335
      %v642 = vunpack.c.l.b16 %v336
      %v643 = vunpack.c.l.b16 %v337
      %v644 = vunpack.c.l.b16 %v338
      %v645 = vunpack.c.l.b16 %v339
      %v646 = vunpack.c.l.b16 %v340
      %v647 = vunpack.c.l.b16 %v341
      %v648 = vunpack.c.l.b16 %v342
      %v649 = vunpack.c.l.b16 %v343
      %v650 = vpack.c.b16 %v635, %v634
      %v651 = vpack.c.b16 %v637, %v636
      %v652 = vpack.c.b16 %v639, %v638
      %v653 = vpack.c.b16 %v641, %v640
      %v654 = vpack.c.b16 %v643, %v642
      %v655 = vpack.c.b16 %v645, %v644
      %v656 = vpack.c.b16 %v647, %v646
      %v657 = vpack.c.b16 %v649, %v648
      %666 = vmatprep.subr.bf16.mxu0 0
      %667 = vmatpush1.bf16.msra.mxu0 %v650
      %668 = vmatprep.subr.bf16.mxu0 0
      %669 = vmatpush1.bf16.msra.mxu0 %v651
      %670 = vmatprep.subr.bf16.mxu0 0
      %671 = vmatpush1.bf16.msra.mxu0 %v652
      %672 = vmatprep.subr.bf16.mxu0 0
      %673 = vmatpush1.bf16.msra.mxu0 %v653
      %674 = vmatprep.subr.bf16.mxu0 0
      %675 = vmatpush1.bf16.msra.mxu0 %v654
      %676 = vmatprep.subr.bf16.mxu0 0
      %677 = vmatpush1.bf16.msra.mxu0 %v655
      %678 = vmatprep.subr.bf16.mxu0 0
      %679 = vmatpush1.bf16.msra.mxu0 %v656
      %680 = vmatprep.subr.bf16.mxu0 0
      %681 = vmatpush1.bf16.msra.mxu0 %v657
      %682 = vmatprep.subr.bf16.mxu0 0
      %683 = vmatpush1.bf16.msra.mxu0 0
      %684 = vmatprep.subr.bf16.mxu0 0
      %685 = vmatpush1.bf16.msra.mxu0 0
      %686 = vmatprep.subr.bf16.mxu0 0
      %687 = vmatpush1.bf16.msra.mxu0 0
      %688 = vmatprep.subr.bf16.mxu0 0
      %689 = vmatpush1.bf16.msra.mxu0 0
      %690 = vmatprep.subr.bf16.mxu0 0
      %691 = vmatpush1.bf16.msra.mxu0 0
      %692 = vmatprep.subr.bf16.mxu0 0
      %693 = vmatpush1.bf16.msra.mxu0 0
      %694 = vmatprep.subr.bf16.mxu0 0
      %695 = vmatpush1.bf16.msra.mxu0 0
      %696 = vmatprep.subr.bf16.mxu0 0
      %697 = vmatpush1.bf16.msra.mxu0 0
      %698 = vmatprep.mubr.bf16.mxu0 0
      %699 = vmatmul.mubr.bf16.gmra.mrb[0].mxu0 %v312
      %v700 = vpop.f32.mrb[0].mxu0
      %v701 = vadd.f32 %v492, %v700
      %v702 = vpop.f32.mrb[0].mxu0
      %v703 = vpop.f32.mrb[0].mxu0
      %v704 = vadd.f32 %v495, %v703
      %v705 = vpop.f32.mrb[0].mxu0
      %706 = vmatprep.mubr.bf16.mxu0 0
      %707 = vmatmul.mubr.bf16.gmra.mrb[0].mxu0 %v313
      %v708 = vpop.f32.mrb[0].mxu0
      %v709 = vadd.f32 %v500, %v708
      %v710 = vpop.f32.mrb[0].mxu0
      %v711 = vpop.f32.mrb[0].mxu0
      %v712 = vadd.f32 %v503, %v711
      %v713 = vpop.f32.mrb[0].mxu0
      %714 = vmatprep.mubr.bf16.mxu0 0
      %715 = vmatmul.mubr.bf16.gmra.mrb[0].mxu0 %v314
      %v716 = vpop.f32.mrb[0].mxu0
      %v717 = vadd.f32 %v508, %v716
      %v718 = vpop.f32.mrb[0].mxu0
      %v719 = vpop.f32.mrb[0].mxu0
      %v720 = vadd.f32 %v511, %v719
      %v721 = vpop.f32.mrb[0].mxu0
      %722 = vmatprep.mubr.bf16.mxu0 0
      %723 = vmatmul.mubr.bf16.gmra.mrb[0].mxu0 %v315
      %v724 = vpop.f32.mrb[0].mxu0
      %v725 = vadd.f32 %v516, %v724
      %v726 = vpop.f32.mrb[0].mxu0
      %v727 = vpop.f32.mrb[0].mxu0
      %v728 = vadd.f32 %v519, %v727
      %v729 = vpop.f32.mrb[0].mxu0
      %730 = vmatprep.mubr.bf16.mxu0 0
      %731 = vmatmul.mubr.bf16.gmra.mrb[0].mxu0 %v316
      %v732 = vpop.f32.mrb[0].mxu0
      %v733 = vadd.f32 %v524, %v732
      %v734 = vpop.f32.mrb[0].mxu0
      %v735 = vpop.f32.mrb[0].mxu0
      %v736 = vadd.f32 %v527, %v735
      %v737 = vpop.f32.mrb[0].mxu0
      %738 = vmatprep.mubr.bf16.mxu0 0
      %739 = vmatmul.mubr.bf16.gmra.mrb[0].mxu0 %v317
      %v740 = vpop.f32.mrb[0].mxu0
      %v741 = vadd.f32 %v532, %v740
      %v742 = vpop.f32.mrb[0].mxu0
      %v743 = vpop.f32.mrb[0].mxu0
      %v744 = vadd.f32 %v535, %v743
      %v745 = vpop.f32.mrb[0].mxu0
      %746 = vmatprep.mubr.bf16.mxu0 0
      %747 = vmatmul.mubr.bf16.gmra.mrb[0].mxu0 %v318
      %v748 = vpop.f32.mrb[0].mxu0
      %v749 = vadd.f32 %v540, %v748
      %v750 = vpop.f32.mrb[0].mxu0
      %v751 = vpop.f32.mrb[0].mxu0
      %v752 = vadd.f32 %v543, %v751
      %v753 = vpop.f32.mrb[0].mxu0
      %754 = vmatprep.mubr.bf16.mxu0 0
      %755 = vmatmul.mubr.bf16.gmra.mrb[0].mxu0 %v319
      %v756 = vpop.f32.mrb[0].mxu0
      %v757 = vadd.f32 %v548, %v756
      %v758 = vpop.f32.mrb[0].mxu0
      %v759 = vpop.f32.mrb[0].mxu0
      %v760 = vadd.f32 %v551, %v759
      %v761 = vpop.f32.mrb[0].mxu0
      %762 = vmatprep.mubr.bf16.mxu0 0
      %763 = vmatmul.mubr.bf16.gmra.mrb[0].mxu0 %v320
      %v764 = vpop.f32.mrb[0].mxu0
      %v765 = vadd.f32 %v556, %v764
      %v766 = vpop.f32.mrb[0].mxu0
      %v767 = vpop.f32.mrb[0].mxu0
      %v768 = vadd.f32 %v559, %v767
      %v769 = vpop.f32.mrb[0].mxu0
      %770 = vmatprep.mubr.bf16.mxu0 0
      %771 = vmatmul.mubr.bf16.gmra.mrb[0].mxu0 %v321
      %v772 = vpop.f32.mrb[0].mxu0
      %v773 = vadd.f32 %v564, %v772
      %v774 = vpop.f32.mrb[0].mxu0
      %v775 = vpop.f32.mrb[0].mxu0
      %v776 = vadd.f32 %v567, %v775
      %v777 = vpop.f32.mrb[0].mxu0
      %778 = vmatprep.mubr.bf16.mxu0 0
      %779 = vmatmul.mubr.bf16.gmra.mrb[0].mxu0 %v322
      %v780 = vpop.f32.mrb[0].mxu0
      %v781 = vadd.f32 %v572, %v780
      %v782 = vpop.f32.mrb[0].mxu0
      %v783 = vpop.f32.mrb[0].mxu0
      %v784 = vadd.f32 %v575, %v783
      %v785 = vpop.f32.mrb[0].mxu0
      %786 = vmatprep.mubr.bf16.mxu0 0
      %787 = vmatmul.mubr.bf16.gmra.mrb[0].mxu0 %v323
      %v788 = vpop.f32.mrb[0].mxu0
      %v789 = vadd.f32 %v580, %v788
      %v790 = vpop.f32.mrb[0].mxu0
      %v791 = vpop.f32.mrb[0].mxu0
      %v792 = vadd.f32 %v583, %v791
      %v793 = vpop.f32.mrb[0].mxu0
      %794 = vmatprep.mubr.bf16.mxu0 0
      %795 = vmatmul.mubr.bf16.gmra.mrb[0].mxu0 %v324
      %v796 = vpop.f32.mrb[0].mxu0
      %v797 = vadd.f32 %v588, %v796
      %v798 = vpop.f32.mrb[0].mxu0
      %v799 = vpop.f32.mrb[0].mxu0
      %v800 = vadd.f32 %v591, %v799
      %v801 = vpop.f32.mrb[0].mxu0
      %802 = vmatprep.mubr.bf16.mxu0 0
      %803 = vmatmul.mubr.bf16.gmra.mrb[0].mxu0 %v325
      %v804 = vpop.f32.mrb[0].mxu0
      %v805 = vadd.f32 %v596, %v804
      %v806 = vpop.f32.mrb[0].mxu0
      %v807 = vpop.f32.mrb[0].mxu0
      %v808 = vadd.f32 %v599, %v807
      %v809 = vpop.f32.mrb[0].mxu0
      %810 = vmatprep.mubr.bf16.mxu0 0
      %811 = vmatmul.mubr.bf16.gmra.mrb[0].mxu0 %v326
      %v812 = vpop.f32.mrb[0].mxu0
      %v813 = vadd.f32 %v604, %v812
      %v814 = vpop.f32.mrb[0].mxu0
      %v815 = vpop.f32.mrb[0].mxu0
      %v816 = vadd.f32 %v607, %v815
      %v817 = vpop.f32.mrb[0].mxu0
      %818 = vmatprep.mubr.bf16.mxu0 0
      %819 = vmatmul.mubr.bf16.gmra.mrb[0].mxu0 %v327
      %v820 = vpop.f32.mrb[0].mxu0
      %v821 = vadd.f32 %v612, %v820
      %v822 = vpop.f32.mrb[0].mxu0
      %v823 = vpop.f32.mrb[0].mxu0
      %v824 = vadd.f32 %v615, %v823
      %v825 = vpop.f32.mrb[0].mxu0
      %826 = vdwg.mxu0
      %v827 = vld [vmem:[%s273 + $0x2] sm:$0xff]
      %v828 = vld [vmem:[%s273 + $0xa] sm:$0xff]
      %v829 = vld [vmem:[%s273 + $0x1a] sm:$0xff]
      %v830 = vld [vmem:[%s273 + $0x22] sm:$0xff]
      %v831 = vld [vmem:[%s273 + $0x32] sm:$0xff]
      %v832 = vld [vmem:[%s273 + $0x3a] sm:$0xff]
      %v833 = vld [vmem:[%s273 + $0x4a] sm:$0xff]
      %v834 = vld [vmem:[%s273 + $0x52] sm:$0xff]
      %v835 = vld [vmem:[%s273 + $0x62] sm:$0xff]
      %v836 = vld [vmem:[%s273 + $0x6a] sm:$0xff]
      %v837 = vld [vmem:[%s273 + $0x7a] sm:$0xff]
      %v838 = vld [vmem:[%s273 + $0x82] sm:$0xff]
      %v839 = vld [vmem:[%s273 + $0x92] sm:$0xff]
      %v840 = vld [vmem:[%s273 + $0x9a] sm:$0xff]
      %v841 = vld [vmem:[%s273 + $0xaa] sm:$0xff]
      %v842 = vld [vmem:[%s273 + $0xb2] sm:$0xff]
      %v843 = vld [vmem:[%s273 + $0xc2] sm:$0xff]
      %v844 = vld [vmem:[%s273 + $0xca] sm:$0xff]
      %v845 = vld [vmem:[%s273 + $0xda] sm:$0xff]
      %v846 = vld [vmem:[%s273 + $0xe2] sm:$0xff]
      %v847 = vld [vmem:[%s273 + $0xf2] sm:$0xff]
      %v848 = vld [vmem:[%s273 + $0xfa] sm:$0xff]
      %v849 = vld [vmem:[%s273 + $0x10a] sm:$0xff]
      %v850 = vld [vmem:[%s273 + $0x112] sm:$0xff]
      %v851 = vld [vmem:[%s273 + $0x122] sm:$0xff]
      %v852 = vld [vmem:[%s273 + $0x12a] sm:$0xff]
      %v853 = vld [vmem:[%s273 + $0x13a] sm:$0xff]
      %v854 = vld [vmem:[%s273 + $0x142] sm:$0xff]
      %v855 = vld [vmem:[%s273 + $0x152] sm:$0xff]
      %v856 = vld [vmem:[%s273 + $0x15a] sm:$0xff]
      %v857 = vld [vmem:[%s273 + $0x16a] sm:$0xff]
      %v858 = vld [vmem:[%s273 + $0x172] sm:$0xff]
      %v859 = vpack.c.bf16 %v828, %v827
      %v860 = vpack.c.bf16 %v830, %v829
      %v861 = vpack.c.bf16 %v832, %v831
      %v862 = vpack.c.bf16 %v834, %v833
      %v863 = vpack.c.bf16 %v836, %v835
      %v864 = vpack.c.bf16 %v838, %v837
      %v865 = vpack.c.bf16 %v840, %v839
      %v866 = vpack.c.bf16 %v842, %v841
      %v867 = vpack.c.bf16 %v844, %v843
      %v868 = vpack.c.bf16 %v846, %v845
      %v869 = vpack.c.bf16 %v848, %v847
      %v870 = vpack.c.bf16 %v850, %v849
      %v871 = vpack.c.bf16 %v852, %v851
      %v872 = vpack.c.bf16 %v854, %v853
      %v873 = vpack.c.bf16 %v856, %v855
      %v874 = vpack.c.bf16 %v858, %v857
      %s875 = scalar_lea.vmem %s1, 128
      %v876 = vld [vmem:[%s875] sm:$0xf]
      %v877 = vld [vmem:[%s875 + $0x4] sm:$0xf]
      %v878 = vld [vmem:[%s875 + $0x8] sm:$0xf]
      %v879 = vld [vmem:[%s875 + $0xc] sm:$0xf]
      %v880 = vld [vmem:[%s875 + $0x10] sm:$0xf]
      %v881 = vld [vmem:[%s875 + $0x14] sm:$0xf]
      %v882 = vld [vmem:[%s875 + $0x18] sm:$0xf]
      %v883 = vld [vmem:[%s875 + $0x1c] sm:$0xf]
      %v884 = vld [vmem:[%s875 + $0x20] sm:$0xf]
      %v885 = vld [vmem:[%s875 + $0x24] sm:$0xf]
      %v886 = vld [vmem:[%s875 + $0x28] sm:$0xf]
      %v887 = vld [vmem:[%s875 + $0x2c] sm:$0xf]
      %v888 = vld [vmem:[%s875 + $0x30] sm:$0xf]
      %v889 = vld [vmem:[%s875 + $0x34] sm:$0xf]
      %v890 = vld [vmem:[%s875 + $0x38] sm:$0xf]
      %v891 = vld [vmem:[%s875 + $0x3c] sm:$0xf]
      %v908 = vunpack.c.l.b16 %v876
      %v909 = vunpack.c.l.b16 %v877
      %v910 = vunpack.c.l.b16 %v878
      %v911 = vunpack.c.l.b16 %v879
      %v912 = vunpack.c.l.b16 %v880
      %v913 = vunpack.c.l.b16 %v881
      %v914 = vunpack.c.l.b16 %v882
      %v915 = vunpack.c.l.b16 %v883
      %v916 = vunpack.c.l.b16 %v884
      %v917 = vunpack.c.l.b16 %v885
      %v918 = vunpack.c.l.b16 %v886
      %v919 = vunpack.c.l.b16 %v887
      %v920 = vunpack.c.l.b16 %v888
      %v921 = vunpack.c.l.b16 %v889
      %v922 = vunpack.c.l.b16 %v890
      %v923 = vunpack.c.l.b16 %v891
      %v924 = vpack.c.b16 %v909, %v908
      %v925 = vpack.c.b16 %v911, %v910
      %v926 = vpack.c.b16 %v913, %v912
      %v927 = vpack.c.b16 %v915, %v914
      %v928 = vpack.c.b16 %v917, %v916
      %v929 = vpack.c.b16 %v919, %v918
      %v930 = vpack.c.b16 %v921, %v920
      %v931 = vpack.c.b16 %v923, %v922
      %940 = vmatprep.subr.bf16.mxu0 0
      %941 = vmatpush1.bf16.msra.mxu0 %v924
      %942 = vmatprep.subr.bf16.mxu0 0
      %943 = vmatpush1.bf16.msra.mxu0 %v925
      %944 = vmatprep.subr.bf16.mxu0 0
      %945 = vmatpush1.bf16.msra.mxu0 %v926
      %946 = vmatprep.subr.bf16.mxu0 0
      %947 = vmatpush1.bf16.msra.mxu0 %v927
      %948 = vmatprep.subr.bf16.mxu0 0
      %949 = vmatpush1.bf16.msra.mxu0 %v928
      %950 = vmatprep.subr.bf16.mxu0 0
      %951 = vmatpush1.bf16.msra.mxu0 %v929
      %952 = vmatprep.subr.bf16.mxu0 0
      %953 = vmatpush1.bf16.msra.mxu0 %v930
      %954 = vmatprep.subr.bf16.mxu0 0
      %955 = vmatpush1.bf16.msra.mxu0 %v931
      %956 = vmatprep.subr.bf16.mxu0 0
      %957 = vmatpush1.bf16.msra.mxu0 0
      %958 = vmatprep.subr.bf16.mxu0 0
      %959 = vmatpush1.bf16.msra.mxu0 0
      %960 = vmatprep.subr.bf16.mxu0 0
      %961 = vmatpush1.bf16.msra.mxu0 0
      %962 = vmatprep.subr.bf16.mxu0 0
      %963 = vmatpush1.bf16.msra.mxu0 0
      %964 = vmatprep.subr.bf16.mxu0 0
      %965 = vmatpush1.bf16.msra.mxu0 0
      %966 = vmatprep.subr.bf16.mxu0 0
      %967 = vmatpush1.bf16.msra.mxu0 0
      %968 = vmatprep.subr.bf16.mxu0 0
      %969 = vmatpush1.bf16.msra.mxu0 0
      %970 = vmatprep.subr.bf16.mxu0 0
      %971 = vmatpush1.bf16.msra.mxu0 0
      %972 = vmatprep.mubr.bf16.mxu0 0
      %973 = vmatmul.mubr.bf16.gmra.mrb[0].mxu0 %v859
      %v974 = vpop.f32.mrb[0].mxu0
      %v975 = vadd.f32 0.0, %v974
      %v976 = vpop.f32.mrb[0].mxu0
      %v977 = vpop.f32.mrb[0].mxu0
      %v978 = vadd.f32 0.0, %v977
      %v979 = vpop.f32.mrb[0].mxu0
      %980 = vmatprep.mubr.bf16.mxu0 0
      %981 = vmatmul.mubr.bf16.gmra.mrb[0].mxu0 %v860
      %v982 = vpop.f32.mrb[0].mxu0
      %v983 = vadd.f32 0.0, %v982
      %v984 = vpop.f32.mrb[0].mxu0
      %v985 = vpop.f32.mrb[0].mxu0
      %v986 = vadd.f32 0.0, %v985
      %v987 = vpop.f32.mrb[0].mxu0
      %988 = vmatprep.mubr.bf16.mxu0 0
      %989 = vmatmul.mubr.bf16.gmra.mrb[0].mxu0 %v861
      %v990 = vpop.f32.mrb[0].mxu0
      %v991 = vadd.f32 0.0, %v990
      %v992 = vpop.f32.mrb[0].mxu0
      %v993 = vpop.f32.mrb[0].mxu0
      %v994 = vadd.f32 0.0, %v993
      %v995 = vpop.f32.mrb[0].mxu0
      %996 = vmatprep.mubr.bf16.mxu0 0
      %997 = vmatmul.mubr.bf16.gmra.mrb[0].mxu0 %v862
      %v998 = vpop.f32.mrb[0].mxu0
      %v999 = vadd.f32 0.0, %v998
      %v1000 = vpop.f32.mrb[0].mxu0
      %v1001 = vpop.f32.mrb[0].mxu0
      %v1002 = vadd.f32 0.0, %v1001
      %v1003 = vpop.f32.mrb[0].mxu0
      %1004 = vmatprep.mubr.bf16.mxu0 0
      %1005 = vmatmul.mubr.bf16.gmra.mrb[0].mxu0 %v863
      %v1006 = vpop.f32.mrb[0].mxu0
      %v1007 = vadd.f32 0.0, %v1006
      %v1008 = vpop.f32.mrb[0].mxu0
      %v1009 = vpop.f32.mrb[0].mxu0
      %v1010 = vadd.f32 0.0, %v1009
      %v1011 = vpop.f32.mrb[0].mxu0
      %1012 = vmatprep.mubr.bf16.mxu0 0
      %1013 = vmatmul.mubr.bf16.gmra.mrb[0].mxu0 %v864
      %v1014 = vpop.f32.mrb[0].mxu0
      %v1015 = vadd.f32 0.0, %v1014
      %v1016 = vpop.f32.mrb[0].mxu0
      %v1017 = vpop.f32.mrb[0].mxu0
      %v1018 = vadd.f32 0.0, %v1017
      %v1019 = vpop.f32.mrb[0].mxu0
      %1020 = vmatprep.mubr.bf16.mxu0 0
      %1021 = vmatmul.mubr.bf16.gmra.mrb[0].mxu0 %v865
      %v1022 = vpop.f32.mrb[0].mxu0
      %v1023 = vadd.f32 0.0, %v1022
      %v1024 = vpop.f32.mrb[0].mxu0
      %v1025 = vpop.f32.mrb[0].mxu0
      %v1026 = vadd.f32 0.0, %v1025
      %v1027 = vpop.f32.mrb[0].mxu0
      %1028 = vmatprep.mubr.bf16.mxu0 0
      %1029 = vmatmul.mubr.bf16.gmra.mrb[0].mxu0 %v866
      %v1030 = vpop.f32.mrb[0].mxu0
      %v1031 = vadd.f32 0.0, %v1030
      %v1032 = vpop.f32.mrb[0].mxu0
      %v1033 = vpop.f32.mrb[0].mxu0
      %v1034 = vadd.f32 0.0, %v1033
      %v1035 = vpop.f32.mrb[0].mxu0
      %1036 = vmatprep.mubr.bf16.mxu0 0
      %1037 = vmatmul.mubr.bf16.gmra.mrb[0].mxu0 %v867
      %v1038 = vpop.f32.mrb[0].mxu0
      %v1039 = vadd.f32 0.0, %v1038
      %v1040 = vpop.f32.mrb[0].mxu0
      %v1041 = vpop.f32.mrb[0].mxu0
      %v1042 = vadd.f32 0.0, %v1041
      %v1043 = vpop.f32.mrb[0].mxu0
      %1044 = vmatprep.mubr.bf16.mxu0 0
      %1045 = vmatmul.mubr.bf16.gmra.mrb[0].mxu0 %v868
      %v1046 = vpop.f32.mrb[0].mxu0
      %v1047 = vadd.f32 0.0, %v1046
      %v1048 = vpop.f32.mrb[0].mxu0
      %v1049 = vpop.f32.mrb[0].mxu0
      %v1050 = vadd.f32 0.0, %v1049
      %v1051 = vpop.f32.mrb[0].mxu0
      %1052 = vmatprep.mubr.bf16.mxu0 0
      %1053 = vmatmul.mubr.bf16.gmra.mrb[0].mxu0 %v869
      %v1054 = vpop.f32.mrb[0].mxu0
      %v1055 = vadd.f32 0.0, %v1054
      %v1056 = vpop.f32.mrb[0].mxu0
      %v1057 = vpop.f32.mrb[0].mxu0
      %v1058 = vadd.f32 0.0, %v1057
      %v1059 = vpop.f32.mrb[0].mxu0
      %1060 = vmatprep.mubr.bf16.mxu0 0
      %1061 = vmatmul.mubr.bf16.gmra.mrb[0].mxu0 %v870
      %v1062 = vpop.f32.mrb[0].mxu0
      %v1063 = vadd.f32 0.0, %v1062
      %v1064 = vpop.f32.mrb[0].mxu0
      %v1065 = vpop.f32.mrb[0].mxu0
      %v1066 = vadd.f32 0.0, %v1065
      %v1067 = vpop.f32.mrb[0].mxu0
      %1068 = vmatprep.mubr.bf16.mxu0 0
      %1069 = vmatmul.mubr.bf16.gmra.mrb[0].mxu0 %v871
      %v1070 = vpop.f32.mrb[0].mxu0
      %v1071 = vadd.f32 0.0, %v1070
      %v1072 = vpop.f32.mrb[0].mxu0
      %v1073 = vpop.f32.mrb[0].mxu0
      %v1074 = vadd.f32 0.0, %v1073
      %v1075 = vpop.f32.mrb[0].mxu0
      %1076 = vmatprep.mubr.bf16.mxu0 0
      %1077 = vmatmul.mubr.bf16.gmra.mrb[0].mxu0 %v872
      %v1078 = vpop.f32.mrb[0].mxu0
      %v1079 = vadd.f32 0.0, %v1078
      %v1080 = vpop.f32.mrb[0].mxu0
      %v1081 = vpop.f32.mrb[0].mxu0
      %v1082 = vadd.f32 0.0, %v1081
      %v1083 = vpop.f32.mrb[0].mxu0
      %1084 = vmatprep.mubr.bf16.mxu0 0
      %1085 = vmatmul.mubr.bf16.gmra.mrb[0].mxu0 %v873
      %v1086 = vpop.f32.mrb[0].mxu0
      %v1087 = vadd.f32 0.0, %v1086
      %v1088 = vpop.f32.mrb[0].mxu0
      %v1089 = vpop.f32.mrb[0].mxu0
      %v1090 = vadd.f32 0.0, %v1089
      %v1091 = vpop.f32.mrb[0].mxu0
      %1092 = vmatprep.mubr.bf16.mxu0 0
      %1093 = vmatmul.mubr.bf16.gmra.mrb[0].mxu0 %v874
      %v1094 = vpop.f32.mrb[0].mxu0
      %v1095 = vadd.f32 0.0, %v1094
      %v1096 = vpop.f32.mrb[0].mxu0
      %v1097 = vpop.f32.mrb[0].mxu0
      %v1098 = vadd.f32 0.0, %v1097
      %v1099 = vpop.f32.mrb[0].mxu0
      %1100 = vdwg.mxu0
      %v1101 = vadd.f32 %v701, %v975
      %v1102 = vadd.f32 %v704, %v978
      %v1103 = vadd.f32 %v709, %v983
      %v1104 = vadd.f32 %v712, %v986
      %v1105 = vadd.f32 %v717, %v991
      %v1106 = vadd.f32 %v720, %v994
      %v1107 = vadd.f32 %v725, %v999
      %v1108 = vadd.f32 %v728, %v1002
      %v1109 = vadd.f32 %v733, %v1007
      %v1110 = vadd.f32 %v736, %v1010
      %v1111 = vadd.f32 %v741, %v1015
      %v1112 = vadd.f32 %v744, %v1018
      %v1113 = vadd.f32 %v749, %v1023
      %v1114 = vadd.f32 %v752, %v1026
      %v1115 = vadd.f32 %v757, %v1031
      %v1116 = vadd.f32 %v760, %v1034
      %v1117 = vadd.f32 %v765, %v1039
      %v1118 = vadd.f32 %v768, %v1042
      %v1119 = vadd.f32 %v773, %v1047
      %v1120 = vadd.f32 %v776, %v1050
      %v1121 = vadd.f32 %v781, %v1055
      %v1122 = vadd.f32 %v784, %v1058
      %v1123 = vadd.f32 %v789, %v1063
      %v1124 = vadd.f32 %v792, %v1066
      %v1125 = vadd.f32 %v797, %v1071
      %v1126 = vadd.f32 %v800, %v1074
      %v1127 = vadd.f32 %v805, %v1079
      %v1128 = vadd.f32 %v808, %v1082
      %v1129 = vadd.f32 %v813, %v1087
      %v1130 = vadd.f32 %v816, %v1090
      %v1131 = vadd.f32 %v821, %v1095
      %v1132 = vadd.f32 %v824, %v1098
      %s1133 = scalar_lea.vmem %s273, 24
      %v1134 = vld [vmem:[%s1133] sm:$0xff]
      %v1135 = vld [vmem:[%s1133 + $0x8] sm:$0xff]
      %v1136 = vld [vmem:[%s1133 + $0x18] sm:$0xff]
      %v1137 = vld [vmem:[%s1133 + $0x20] sm:$0xff]
      %v1138 = vld [vmem:[%s1133 + $0x30] sm:$0xff]
      %v1139 = vld [vmem:[%s1133 + $0x38] sm:$0xff]
      %v1140 = vld [vmem:[%s1133 + $0x48] sm:$0xff]
      %v1141 = vld [vmem:[%s1133 + $0x50] sm:$0xff]
      %v1142 = vld [vmem:[%s1133 + $0x60] sm:$0xff]
      %v1143 = vld [vmem:[%s1133 + $0x68] sm:$0xff]
      %v1144 = vld [vmem:[%s1133 + $0x78] sm:$0xff]
      %v1145 = vld [vmem:[%s1133 + $0x80] sm:$0xff]
      %v1146 = vld [vmem:[%s1133 + $0x90] sm:$0xff]
      %v1147 = vld [vmem:[%s1133 + $0x98] sm:$0xff]
      %v1148 = vld [vmem:[%s1133 + $0xa8] sm:$0xff]
      %v1149 = vld [vmem:[%s1133 + $0xb0] sm:$0xff]
      %v1150 = vld [vmem:[%s1133 + $0xc0] sm:$0xff]
      %v1151 = vld [vmem:[%s1133 + $0xc8] sm:$0xff]
      %v1152 = vld [vmem:[%s1133 + $0xd8] sm:$0xff]
      %v1153 = vld [vmem:[%s1133 + $0xe0] sm:$0xff]
      %v1154 = vld [vmem:[%s1133 + $0xf0] sm:$0xff]
      %v1155 = vld [vmem:[%s1133 + $0xf8] sm:$0xff]
      %v1156 = vld [vmem:[%s1133 + $0x108] sm:$0xff]
      %v1157 = vld [vmem:[%s1133 + $0x110] sm:$0xff]
      %v1158 = vld [vmem:[%s1133 + $0x120] sm:$0xff]
      %v1159 = vld [vmem:[%s1133 + $0x128] sm:$0xff]
      %v1160 = vld [vmem:[%s1133 + $0x138] sm:$0xff]
      %v1161 = vld [vmem:[%s1133 + $0x140] sm:$0xff]
      %v1162 = vld [vmem:[%s1133 + $0x150] sm:$0xff]
      %v1163 = vld [vmem:[%s1133 + $0x158] sm:$0xff]
      %v1164 = vld [vmem:[%s1133 + $0x168] sm:$0xff]
      %v1165 = vld [vmem:[%s1133 + $0x170] sm:$0xff]
      %v1166 = vpack.c.bf16 %v1135, %v1134
      %v1167 = vpack.c.bf16 %v1137, %v1136
      %v1168 = vpack.c.bf16 %v1139, %v1138
      %v1169 = vpack.c.bf16 %v1141, %v1140
      %v1170 = vpack.c.bf16 %v1143, %v1142
      %v1171 = vpack.c.bf16 %v1145, %v1144
      %v1172 = vpack.c.bf16 %v1147, %v1146
      %v1173 = vpack.c.bf16 %v1149, %v1148
      %v1174 = vpack.c.bf16 %v1151, %v1150
      %v1175 = vpack.c.bf16 %v1153, %v1152
      %v1176 = vpack.c.bf16 %v1155, %v1154
      %v1177 = vpack.c.bf16 %v1157, %v1156
      %v1178 = vpack.c.bf16 %v1159, %v1158
      %v1179 = vpack.c.bf16 %v1161, %v1160
      %v1180 = vpack.c.bf16 %v1163, %v1162
      %v1181 = vpack.c.bf16 %v1165, %v1164
      %s1182 = scalar_lea.vmem %s1, 192
      %v1183 = vld [vmem:[%s1182] sm:$0xf]
      %v1184 = vld [vmem:[%s1182 + $0x4] sm:$0xf]
      %v1185 = vld [vmem:[%s1182 + $0x8] sm:$0xf]
      %v1186 = vld [vmem:[%s1182 + $0xc] sm:$0xf]
      %v1187 = vld [vmem:[%s1182 + $0x10] sm:$0xf]
      %v1188 = vld [vmem:[%s1182 + $0x14] sm:$0xf]
      %v1189 = vld [vmem:[%s1182 + $0x18] sm:$0xf]
      %v1190 = vld [vmem:[%s1182 + $0x1c] sm:$0xf]
      %v1191 = vld [vmem:[%s1182 + $0x20] sm:$0xf]
      %v1192 = vld [vmem:[%s1182 + $0x24] sm:$0xf]
      %v1193 = vld [vmem:[%s1182 + $0x28] sm:$0xf]
      %v1194 = vld [vmem:[%s1182 + $0x2c] sm:$0xf]
      %v1195 = vld [vmem:[%s1182 + $0x30] sm:$0xf]
      %v1196 = vld [vmem:[%s1182 + $0x34] sm:$0xf]
      %v1197 = vld [vmem:[%s1182 + $0x38] sm:$0xf]
      %v1198 = vld [vmem:[%s1182 + $0x3c] sm:$0xf]
      %v1215 = vunpack.c.l.b16 %v1183
      %v1216 = vunpack.c.l.b16 %v1184
      %v1217 = vunpack.c.l.b16 %v1185
      %v1218 = vunpack.c.l.b16 %v1186
      %v1219 = vunpack.c.l.b16 %v1187
      %v1220 = vunpack.c.l.b16 %v1188
      %v1221 = vunpack.c.l.b16 %v1189
      %v1222 = vunpack.c.l.b16 %v1190
      %v1223 = vunpack.c.l.b16 %v1191
      %v1224 = vunpack.c.l.b16 %v1192
      %v1225 = vunpack.c.l.b16 %v1193
      %v1226 = vunpack.c.l.b16 %v1194
      %v1227 = vunpack.c.l.b16 %v1195
      %v1228 = vunpack.c.l.b16 %v1196
      %v1229 = vunpack.c.l.b16 %v1197
      %v1230 = vunpack.c.l.b16 %v1198
      %v1231 = vpack.c.b16 %v1216, %v1215
      %v1232 = vpack.c.b16 %v1218, %v1217
      %v1233 = vpack.c.b16 %v1220, %v1219
      %v1234 = vpack.c.b16 %v1222, %v1221
      %v1235 = vpack.c.b16 %v1224, %v1223
      %v1236 = vpack.c.b16 %v1226, %v1225
      %v1237 = vpack.c.b16 %v1228, %v1227
      %v1238 = vpack.c.b16 %v1230, %v1229
      %1247 = vmatprep.subr.bf16.mxu0 0
      %1248 = vmatpush1.bf16.msra.mxu0 %v1231
      %1249 = vmatprep.subr.bf16.mxu0 0
      %1250 = vmatpush1.bf16.msra.mxu0 %v1232
      %1251 = vmatprep.subr.bf16.mxu0 0
      %1252 = vmatpush1.bf16.msra.mxu0 %v1233
      %1253 = vmatprep.subr.bf16.mxu0 0
      %1254 = vmatpush1.bf16.msra.mxu0 %v1234
      %1255 = vmatprep.subr.bf16.mxu0 0
      %1256 = vmatpush1.bf16.msra.mxu0 %v1235
      %1257 = vmatprep.subr.bf16.mxu0 0
      %1258 = vmatpush1.bf16.msra.mxu0 %v1236
      %1259 = vmatprep.subr.bf16.mxu0 0
      %1260 = vmatpush1.bf16.msra.mxu0 %v1237
      %1261 = vmatprep.subr.bf16.mxu0 0
      %1262 = vmatpush1.bf16.msra.mxu0 %v1238
      %1263 = vmatprep.subr.bf16.mxu0 0
      %1264 = vmatpush1.bf16.msra.mxu0 0
      %1265 = vmatprep.subr.bf16.mxu0 0
      %1266 = vmatpush1.bf16.msra.mxu0 0
      %1267 = vmatprep.subr.bf16.mxu0 0
      %1268 = vmatpush1.bf16.msra.mxu0 0
      %1269 = vmatprep.subr.bf16.mxu0 0
      %1270 = vmatpush1.bf16.msra.mxu0 0
      %1271 = vmatprep.subr.bf16.mxu0 0
      %1272 = vmatpush1.bf16.msra.mxu0 0
      %1273 = vmatprep.subr.bf16.mxu0 0
      %1274 = vmatpush1.bf16.msra.mxu0 0
      %1275 = vmatprep.subr.bf16.mxu0 0
      %1276 = vmatpush1.bf16.msra.mxu0 0
      %1277 = vmatprep.subr.bf16.mxu0 0
      %1278 = vmatpush1.bf16.msra.mxu0 0
      %1279 = vmatprep.mubr.bf16.mxu0 0
      %1280 = vmatmul.mubr.bf16.gmra.mrb[0].mxu0 %v1166
      %v1281 = vpop.f32.mrb[0].mxu0
      %v1282 = vadd.f32 0.0, %v1281
      %v1283 = vpop.f32.mrb[0].mxu0
      %v1284 = vpop.f32.mrb[0].mxu0
      %v1285 = vadd.f32 0.0, %v1284
      %v1286 = vpop.f32.mrb[0].mxu0
      %1287 = vmatprep.mubr.bf16.mxu0 0
      %1288 = vmatmul.mubr.bf16.gmra.mrb[0].mxu0 %v1167
      %v1289 = vpop.f32.mrb[0].mxu0
      %v1290 = vadd.f32 0.0, %v1289
      %v1291 = vpop.f32.mrb[0].mxu0
      %v1292 = vpop.f32.mrb[0].mxu0
      %v1293 = vadd.f32 0.0, %v1292
      %v1294 = vpop.f32.mrb[0].mxu0
      %1295 = vmatprep.mubr.bf16.mxu0 0
      %1296 = vmatmul.mubr.bf16.gmra.mrb[0].mxu0 %v1168
      %v1297 = vpop.f32.mrb[0].mxu0
      %v1298 = vadd.f32 0.0, %v1297
      %v1299 = vpop.f32.mrb[0].mxu0
      %v1300 = vpop.f32.mrb[0].mxu0
      %v1301 = vadd.f32 0.0, %v1300
      %v1302 = vpop.f32.mrb[0].mxu0
      %1303 = vmatprep.mubr.bf16.mxu0 0
      %1304 = vmatmul.mubr.bf16.gmra.mrb[0].mxu0 %v1169
      %v1305 = vpop.f32.mrb[0].mxu0
      %v1306 = vadd.f32 0.0, %v1305
      %v1307 = vpop.f32.mrb[0].mxu0
      %v1308 = vpop.f32.mrb[0].mxu0
      %v1309 = vadd.f32 0.0, %v1308
      %v1310 = vpop.f32.mrb[0].mxu0
      %1311 = vmatprep.mubr.bf16.mxu0 0
      %1312 = vmatmul.mubr.bf16.gmra.mrb[0].mxu0 %v1170
      %v1313 = vpop.f32.mrb[0].mxu0
      %v1314 = vadd.f32 0.0, %v1313
      %v1315 = vpop.f32.mrb[0].mxu0
      %v1316 = vpop.f32.mrb[0].mxu0
      %v1317 = vadd.f32 0.0, %v1316
      %v1318 = vpop.f32.mrb[0].mxu0
      %1319 = vmatprep.mubr.bf16.mxu0 0
      %1320 = vmatmul.mubr.bf16.gmra.mrb[0].mxu0 %v1171
      %v1321 = vpop.f32.mrb[0].mxu0
      %v1322 = vadd.f32 0.0, %v1321
      %v1323 = vpop.f32.mrb[0].mxu0
      %v1324 = vpop.f32.mrb[0].mxu0
      %v1325 = vadd.f32 0.0, %v1324
      %v1326 = vpop.f32.mrb[0].mxu0
      %1327 = vmatprep.mubr.bf16.mxu0 0
      %1328 = vmatmul.mubr.bf16.gmra.mrb[0].mxu0 %v1172
      %v1329 = vpop.f32.mrb[0].mxu0
      %v1330 = vadd.f32 0.0, %v1329
      %v1331 = vpop.f32.mrb[0].mxu0
      %v1332 = vpop.f32.mrb[0].mxu0
      %v1333 = vadd.f32 0.0, %v1332
      %v1334 = vpop.f32.mrb[0].mxu0
      %1335 = vmatprep.mubr.bf16.mxu0 0
      %1336 = vmatmul.mubr.bf16.gmra.mrb[0].mxu0 %v1173
      %v1337 = vpop.f32.mrb[0].mxu0
      %v1338 = vadd.f32 0.0, %v1337
      %v1339 = vpop.f32.mrb[0].mxu0
      %v1340 = vpop.f32.mrb[0].mxu0
      %v1341 = vadd.f32 0.0, %v1340
      %v1342 = vpop.f32.mrb[0].mxu0
      %1343 = vmatprep.mubr.bf16.mxu0 0
      %1344 = vmatmul.mubr.bf16.gmra.mrb[0].mxu0 %v1174
      %v1345 = vpop.f32.mrb[0].mxu0
      %v1346 = vadd.f32 0.0, %v1345
      %v1347 = vpop.f32.mrb[0].mxu0
      %v1348 = vpop.f32.mrb[0].mxu0
      %v1349 = vadd.f32 0.0, %v1348
      %v1350 = vpop.f32.mrb[0].mxu0
      %1351 = vmatprep.mubr.bf16.mxu0 0
      %1352 = vmatmul.mubr.bf16.gmra.mrb[0].mxu0 %v1175
      %v1353 = vpop.f32.mrb[0].mxu0
      %v1354 = vadd.f32 0.0, %v1353
      %v1355 = vpop.f32.mrb[0].mxu0
      %v1356 = vpop.f32.mrb[0].mxu0
      %v1357 = vadd.f32 0.0, %v1356
      %v1358 = vpop.f32.mrb[0].mxu0
      %1359 = vmatprep.mubr.bf16.mxu0 0
      %1360 = vmatmul.mubr.bf16.gmra.mrb[0].mxu0 %v1176
      %v1361 = vpop.f32.mrb[0].mxu0
      %v1362 = vadd.f32 0.0, %v1361
      %v1363 = vpop.f32.mrb[0].mxu0
      %v1364 = vpop.f32.mrb[0].mxu0
      %v1365 = vadd.f32 0.0, %v1364
      %v1366 = vpop.f32.mrb[0].mxu0
      %1367 = vmatprep.mubr.bf16.mxu0 0
      %1368 = vmatmul.mubr.bf16.gmra.mrb[0].mxu0 %v1177
      %v1369 = vpop.f32.mrb[0].mxu0
      %v1370 = vadd.f32 0.0, %v1369
      %v1371 = vpop.f32.mrb[0].mxu0
      %v1372 = vpop.f32.mrb[0].mxu0
      %v1373 = vadd.f32 0.0, %v1372
      %v1374 = vpop.f32.mrb[0].mxu0
      %1375 = vmatprep.mubr.bf16.mxu0 0
      %1376 = vmatmul.mubr.bf16.gmra.mrb[0].mxu0 %v1178
      %v1377 = vpop.f32.mrb[0].mxu0
      %v1378 = vadd.f32 0.0, %v1377
      %v1379 = vpop.f32.mrb[0].mxu0
      %v1380 = vpop.f32.mrb[0].mxu0
      %v1381 = vadd.f32 0.0, %v1380
      %v1382 = vpop.f32.mrb[0].mxu0
      %1383 = vmatprep.mubr.bf16.mxu0 0
      %1384 = vmatmul.mubr.bf16.gmra.mrb[0].mxu0 %v1179
      %v1385 = vpop.f32.mrb[0].mxu0
      %v1386 = vadd.f32 0.0, %v1385
      %v1387 = vpop.f32.mrb[0].mxu0
      %v1388 = vpop.f32.mrb[0].mxu0
      %v1389 = vadd.f32 0.0, %v1388
      %v1390 = vpop.f32.mrb[0].mxu0
      %1391 = vmatprep.mubr.bf16.mxu0 0
      %1392 = vmatmul.mubr.bf16.gmra.mrb[0].mxu0 %v1180
      %v1393 = vpop.f32.mrb[0].mxu0
      %v1394 = vadd.f32 0.0, %v1393
      %v1395 = vpop.f32.mrb[0].mxu0
      %v1396 = vpop.f32.mrb[0].mxu0
      %v1397 = vadd.f32 0.0, %v1396
      %v1398 = vpop.f32.mrb[0].mxu0
      %1399 = vmatprep.mubr.bf16.mxu0 0
      %1400 = vmatmul.mubr.bf16.gmra.mrb[0].mxu0 %v1181
      %v1401 = vpop.f32.mrb[0].mxu0
      %v1402 = vadd.f32 0.0, %v1401
      %v1403 = vpop.f32.mrb[0].mxu0
      %v1404 = vpop.f32.mrb[0].mxu0
      %v1405 = vadd.f32 0.0, %v1404
      %v1406 = vpop.f32.mrb[0].mxu0
      %1407 = vdwg.mxu0
      %v1408 = vadd.f32 %v1101, %v1282
      %v1409 = vadd.f32 %v1102, %v1285
      %v1410 = vadd.f32 %v1103, %v1290
      %v1411 = vadd.f32 %v1104, %v1293
      %v1412 = vadd.f32 %v1105, %v1298
      %v1413 = vadd.f32 %v1106, %v1301
      %v1414 = vadd.f32 %v1107, %v1306
      %v1415 = vadd.f32 %v1108, %v1309
      %v1416 = vadd.f32 %v1109, %v1314
      %v1417 = vadd.f32 %v1110, %v1317
      %v1418 = vadd.f32 %v1111, %v1322
      %v1419 = vadd.f32 %v1112, %v1325
      %v1420 = vadd.f32 %v1113, %v1330
      %v1421 = vadd.f32 %v1114, %v1333
      %v1422 = vadd.f32 %v1115, %v1338
      %v1423 = vadd.f32 %v1116, %v1341
      %v1424 = vadd.f32 %v1117, %v1346
      %v1425 = vadd.f32 %v1118, %v1349
      %v1426 = vadd.f32 %v1119, %v1354
      %v1427 = vadd.f32 %v1120, %v1357
      %v1428 = vadd.f32 %v1121, %v1362
      %v1429 = vadd.f32 %v1122, %v1365
      %v1430 = vadd.f32 %v1123, %v1370
      %v1431 = vadd.f32 %v1124, %v1373
      %v1432 = vadd.f32 %v1125, %v1378
      %v1433 = vadd.f32 %v1126, %v1381
      %v1434 = vadd.f32 %v1127, %v1386
      %v1435 = vadd.f32 %v1128, %v1389
      %v1436 = vadd.f32 %v1129, %v1394
      %v1437 = vadd.f32 %v1130, %v1397
      %v1438 = vadd.f32 %v1131, %v1402
      %v1439 = vadd.f32 %v1132, %v1405
      %v1440 = vld [vmem:[%s1133 + $0x1] sm:$0xff]
      %v1441 = vld [vmem:[%s1133 + $0x9] sm:$0xff]
      %v1442 = vld [vmem:[%s1133 + $0x19] sm:$0xff]
      %v1443 = vld [vmem:[%s1133 + $0x21] sm:$0xff]
      %v1444 = vld [vmem:[%s1133 + $0x31] sm:$0xff]
      %v1445 = vld [vmem:[%s1133 + $0x39] sm:$0xff]
      %v1446 = vld [vmem:[%s1133 + $0x49] sm:$0xff]
      %v1447 = vld [vmem:[%s1133 + $0x51] sm:$0xff]
      %v1448 = vld [vmem:[%s1133 + $0x61] sm:$0xff]
      %v1449 = vld [vmem:[%s1133 + $0x69] sm:$0xff]
      %v1450 = vld [vmem:[%s1133 + $0x79] sm:$0xff]
      %v1451 = vld [vmem:[%s1133 + $0x81] sm:$0xff]
      %v1452 = vld [vmem:[%s1133 + $0x91] sm:$0xff]
      %v1453 = vld [vmem:[%s1133 + $0x99] sm:$0xff]
      %v1454 = vld [vmem:[%s1133 + $0xa9] sm:$0xff]
      %v1455 = vld [vmem:[%s1133 + $0xb1] sm:$0xff]
      %v1456 = vld [vmem:[%s1133 + $0xc1] sm:$0xff]
      %v1457 = vld [vmem:[%s1133 + $0xc9] sm:$0xff]
      %v1458 = vld [vmem:[%s1133 + $0xd9] sm:$0xff]
      %v1459 = vld [vmem:[%s1133 + $0xe1] sm:$0xff]
      %v1460 = vld [vmem:[%s1133 + $0xf1] sm:$0xff]
      %v1461 = vld [vmem:[%s1133 + $0xf9] sm:$0xff]
      %v1462 = vld [vmem:[%s1133 + $0x109] sm:$0xff]
      %v1463 = vld [vmem:[%s1133 + $0x111] sm:$0xff]
      %v1464 = vld [vmem:[%s1133 + $0x121] sm:$0xff]
      %v1465 = vld [vmem:[%s1133 + $0x129] sm:$0xff]
      %v1466 = vld [vmem:[%s1133 + $0x139] sm:$0xff]
      %v1467 = vld [vmem:[%s1133 + $0x141] sm:$0xff]
      %v1468 = vld [vmem:[%s1133 + $0x151] sm:$0xff]
      %v1469 = vld [vmem:[%s1133 + $0x159] sm:$0xff]
      %v1470 = vld [vmem:[%s1133 + $0x169] sm:$0xff]
      %v1471 = vld [vmem:[%s1133 + $0x171] sm:$0xff]
      %v1472 = vpack.c.bf16 %v1441, %v1440
      %v1473 = vpack.c.bf16 %v1443, %v1442
      %v1474 = vpack.c.bf16 %v1445, %v1444
      %v1475 = vpack.c.bf16 %v1447, %v1446
      %v1476 = vpack.c.bf16 %v1449, %v1448
      %v1477 = vpack.c.bf16 %v1451, %v1450
      %v1478 = vpack.c.bf16 %v1453, %v1452
      %v1479 = vpack.c.bf16 %v1455, %v1454
      %v1480 = vpack.c.bf16 %v1457, %v1456
      %v1481 = vpack.c.bf16 %v1459, %v1458
      %v1482 = vpack.c.bf16 %v1461, %v1460
      %v1483 = vpack.c.bf16 %v1463, %v1462
      %v1484 = vpack.c.bf16 %v1465, %v1464
      %v1485 = vpack.c.bf16 %v1467, %v1466
      %v1486 = vpack.c.bf16 %v1469, %v1468
      %v1487 = vpack.c.bf16 %v1471, %v1470
      %s1488 = scalar_lea.vmem %s1, 256
      %v1489 = vld [vmem:[%s1488] sm:$0xf]
      %v1490 = vld [vmem:[%s1488 + $0x4] sm:$0xf]
      %v1491 = vld [vmem:[%s1488 + $0x8] sm:$0xf]
      %v1492 = vld [vmem:[%s1488 + $0xc] sm:$0xf]
      %v1493 = vld [vmem:[%s1488 + $0x10] sm:$0xf]
      %v1494 = vld [vmem:[%s1488 + $0x14] sm:$0xf]
      %v1495 = vld [vmem:[%s1488 + $0x18] sm:$0xf]
      %v1496 = vld [vmem:[%s1488 + $0x1c] sm:$0xf]
      %v1497 = vld [vmem:[%s1488 + $0x20] sm:$0xf]
      %v1498 = vld [vmem:[%s1488 + $0x24] sm:$0xf]
      %v1499 = vld [vmem:[%s1488 + $0x28] sm:$0xf]
      %v1500 = vld [vmem:[%s1488 + $0x2c] sm:$0xf]
      %v1501 = vld [vmem:[%s1488 + $0x30] sm:$0xf]
      %v1502 = vld [vmem:[%s1488 + $0x34] sm:$0xf]
      %v1503 = vld [vmem:[%s1488 + $0x38] sm:$0xf]
      %v1504 = vld [vmem:[%s1488 + $0x3c] sm:$0xf]
      %v1521 = vunpack.c.l.b16 %v1489
      %v1522 = vunpack.c.l.b16 %v1490
      %v1523 = vunpack.c.l.b16 %v1491
      %v1524 = vunpack.c.l.b16 %v1492
      %v1525 = vunpack.c.l.b16 %v1493
      %v1526 = vunpack.c.l.b16 %v1494
      %v1527 = vunpack.c.l.b16 %v1495
      %v1528 = vunpack.c.l.b16 %v1496
      %v1529 = vunpack.c.l.b16 %v1497
      %v1530 = vunpack.c.l.b16 %v1498
      %v1531 = vunpack.c.l.b16 %v1499
      %v1532 = vunpack.c.l.b16 %v1500
      %v1533 = vunpack.c.l.b16 %v1501
      %v1534 = vunpack.c.l.b16 %v1502
      %v1535 = vunpack.c.l.b16 %v1503
      %v1536 = vunpack.c.l.b16 %v1504
      %v1537 = vpack.c.b16 %v1522, %v1521
      %v1538 = vpack.c.b16 %v1524, %v1523
      %v1539 = vpack.c.b16 %v1526, %v1525
      %v1540 = vpack.c.b16 %v1528, %v1527
      %v1541 = vpack.c.b16 %v1530, %v1529
      %v1542 = vpack.c.b16 %v1532, %v1531
      %v1543 = vpack.c.b16 %v1534, %v1533
      %v1544 = vpack.c.b16 %v1536, %v1535
      %1553 = vmatprep.subr.bf16.mxu0 0
      %1554 = vmatpush1.bf16.msra.mxu0 %v1537
      %1555 = vmatprep.subr.bf16.mxu0 0
      %1556 = vmatpush1.bf16.msra.mxu0 %v1538
      %1557 = vmatprep.subr.bf16.mxu0 0
      %1558 = vmatpush1.bf16.msra.mxu0 %v1539
      %1559 = vmatprep.subr.bf16.mxu0 0
      %1560 = vmatpush1.bf16.msra.mxu0 %v1540
      %1561 = vmatprep.subr.bf16.mxu0 0
      %1562 = vmatpush1.bf16.msra.mxu0 %v1541
      %1563 = vmatprep.subr.bf16.mxu0 0
      %1564 = vmatpush1.bf16.msra.mxu0 %v1542
      %1565 = vmatprep.subr.bf16.mxu0 0
      %1566 = vmatpush1.bf16.msra.mxu0 %v1543
      %1567 = vmatprep.subr.bf16.mxu0 0
      %1568 = vmatpush1.bf16.msra.mxu0 %v1544
      %1569 = vmatprep.subr.bf16.mxu0 0
      %1570 = vmatpush1.bf16.msra.mxu0 0
      %1571 = vmatprep.subr.bf16.mxu0 0
      %1572 = vmatpush1.bf16.msra.mxu0 0
      %1573 = vmatprep.subr.bf16.mxu0 0
      %1574 = vmatpush1.bf16.msra.mxu0 0
      %1575 = vmatprep.subr.bf16.mxu0 0
      %1576 = vmatpush1.bf16.msra.mxu0 0
      %1577 = vmatprep.subr.bf16.mxu0 0
      %1578 = vmatpush1.bf16.msra.mxu0 0
      %1579 = vmatprep.subr.bf16.mxu0 0
      %1580 = vmatpush1.bf16.msra.mxu0 0
      %1581 = vmatprep.subr.bf16.mxu0 0
      %1582 = vmatpush1.bf16.msra.mxu0 0
      %1583 = vmatprep.subr.bf16.mxu0 0
      %1584 = vmatpush1.bf16.msra.mxu0 0
      %1585 = vmatprep.mubr.bf16.mxu0 0
      %1586 = vmatmul.mubr.bf16.gmra.mrb[0].mxu0 %v1472
      %v1587 = vpop.f32.mrb[0].mxu0
      %v1588 = vadd.f32 0.0, %v1587
      %v1589 = vpop.f32.mrb[0].mxu0
      %v1590 = vpop.f32.mrb[0].mxu0
      %v1591 = vadd.f32 0.0, %v1590
      %v1592 = vpop.f32.mrb[0].mxu0
      %1593 = vmatprep.mubr.bf16.mxu0 0
      %1594 = vmatmul.mubr.bf16.gmra.mrb[0].mxu0 %v1473
      %v1595 = vpop.f32.mrb[0].mxu0
      %v1596 = vadd.f32 0.0, %v1595
      %v1597 = vpop.f32.mrb[0].mxu0
      %v1598 = vpop.f32.mrb[0].mxu0
      %v1599 = vadd.f32 0.0, %v1598
      %v1600 = vpop.f32.mrb[0].mxu0
      %1601 = vmatprep.mubr.bf16.mxu0 0
      %1602 = vmatmul.mubr.bf16.gmra.mrb[0].mxu0 %v1474
      %v1603 = vpop.f32.mrb[0].mxu0
      %v1604 = vadd.f32 0.0, %v1603
      %v1605 = vpop.f32.mrb[0].mxu0
      %v1606 = vpop.f32.mrb[0].mxu0
      %v1607 = vadd.f32 0.0, %v1606
      %v1608 = vpop.f32.mrb[0].mxu0
      %1609 = vmatprep.mubr.bf16.mxu0 0
      %1610 = vmatmul.mubr.bf16.gmra.mrb[0].mxu0 %v1475
      %v1611 = vpop.f32.mrb[0].mxu0
      %v1612 = vadd.f32 0.0, %v1611
      %v1613 = vpop.f32.mrb[0].mxu0
      %v1614 = vpop.f32.mrb[0].mxu0
      %v1615 = vadd.f32 0.0, %v1614
      %v1616 = vpop.f32.mrb[0].mxu0
      %1617 = vmatprep.mubr.bf16.mxu0 0
      %1618 = vmatmul.mubr.bf16.gmra.mrb[0].mxu0 %v1476
      %v1619 = vpop.f32.mrb[0].mxu0
      %v1620 = vadd.f32 0.0, %v1619
      %v1621 = vpop.f32.mrb[0].mxu0
      %v1622 = vpop.f32.mrb[0].mxu0
      %v1623 = vadd.f32 0.0, %v1622
      %v1624 = vpop.f32.mrb[0].mxu0
      %1625 = vmatprep.mubr.bf16.mxu0 0
      %1626 = vmatmul.mubr.bf16.gmra.mrb[0].mxu0 %v1477
      %v1627 = vpop.f32.mrb[0].mxu0
      %v1628 = vadd.f32 0.0, %v1627
      %v1629 = vpop.f32.mrb[0].mxu0
      %v1630 = vpop.f32.mrb[0].mxu0
      %v1631 = vadd.f32 0.0, %v1630
      %v1632 = vpop.f32.mrb[0].mxu0
      %1633 = vmatprep.mubr.bf16.mxu0 0
      %1634 = vmatmul.mubr.bf16.gmra.mrb[0].mxu0 %v1478
      %v1635 = vpop.f32.mrb[0].mxu0
      %v1636 = vadd.f32 0.0, %v1635
      %v1637 = vpop.f32.mrb[0].mxu0
      %v1638 = vpop.f32.mrb[0].mxu0
      %v1639 = vadd.f32 0.0, %v1638
      %v1640 = vpop.f32.mrb[0].mxu0
      %1641 = vmatprep.mubr.bf16.mxu0 0
      %1642 = vmatmul.mubr.bf16.gmra.mrb[0].mxu0 %v1479
      %v1643 = vpop.f32.mrb[0].mxu0
      %v1644 = vadd.f32 0.0, %v1643
      %v1645 = vpop.f32.mrb[0].mxu0
      %v1646 = vpop.f32.mrb[0].mxu0
      %v1647 = vadd.f32 0.0, %v1646
      %v1648 = vpop.f32.mrb[0].mxu0
      %1649 = vmatprep.mubr.bf16.mxu0 0
      %1650 = vmatmul.mubr.bf16.gmra.mrb[0].mxu0 %v1480
      %v1651 = vpop.f32.mrb[0].mxu0
      %v1652 = vadd.f32 0.0, %v1651
      %v1653 = vpop.f32.mrb[0].mxu0
      %v1654 = vpop.f32.mrb[0].mxu0
      %v1655 = vadd.f32 0.0, %v1654
      %v1656 = vpop.f32.mrb[0].mxu0
      %1657 = vmatprep.mubr.bf16.mxu0 0
      %1658 = vmatmul.mubr.bf16.gmra.mrb[0].mxu0 %v1481
      %v1659 = vpop.f32.mrb[0].mxu0
      %v1660 = vadd.f32 0.0, %v1659
      %v1661 = vpop.f32.mrb[0].mxu0
      %v1662 = vpop.f32.mrb[0].mxu0
      %v1663 = vadd.f32 0.0, %v1662
      %v1664 = vpop.f32.mrb[0].mxu0
      %1665 = vmatprep.mubr.bf16.mxu0 0
      %1666 = vmatmul.mubr.bf16.gmra.mrb[0].mxu0 %v1482
      %v1667 = vpop.f32.mrb[0].mxu0
      %v1668 = vadd.f32 0.0, %v1667
      %v1669 = vpop.f32.mrb[0].mxu0
      %v1670 = vpop.f32.mrb[0].mxu0
      %v1671 = vadd.f32 0.0, %v1670
      %v1672 = vpop.f32.mrb[0].mxu0
      %1673 = vmatprep.mubr.bf16.mxu0 0
      %1674 = vmatmul.mubr.bf16.gmra.mrb[0].mxu0 %v1483
      %v1675 = vpop.f32.mrb[0].mxu0
      %v1676 = vadd.f32 0.0, %v1675
      %v1677 = vpop.f32.mrb[0].mxu0
      %v1678 = vpop.f32.mrb[0].mxu0
      %v1679 = vadd.f32 0.0, %v1678
      %v1680 = vpop.f32.mrb[0].mxu0
      %1681 = vmatprep.mubr.bf16.mxu0 0
      %1682 = vmatmul.mubr.bf16.gmra.mrb[0].mxu0 %v1484
      %v1683 = vpop.f32.mrb[0].mxu0
      %v1684 = vadd.f32 0.0, %v1683
      %v1685 = vpop.f32.mrb[0].mxu0
      %v1686 = vpop.f32.mrb[0].mxu0
      %v1687 = vadd.f32 0.0, %v1686
      %v1688 = vpop.f32.mrb[0].mxu0
      %1689 = vmatprep.mubr.bf16.mxu0 0
      %1690 = vmatmul.mubr.bf16.gmra.mrb[0].mxu0 %v1485
      %v1691 = vpop.f32.mrb[0].mxu0
      %v1692 = vadd.f32 0.0, %v1691
      %v1693 = vpop.f32.mrb[0].mxu0
      %v1694 = vpop.f32.mrb[0].mxu0
      %v1695 = vadd.f32 0.0, %v1694
      %v1696 = vpop.f32.mrb[0].mxu0
      %1697 = vmatprep.mubr.bf16.mxu0 0
      %1698 = vmatmul.mubr.bf16.gmra.mrb[0].mxu0 %v1486
      %v1699 = vpop.f32.mrb[0].mxu0
      %v1700 = vadd.f32 0.0, %v1699
      %v1701 = vpop.f32.mrb[0].mxu0
      %v1702 = vpop.f32.mrb[0].mxu0
      %v1703 = vadd.f32 0.0, %v1702
      %v1704 = vpop.f32.mrb[0].mxu0
      %1705 = vmatprep.mubr.bf16.mxu0 0
      %1706 = vmatmul.mubr.bf16.gmra.mrb[0].mxu0 %v1487
      %v1707 = vpop.f32.mrb[0].mxu0
      %v1708 = vadd.f32 0.0, %v1707
      %v1709 = vpop.f32.mrb[0].mxu0
      %v1710 = vpop.f32.mrb[0].mxu0
      %v1711 = vadd.f32 0.0, %v1710
      %v1712 = vpop.f32.mrb[0].mxu0
      %1713 = vdwg.mxu0
      %v1714 = vadd.f32 %v1408, %v1588
      %v1715 = vadd.f32 %v1409, %v1591
      %v1716 = vadd.f32 %v1410, %v1596
      %v1717 = vadd.f32 %v1411, %v1599
      %v1718 = vadd.f32 %v1412, %v1604
      %v1719 = vadd.f32 %v1413, %v1607
      %v1720 = vadd.f32 %v1414, %v1612
      %v1721 = vadd.f32 %v1415, %v1615
      %v1722 = vadd.f32 %v1416, %v1620
      %v1723 = vadd.f32 %v1417, %v1623
      %v1724 = vadd.f32 %v1418, %v1628
      %v1725 = vadd.f32 %v1419, %v1631
      %v1726 = vadd.f32 %v1420, %v1636
      %v1727 = vadd.f32 %v1421, %v1639
      %v1728 = vadd.f32 %v1422, %v1644
      %v1729 = vadd.f32 %v1423, %v1647
      %v1730 = vadd.f32 %v1424, %v1652
      %v1731 = vadd.f32 %v1425, %v1655
      %v1732 = vadd.f32 %v1426, %v1660
      %v1733 = vadd.f32 %v1427, %v1663
      %v1734 = vadd.f32 %v1428, %v1668
      %v1735 = vadd.f32 %v1429, %v1671
      %v1736 = vadd.f32 %v1430, %v1676
      %v1737 = vadd.f32 %v1431, %v1679
      %v1738 = vadd.f32 %v1432, %v1684
      %v1739 = vadd.f32 %v1433, %v1687
      %v1740 = vadd.f32 %v1434, %v1692
      %v1741 = vadd.f32 %v1435, %v1695
      %v1742 = vadd.f32 %v1436, %v1700
      %v1743 = vadd.f32 %v1437, %v1703
      %v1744 = vadd.f32 %v1438, %v1708
      %v1745 = vadd.f32 %v1439, %v1711
      %v1746 = vld [vmem:[%s1133 + $0x2] sm:$0xff]
      %v1747 = vld [vmem:[%s1133 + $0xa] sm:$0xff]
      %v1748 = vld [vmem:[%s1133 + $0x1a] sm:$0xff]
      %v1749 = vld [vmem:[%s1133 + $0x22] sm:$0xff]
      %v1750 = vld [vmem:[%s1133 + $0x32] sm:$0xff]
      %v1751 = vld [vmem:[%s1133 + $0x3a] sm:$0xff]
      %v1752 = vld [vmem:[%s1133 + $0x4a] sm:$0xff]
      %v1753 = vld [vmem:[%s1133 + $0x52] sm:$0xff]
      %v1754 = vld [vmem:[%s1133 + $0x62] sm:$0xff]
      %v1755 = vld [vmem:[%s1133 + $0x6a] sm:$0xff]
      %v1756 = vld [vmem:[%s1133 + $0x7a] sm:$0xff]
      %v1757 = vld [vmem:[%s1133 + $0x82] sm:$0xff]
      %v1758 = vld [vmem:[%s1133 + $0x92] sm:$0xff]
      %v1759 = vld [vmem:[%s1133 + $0x9a] sm:$0xff]
      %v1760 = vld [vmem:[%s1133 + $0xaa] sm:$0xff]
      %v1761 = vld [vmem:[%s1133 + $0xb2] sm:$0xff]
      %v1762 = vld [vmem:[%s1133 + $0xc2] sm:$0xff]
      %v1763 = vld [vmem:[%s1133 + $0xca] sm:$0xff]
      %v1764 = vld [vmem:[%s1133 + $0xda] sm:$0xff]
      %v1765 = vld [vmem:[%s1133 + $0xe2] sm:$0xff]
      %v1766 = vld [vmem:[%s1133 + $0xf2] sm:$0xff]
      %v1767 = vld [vmem:[%s1133 + $0xfa] sm:$0xff]
      %v1768 = vld [vmem:[%s1133 + $0x10a] sm:$0xff]
      %v1769 = vld [vmem:[%s1133 + $0x112] sm:$0xff]
      %v1770 = vld [vmem:[%s1133 + $0x122] sm:$0xff]
      %v1771 = vld [vmem:[%s1133 + $0x12a] sm:$0xff]
      %v1772 = vld [vmem:[%s1133 + $0x13a] sm:$0xff]
      %v1773 = vld [vmem:[%s1133 + $0x142] sm:$0xff]
      %v1774 = vld [vmem:[%s1133 + $0x152] sm:$0xff]
      %v1775 = vld [vmem:[%s1133 + $0x15a] sm:$0xff]
      %v1776 = vld [vmem:[%s1133 + $0x16a] sm:$0xff]
      %v1777 = vld [vmem:[%s1133 + $0x172] sm:$0xff]
      %v1778 = vpack.c.bf16 %v1747, %v1746
      %v1779 = vpack.c.bf16 %v1749, %v1748
      %v1780 = vpack.c.bf16 %v1751, %v1750
      %v1781 = vpack.c.bf16 %v1753, %v1752
      %v1782 = vpack.c.bf16 %v1755, %v1754
      %v1783 = vpack.c.bf16 %v1757, %v1756
      %v1784 = vpack.c.bf16 %v1759, %v1758
      %v1785 = vpack.c.bf16 %v1761, %v1760
      %v1786 = vpack.c.bf16 %v1763, %v1762
      %v1787 = vpack.c.bf16 %v1765, %v1764
      %v1788 = vpack.c.bf16 %v1767, %v1766
      %v1789 = vpack.c.bf16 %v1769, %v1768
      %v1790 = vpack.c.bf16 %v1771, %v1770
      %v1791 = vpack.c.bf16 %v1773, %v1772
      %v1792 = vpack.c.bf16 %v1775, %v1774
      %v1793 = vpack.c.bf16 %v1777, %v1776
      %s1794 = scalar_lea.vmem %s1, 320
      %v1795 = vld [vmem:[%s1794] sm:$0xf]
      %v1796 = vld [vmem:[%s1794 + $0x4] sm:$0xf]
      %v1797 = vld [vmem:[%s1794 + $0x8] sm:$0xf]
      %v1798 = vld [vmem:[%s1794 + $0xc] sm:$0xf]
      %v1799 = vld [vmem:[%s1794 + $0x10] sm:$0xf]
      %v1800 = vld [vmem:[%s1794 + $0x14] sm:$0xf]
      %v1801 = vld [vmem:[%s1794 + $0x18] sm:$0xf]
      %v1802 = vld [vmem:[%s1794 + $0x1c] sm:$0xf]
      %v1803 = vld [vmem:[%s1794 + $0x20] sm:$0xf]
      %v1804 = vld [vmem:[%s1794 + $0x24] sm:$0xf]
      %v1805 = vld [vmem:[%s1794 + $0x28] sm:$0xf]
      %v1806 = vld [vmem:[%s1794 + $0x2c] sm:$0xf]
      %v1807 = vld [vmem:[%s1794 + $0x30] sm:$0xf]
      %v1808 = vld [vmem:[%s1794 + $0x34] sm:$0xf]
      %v1809 = vld [vmem:[%s1794 + $0x38] sm:$0xf]
      %v1810 = vld [vmem:[%s1794 + $0x3c] sm:$0xf]
      %v1827 = vunpack.c.l.b16 %v1795
      %v1828 = vunpack.c.l.b16 %v1796
      %v1829 = vunpack.c.l.b16 %v1797
      %v1830 = vunpack.c.l.b16 %v1798
      %v1831 = vunpack.c.l.b16 %v1799
      %v1832 = vunpack.c.l.b16 %v1800
      %v1833 = vunpack.c.l.b16 %v1801
      %v1834 = vunpack.c.l.b16 %v1802
      %v1835 = vunpack.c.l.b16 %v1803
      %v1836 = vunpack.c.l.b16 %v1804
      %v1837 = vunpack.c.l.b16 %v1805
      %v1838 = vunpack.c.l.b16 %v1806
      %v1839 = vunpack.c.l.b16 %v1807
      %v1840 = vunpack.c.l.b16 %v1808
      %v1841 = vunpack.c.l.b16 %v1809
      %v1842 = vunpack.c.l.b16 %v1810
      %v1843 = vpack.c.b16 %v1828, %v1827
      %v1844 = vpack.c.b16 %v1830, %v1829
      %v1845 = vpack.c.b16 %v1832, %v1831
      %v1846 = vpack.c.b16 %v1834, %v1833
      %v1847 = vpack.c.b16 %v1836, %v1835
      %v1848 = vpack.c.b16 %v1838, %v1837
      %v1849 = vpack.c.b16 %v1840, %v1839
      %v1850 = vpack.c.b16 %v1842, %v1841
      %1859 = vmatprep.subr.bf16.mxu0 0
      %1860 = vmatpush1.bf16.msra.mxu0 %v1843
      %1861 = vmatprep.subr.bf16.mxu0 0
      %1862 = vmatpush1.bf16.msra.mxu0 %v1844
      %1863 = vmatprep.subr.bf16.mxu0 0
      %1864 = vmatpush1.bf16.msra.mxu0 %v1845
      %1865 = vmatprep.subr.bf16.mxu0 0
      %1866 = vmatpush1.bf16.msra.mxu0 %v1846
      %1867 = vmatprep.subr.bf16.mxu0 0
      %1868 = vmatpush1.bf16.msra.mxu0 %v1847
      %1869 = vmatprep.subr.bf16.mxu0 0
      %1870 = vmatpush1.bf16.msra.mxu0 %v1848
      %1871 = vmatprep.subr.bf16.mxu0 0
      %1872 = vmatpush1.bf16.msra.mxu0 %v1849
      %1873 = vmatprep.subr.bf16.mxu0 0
      %1874 = vmatpush1.bf16.msra.mxu0 %v1850
      %1875 = vmatprep.subr.bf16.mxu0 0
      %1876 = vmatpush1.bf16.msra.mxu0 0
      %1877 = vmatprep.subr.bf16.mxu0 0
      %1878 = vmatpush1.bf16.msra.mxu0 0
      %1879 = vmatprep.subr.bf16.mxu0 0
      %1880 = vmatpush1.bf16.msra.mxu0 0
      %1881 = vmatprep.subr.bf16.mxu0 0
      %1882 = vmatpush1.bf16.msra.mxu0 0
      %1883 = vmatprep.subr.bf16.mxu0 0
      %1884 = vmatpush1.bf16.msra.mxu0 0
      %1885 = vmatprep.subr.bf16.mxu0 0
      %1886 = vmatpush1.bf16.msra.mxu0 0
      %1887 = vmatprep.subr.bf16.mxu0 0
      %1888 = vmatpush1.bf16.msra.mxu0 0
      %1889 = vmatprep.subr.bf16.mxu0 0
      %1890 = vmatpush1.bf16.msra.mxu0 0
      %1891 = vmatprep.mubr.bf16.mxu0 0
      %1892 = vmatmul.mubr.bf16.gmra.mrb[0].mxu0 %v1778
      %v1893 = vpop.f32.mrb[0].mxu0
      %v1894 = vadd.f32 0.0, %v1893
      %v1895 = vpop.f32.mrb[0].mxu0
      %v1896 = vpop.f32.mrb[0].mxu0
      %v1897 = vadd.f32 0.0, %v1896
      %v1898 = vpop.f32.mrb[0].mxu0
      %1899 = vmatprep.mubr.bf16.mxu0 0
      %1900 = vmatmul.mubr.bf16.gmra.mrb[0].mxu0 %v1779
      %v1901 = vpop.f32.mrb[0].mxu0
      %v1902 = vadd.f32 0.0, %v1901
      %v1903 = vpop.f32.mrb[0].mxu0
      %v1904 = vpop.f32.mrb[0].mxu0
      %v1905 = vadd.f32 0.0, %v1904
      %v1906 = vpop.f32.mrb[0].mxu0
      %1907 = vmatprep.mubr.bf16.mxu0 0
      %1908 = vmatmul.mubr.bf16.gmra.mrb[0].mxu0 %v1780
      %v1909 = vpop.f32.mrb[0].mxu0
      %v1910 = vadd.f32 0.0, %v1909
      %v1911 = vpop.f32.mrb[0].mxu0
      %v1912 = vpop.f32.mrb[0].mxu0
      %v1913 = vadd.f32 0.0, %v1912
      %v1914 = vpop.f32.mrb[0].mxu0
      %1915 = vmatprep.mubr.bf16.mxu0 0
      %1916 = vmatmul.mubr.bf16.gmra.mrb[0].mxu0 %v1781
      %v1917 = vpop.f32.mrb[0].mxu0
      %v1918 = vadd.f32 0.0, %v1917
      %v1919 = vpop.f32.mrb[0].mxu0
      %v1920 = vpop.f32.mrb[0].mxu0
      %v1921 = vadd.f32 0.0, %v1920
      %v1922 = vpop.f32.mrb[0].mxu0
      %1923 = vmatprep.mubr.bf16.mxu0 0
      %1924 = vmatmul.mubr.bf16.gmra.mrb[0].mxu0 %v1782
      %v1925 = vpop.f32.mrb[0].mxu0
      %v1926 = vadd.f32 0.0, %v1925
      %v1927 = vpop.f32.mrb[0].mxu0
      %v1928 = vpop.f32.mrb[0].mxu0
      %v1929 = vadd.f32 0.0, %v1928
      %v1930 = vpop.f32.mrb[0].mxu0
      %1931 = vmatprep.mubr.bf16.mxu0 0
      %1932 = vmatmul.mubr.bf16.gmra.mrb[0].mxu0 %v1783
      %v1933 = vpop.f32.mrb[0].mxu0
      %v1934 = vadd.f32 0.0, %v1933
      %v1935 = vpop.f32.mrb[0].mxu0
      %v1936 = vpop.f32.mrb[0].mxu0
      %v1937 = vadd.f32 0.0, %v1936
      %v1938 = vpop.f32.mrb[0].mxu0
      %1939 = vmatprep.mubr.bf16.mxu0 0
      %1940 = vmatmul.mubr.bf16.gmra.mrb[0].mxu0 %v1784
      %v1941 = vpop.f32.mrb[0].mxu0
      %v1942 = vadd.f32 0.0, %v1941
      %v1943 = vpop.f32.mrb[0].mxu0
      %v1944 = vpop.f32.mrb[0].mxu0
      %v1945 = vadd.f32 0.0, %v1944
      %v1946 = vpop.f32.mrb[0].mxu0
      %1947 = vmatprep.mubr.bf16.mxu0 0
      %1948 = vmatmul.mubr.bf16.gmra.mrb[0].mxu0 %v1785
      %v1949 = vpop.f32.mrb[0].mxu0
      %v1950 = vadd.f32 0.0, %v1949
      %v1951 = vpop.f32.mrb[0].mxu0
      %v1952 = vpop.f32.mrb[0].mxu0
      %v1953 = vadd.f32 0.0, %v1952
      %v1954 = vpop.f32.mrb[0].mxu0
      %1955 = vmatprep.mubr.bf16.mxu0 0
      %1956 = vmatmul.mubr.bf16.gmra.mrb[0].mxu0 %v1786
      %v1957 = vpop.f32.mrb[0].mxu0
      %v1958 = vadd.f32 0.0, %v1957
      %v1959 = vpop.f32.mrb[0].mxu0
      %v1960 = vpop.f32.mrb[0].mxu0
      %v1961 = vadd.f32 0.0, %v1960
      %v1962 = vpop.f32.mrb[0].mxu0
      %1963 = vmatprep.mubr.bf16.mxu0 0
      %1964 = vmatmul.mubr.bf16.gmra.mrb[0].mxu0 %v1787
      %v1965 = vpop.f32.mrb[0].mxu0
      %v1966 = vadd.f32 0.0, %v1965
      %v1967 = vpop.f32.mrb[0].mxu0
      %v1968 = vpop.f32.mrb[0].mxu0
      %v1969 = vadd.f32 0.0, %v1968
      %v1970 = vpop.f32.mrb[0].mxu0
      %1971 = vmatprep.mubr.bf16.mxu0 0
      %1972 = vmatmul.mubr.bf16.gmra.mrb[0].mxu0 %v1788
      %v1973 = vpop.f32.mrb[0].mxu0
      %v1974 = vadd.f32 0.0, %v1973
      %v1975 = vpop.f32.mrb[0].mxu0
      %v1976 = vpop.f32.mrb[0].mxu0
      %v1977 = vadd.f32 0.0, %v1976
      %v1978 = vpop.f32.mrb[0].mxu0
      %1979 = vmatprep.mubr.bf16.mxu0 0
      %1980 = vmatmul.mubr.bf16.gmra.mrb[0].mxu0 %v1789
      %v1981 = vpop.f32.mrb[0].mxu0
      %v1982 = vadd.f32 0.0, %v1981
      %v1983 = vpop.f32.mrb[0].mxu0
      %v1984 = vpop.f32.mrb[0].mxu0
      %v1985 = vadd.f32 0.0, %v1984
      %v1986 = vpop.f32.mrb[0].mxu0
      %1987 = vmatprep.mubr.bf16.mxu0 0
      %1988 = vmatmul.mubr.bf16.gmra.mrb[0].mxu0 %v1790
      %v1989 = vpop.f32.mrb[0].mxu0
      %v1990 = vadd.f32 0.0, %v1989
      %v1991 = vpop.f32.mrb[0].mxu0
      %v1992 = vpop.f32.mrb[0].mxu0
      %v1993 = vadd.f32 0.0, %v1992
      %v1994 = vpop.f32.mrb[0].mxu0
      %1995 = vmatprep.mubr.bf16.mxu0 0
      %1996 = vmatmul.mubr.bf16.gmra.mrb[0].mxu0 %v1791
      %v1997 = vpop.f32.mrb[0].mxu0
      %v1998 = vadd.f32 0.0, %v1997
      %v1999 = vpop.f32.mrb[0].mxu0
      %v2000 = vpop.f32.mrb[0].mxu0
      %v2001 = vadd.f32 0.0, %v2000
      %v2002 = vpop.f32.mrb[0].mxu0
      %2003 = vmatprep.mubr.bf16.mxu0 0
      %2004 = vmatmul.mubr.bf16.gmra.mrb[0].mxu0 %v1792
      %v2005 = vpop.f32.mrb[0].mxu0
      %v2006 = vadd.f32 0.0, %v2005
      %v2007 = vpop.f32.mrb[0].mxu0
      %v2008 = vpop.f32.mrb[0].mxu0
      %v2009 = vadd.f32 0.0, %v2008
      %v2010 = vpop.f32.mrb[0].mxu0
      %2011 = vmatprep.mubr.bf16.mxu0 0
      %2012 = vmatmul.mubr.bf16.gmra.mrb[0].mxu0 %v1793
      %v2013 = vpop.f32.mrb[0].mxu0
      %v2014 = vadd.f32 0.0, %v2013
      %v2015 = vpop.f32.mrb[0].mxu0
      %v2016 = vpop.f32.mrb[0].mxu0
      %v2017 = vadd.f32 0.0, %v2016
      %v2018 = vpop.f32.mrb[0].mxu0
      %2019 = vdwg.mxu0
      %v2020 = vadd.f32 %v1714, %v1894
      %v2021 = vadd.f32 %v1715, %v1897
      %v2022 = vadd.f32 %v1716, %v1902
      %v2023 = vadd.f32 %v1717, %v1905
      %v2024 = vadd.f32 %v1718, %v1910
      %v2025 = vadd.f32 %v1719, %v1913
      %v2026 = vadd.f32 %v1720, %v1918
      %v2027 = vadd.f32 %v1721, %v1921
      %v2028 = vadd.f32 %v1722, %v1926
      %v2029 = vadd.f32 %v1723, %v1929
      %v2030 = vadd.f32 %v1724, %v1934
      %v2031 = vadd.f32 %v1725, %v1937
      %v2032 = vadd.f32 %v1726, %v1942
      %v2033 = vadd.f32 %v1727, %v1945
      %v2034 = vadd.f32 %v1728, %v1950
      %v2035 = vadd.f32 %v1729, %v1953
      %v2036 = vadd.f32 %v1730, %v1958
      %v2037 = vadd.f32 %v1731, %v1961
      %v2038 = vadd.f32 %v1732, %v1966
      %v2039 = vadd.f32 %v1733, %v1969
      %v2040 = vadd.f32 %v1734, %v1974
      %v2041 = vadd.f32 %v1735, %v1977
      %v2042 = vadd.f32 %v1736, %v1982
      %v2043 = vadd.f32 %v1737, %v1985
      %v2044 = vadd.f32 %v1738, %v1990
      %v2045 = vadd.f32 %v1739, %v1993
      %v2046 = vadd.f32 %v1740, %v1998
      %v2047 = vadd.f32 %v1741, %v2001
      %v2048 = vadd.f32 %v1742, %v2006
      %v2049 = vadd.f32 %v1743, %v2009
      %v2050 = vadd.f32 %v1744, %v2014
      %v2051 = vadd.f32 %v1745, %v2017
      %s2052 = scalar_lea.vmem %s273, 48
      %v2053 = vld [vmem:[%s2052] sm:$0xff]
      %v2054 = vld [vmem:[%s2052 + $0x8] sm:$0xff]
      %v2055 = vld [vmem:[%s2052 + $0x18] sm:$0xff]
      %v2056 = vld [vmem:[%s2052 + $0x20] sm:$0xff]
      %v2057 = vld [vmem:[%s2052 + $0x30] sm:$0xff]
      %v2058 = vld [vmem:[%s2052 + $0x38] sm:$0xff]
      %v2059 = vld [vmem:[%s2052 + $0x48] sm:$0xff]
      %v2060 = vld [vmem:[%s2052 + $0x50] sm:$0xff]
      %v2061 = vld [vmem:[%s2052 + $0x60] sm:$0xff]
      %v2062 = vld [vmem:[%s2052 + $0x68] sm:$0xff]
      %v2063 = vld [vmem:[%s2052 + $0x78] sm:$0xff]
      %v2064 = vld [vmem:[%s2052 + $0x80] sm:$0xff]
      %v2065 = vld [vmem:[%s2052 + $0x90] sm:$0xff]
      %v2066 = vld [vmem:[%s2052 + $0x98] sm:$0xff]
      %v2067 = vld [vmem:[%s2052 + $0xa8] sm:$0xff]
      %v2068 = vld [vmem:[%s2052 + $0xb0] sm:$0xff]
      %v2069 = vld [vmem:[%s2052 + $0xc0] sm:$0xff]
      %v2070 = vld [vmem:[%s2052 + $0xc8] sm:$0xff]
      %v2071 = vld [vmem:[%s2052 + $0xd8] sm:$0xff]
      %v2072 = vld [vmem:[%s2052 + $0xe0] sm:$0xff]
      %v2073 = vld [vmem:[%s2052 + $0xf0] sm:$0xff]
      %v2074 = vld [vmem:[%s2052 + $0xf8] sm:$0xff]
      %v2075 = vld [vmem:[%s2052 + $0x108] sm:$0xff]
      %v2076 = vld [vmem:[%s2052 + $0x110] sm:$0xff]
      %v2077 = vld [vmem:[%s2052 + $0x120] sm:$0xff]
      %v2078 = vld [vmem:[%s2052 + $0x128] sm:$0xff]
      %v2079 = vld [vmem:[%s2052 + $0x138] sm:$0xff]
      %v2080 = vld [vmem:[%s2052 + $0x140] sm:$0xff]
      %v2081 = vld [vmem:[%s2052 + $0x150] sm:$0xff]
      %v2082 = vld [vmem:[%s2052 + $0x158] sm:$0xff]
      %v2083 = vld [vmem:[%s2052 + $0x168] sm:$0xff]
      %v2084 = vld [vmem:[%s2052 + $0x170] sm:$0xff]
      %v2085 = vpack.c.bf16 %v2054, %v2053
      %v2086 = vpack.c.bf16 %v2056, %v2055
      %v2087 = vpack.c.bf16 %v2058, %v2057
      %v2088 = vpack.c.bf16 %v2060, %v2059
      %v2089 = vpack.c.bf16 %v2062, %v2061
      %v2090 = vpack.c.bf16 %v2064, %v2063
      %v2091 = vpack.c.bf16 %v2066, %v2065
      %v2092 = vpack.c.bf16 %v2068, %v2067
      %v2093 = vpack.c.bf16 %v2070, %v2069
      %v2094 = vpack.c.bf16 %v2072, %v2071
      %v2095 = vpack.c.bf16 %v2074, %v2073
      %v2096 = vpack.c.bf16 %v2076, %v2075
      %v2097 = vpack.c.bf16 %v2078, %v2077
      %v2098 = vpack.c.bf16 %v2080, %v2079
      %v2099 = vpack.c.bf16 %v2082, %v2081
      %v2100 = vpack.c.bf16 %v2084, %v2083
      %s2101 = scalar_lea.vmem %s1, 384
      %v2102 = vld [vmem:[%s2101] sm:$0xf]
      %v2103 = vld [vmem:[%s2101 + $0x4] sm:$0xf]
      %v2104 = vld [vmem:[%s2101 + $0x8] sm:$0xf]
      %v2105 = vld [vmem:[%s2101 + $0xc] sm:$0xf]
      %v2106 = vld [vmem:[%s2101 + $0x10] sm:$0xf]
      %v2107 = vld [vmem:[%s2101 + $0x14] sm:$0xf]
      %v2108 = vld [vmem:[%s2101 + $0x18] sm:$0xf]
      %v2109 = vld [vmem:[%s2101 + $0x1c] sm:$0xf]
      %v2110 = vld [vmem:[%s2101 + $0x20] sm:$0xf]
      %v2111 = vld [vmem:[%s2101 + $0x24] sm:$0xf]
      %v2112 = vld [vmem:[%s2101 + $0x28] sm:$0xf]
      %v2113 = vld [vmem:[%s2101 + $0x2c] sm:$0xf]
      %v2114 = vld [vmem:[%s2101 + $0x30] sm:$0xf]
      %v2115 = vld [vmem:[%s2101 + $0x34] sm:$0xf]
      %v2116 = vld [vmem:[%s2101 + $0x38] sm:$0xf]
      %v2117 = vld [vmem:[%s2101 + $0x3c] sm:$0xf]
      %v2134 = vunpack.c.l.b16 %v2102
      %v2135 = vunpack.c.l.b16 %v2103
      %v2136 = vunpack.c.l.b16 %v2104
      %v2137 = vunpack.c.l.b16 %v2105
      %v2138 = vunpack.c.l.b16 %v2106
      %v2139 = vunpack.c.l.b16 %v2107
      %v2140 = vunpack.c.l.b16 %v2108
      %v2141 = vunpack.c.l.b16 %v2109
      %v2142 = vunpack.c.l.b16 %v2110
      %v2143 = vunpack.c.l.b16 %v2111
      %v2144 = vunpack.c.l.b16 %v2112
      %v2145 = vunpack.c.l.b16 %v2113
      %v2146 = vunpack.c.l.b16 %v2114
      %v2147 = vunpack.c.l.b16 %v2115
      %v2148 = vunpack.c.l.b16 %v2116
      %v2149 = vunpack.c.l.b16 %v2117
      %v2150 = vpack.c.b16 %v2135, %v2134
      %v2151 = vpack.c.b16 %v2137, %v2136
      %v2152 = vpack.c.b16 %v2139, %v2138
      %v2153 = vpack.c.b16 %v2141, %v2140
      %v2154 = vpack.c.b16 %v2143, %v2142
      %v2155 = vpack.c.b16 %v2145, %v2144
      %v2156 = vpack.c.b16 %v2147, %v2146
      %v2157 = vpack.c.b16 %v2149, %v2148
      %2166 = vmatprep.subr.bf16.mxu0 0
      %2167 = vmatpush1.bf16.msra.mxu0 %v2150
      %2168 = vmatprep.subr.bf16.mxu0 0
      %2169 = vmatpush1.bf16.msra.mxu0 %v2151
      %2170 = vmatprep.subr.bf16.mxu0 0
      %2171 = vmatpush1.bf16.msra.mxu0 %v2152
      %2172 = vmatprep.subr.bf16.mxu0 0
      %2173 = vmatpush1.bf16.msra.mxu0 %v2153
      %2174 = vmatprep.subr.bf16.mxu0 0
      %2175 = vmatpush1.bf16.msra.mxu0 %v2154
      %2176 = vmatprep.subr.bf16.mxu0 0
      %2177 = vmatpush1.bf16.msra.mxu0 %v2155
      %2178 = vmatprep.subr.bf16.mxu0 0
      %2179 = vmatpush1.bf16.msra.mxu0 %v2156
      %2180 = vmatprep.subr.bf16.mxu0 0
      %2181 = vmatpush1.bf16.msra.mxu0 %v2157
      %2182 = vmatprep.subr.bf16.mxu0 0
      %2183 = vmatpush1.bf16.msra.mxu0 0
      %2184 = vmatprep.subr.bf16.mxu0 0
      %2185 = vmatpush1.bf16.msra.mxu0 0
      %2186 = vmatprep.subr.bf16.mxu0 0
      %2187 = vmatpush1.bf16.msra.mxu0 0
      %2188 = vmatprep.subr.bf16.mxu0 0
      %2189 = vmatpush1.bf16.msra.mxu0 0
      %2190 = vmatprep.subr.bf16.mxu0 0
      %2191 = vmatpush1.bf16.msra.mxu0 0
      %2192 = vmatprep.subr.bf16.mxu0 0
      %2193 = vmatpush1.bf16.msra.mxu0 0
      %2194 = vmatprep.subr.bf16.mxu0 0
      %2195 = vmatpush1.bf16.msra.mxu0 0
      %2196 = vmatprep.subr.bf16.mxu0 0
      %2197 = vmatpush1.bf16.msra.mxu0 0
      %2198 = vmatprep.mubr.bf16.mxu0 0
      %2199 = vmatmul.mubr.bf16.gmra.mrb[0].mxu0 %v2085
      %v2200 = vpop.f32.mrb[0].mxu0
      %v2201 = vadd.f32 0.0, %v2200
      %v2202 = vpop.f32.mrb[0].mxu0
      %v2203 = vpop.f32.mrb[0].mxu0
      %v2204 = vadd.f32 0.0, %v2203
      %v2205 = vpop.f32.mrb[0].mxu0
      %2206 = vmatprep.mubr.bf16.mxu0 0
      %2207 = vmatmul.mubr.bf16.gmra.mrb[0].mxu0 %v2086
      %v2208 = vpop.f32.mrb[0].mxu0
      %v2209 = vadd.f32 0.0, %v2208
      %v2210 = vpop.f32.mrb[0].mxu0
      %v2211 = vpop.f32.mrb[0].mxu0
      %v2212 = vadd.f32 0.0, %v2211
      %v2213 = vpop.f32.mrb[0].mxu0
      %2214 = vmatprep.mubr.bf16.mxu0 0
      %2215 = vmatmul.mubr.bf16.gmra.mrb[0].mxu0 %v2087
      %v2216 = vpop.f32.mrb[0].mxu0
      %v2217 = vadd.f32 0.0, %v2216
      %v2218 = vpop.f32.mrb[0].mxu0
      %v2219 = vpop.f32.mrb[0].mxu0
      %v2220 = vadd.f32 0.0, %v2219
      %v2221 = vpop.f32.mrb[0].mxu0
      %2222 = vmatprep.mubr.bf16.mxu0 0
      %2223 = vmatmul.mubr.bf16.gmra.mrb[0].mxu0 %v2088
      %v2224 = vpop.f32.mrb[0].mxu0
      %v2225 = vadd.f32 0.0, %v2224
      %v2226 = vpop.f32.mrb[0].mxu0
      %v2227 = vpop.f32.mrb[0].mxu0
      %v2228 = vadd.f32 0.0, %v2227
      %v2229 = vpop.f32.mrb[0].mxu0
      %2230 = vmatprep.mubr.bf16.mxu0 0
      %2231 = vmatmul.mubr.bf16.gmra.mrb[0].mxu0 %v2089
      %v2232 = vpop.f32.mrb[0].mxu0
      %v2233 = vadd.f32 0.0, %v2232
      %v2234 = vpop.f32.mrb[0].mxu0
      %v2235 = vpop.f32.mrb[0].mxu0
      %v2236 = vadd.f32 0.0, %v2235
      %v2237 = vpop.f32.mrb[0].mxu0
      %2238 = vmatprep.mubr.bf16.mxu0 0
      %2239 = vmatmul.mubr.bf16.gmra.mrb[0].mxu0 %v2090
      %v2240 = vpop.f32.mrb[0].mxu0
      %v2241 = vadd.f32 0.0, %v2240
      %v2242 = vpop.f32.mrb[0].mxu0
      %v2243 = vpop.f32.mrb[0].mxu0
      %v2244 = vadd.f32 0.0, %v2243
      %v2245 = vpop.f32.mrb[0].mxu0
      %2246 = vmatprep.mubr.bf16.mxu0 0
      %2247 = vmatmul.mubr.bf16.gmra.mrb[0].mxu0 %v2091
      %v2248 = vpop.f32.mrb[0].mxu0
      %v2249 = vadd.f32 0.0, %v2248
      %v2250 = vpop.f32.mrb[0].mxu0
      %v2251 = vpop.f32.mrb[0].mxu0
      %v2252 = vadd.f32 0.0, %v2251
      %v2253 = vpop.f32.mrb[0].mxu0
      %2254 = vmatprep.mubr.bf16.mxu0 0
      %2255 = vmatmul.mubr.bf16.gmra.mrb[0].mxu0 %v2092
      %v2256 = vpop.f32.mrb[0].mxu0
      %v2257 = vadd.f32 0.0, %v2256
      %v2258 = vpop.f32.mrb[0].mxu0
      %v2259 = vpop.f32.mrb[0].mxu0
      %v2260 = vadd.f32 0.0, %v2259
      %v2261 = vpop.f32.mrb[0].mxu0
      %2262 = vmatprep.mubr.bf16.mxu0 0
      %2263 = vmatmul.mubr.bf16.gmra.mrb[0].mxu0 %v2093
      %v2264 = vpop.f32.mrb[0].mxu0
      %v2265 = vadd.f32 0.0, %v2264
      %v2266 = vpop.f32.mrb[0].mxu0
      %v2267 = vpop.f32.mrb[0].mxu0
      %v2268 = vadd.f32 0.0, %v2267
      %v2269 = vpop.f32.mrb[0].mxu0
      %2270 = vmatprep.mubr.bf16.mxu0 0
      %2271 = vmatmul.mubr.bf16.gmra.mrb[0].mxu0 %v2094
      %v2272 = vpop.f32.mrb[0].mxu0
      %v2273 = vadd.f32 0.0, %v2272
      %v2274 = vpop.f32.mrb[0].mxu0
      %v2275 = vpop.f32.mrb[0].mxu0
      %v2276 = vadd.f32 0.0, %v2275
      %v2277 = vpop.f32.mrb[0].mxu0
      %2278 = vmatprep.mubr.bf16.mxu0 0
      %2279 = vmatmul.mubr.bf16.gmra.mrb[0].mxu0 %v2095
      %v2280 = vpop.f32.mrb[0].mxu0
      %v2281 = vadd.f32 0.0, %v2280
      %v2282 = vpop.f32.mrb[0].mxu0
      %v2283 = vpop.f32.mrb[0].mxu0
      %v2284 = vadd.f32 0.0, %v2283
      %v2285 = vpop.f32.mrb[0].mxu0
      %2286 = vmatprep.mubr.bf16.mxu0 0
      %2287 = vmatmul.mubr.bf16.gmra.mrb[0].mxu0 %v2096
      %v2288 = vpop.f32.mrb[0].mxu0
      %v2289 = vadd.f32 0.0, %v2288
      %v2290 = vpop.f32.mrb[0].mxu0
      %v2291 = vpop.f32.mrb[0].mxu0
      %v2292 = vadd.f32 0.0, %v2291
      %v2293 = vpop.f32.mrb[0].mxu0
      %2294 = vmatprep.mubr.bf16.mxu0 0
      %2295 = vmatmul.mubr.bf16.gmra.mrb[0].mxu0 %v2097
      %v2296 = vpop.f32.mrb[0].mxu0
      %v2297 = vadd.f32 0.0, %v2296
      %v2298 = vpop.f32.mrb[0].mxu0
      %v2299 = vpop.f32.mrb[0].mxu0
      %v2300 = vadd.f32 0.0, %v2299
      %v2301 = vpop.f32.mrb[0].mxu0
      %2302 = vmatprep.mubr.bf16.mxu0 0
      %2303 = vmatmul.mubr.bf16.gmra.mrb[0].mxu0 %v2098
      %v2304 = vpop.f32.mrb[0].mxu0
      %v2305 = vadd.f32 0.0, %v2304
      %v2306 = vpop.f32.mrb[0].mxu0
      %v2307 = vpop.f32.mrb[0].mxu0
      %v2308 = vadd.f32 0.0, %v2307
      %v2309 = vpop.f32.mrb[0].mxu0
      %2310 = vmatprep.mubr.bf16.mxu0 0
      %2311 = vmatmul.mubr.bf16.gmra.mrb[0].mxu0 %v2099
      %v2312 = vpop.f32.mrb[0].mxu0
      %v2313 = vadd.f32 0.0, %v2312
      %v2314 = vpop.f32.mrb[0].mxu0
      %v2315 = vpop.f32.mrb[0].mxu0
      %v2316 = vadd.f32 0.0, %v2315
      %v2317 = vpop.f32.mrb[0].mxu0
      %2318 = vmatprep.mubr.bf16.mxu0 0
      %2319 = vmatmul.mubr.bf16.gmra.mrb[0].mxu0 %v2100
      %v2320 = vpop.f32.mrb[0].mxu0
      %v2321 = vadd.f32 0.0, %v2320
      %v2322 = vpop.f32.mrb[0].mxu0
      %v2323 = vpop.f32.mrb[0].mxu0
      %v2324 = vadd.f32 0.0, %v2323
      %v2325 = vpop.f32.mrb[0].mxu0
      %2326 = vdwg.mxu0
      %v2327 = vadd.f32 %v2020, %v2201
      %v2328 = vadd.f32 %v2021, %v2204
      %v2329 = vadd.f32 %v2022, %v2209
      %v2330 = vadd.f32 %v2023, %v2212
      %v2331 = vadd.f32 %v2024, %v2217
      %v2332 = vadd.f32 %v2025, %v2220
      %v2333 = vadd.f32 %v2026, %v2225
      %v2334 = vadd.f32 %v2027, %v2228
      %v2335 = vadd.f32 %v2028, %v2233
      %v2336 = vadd.f32 %v2029, %v2236
      %v2337 = vadd.f32 %v2030, %v2241
      %v2338 = vadd.f32 %v2031, %v2244
      %v2339 = vadd.f32 %v2032, %v2249
      %v2340 = vadd.f32 %v2033, %v2252
      %v2341 = vadd.f32 %v2034, %v2257
      %v2342 = vadd.f32 %v2035, %v2260
      %v2343 = vadd.f32 %v2036, %v2265
      %v2344 = vadd.f32 %v2037, %v2268
      %v2345 = vadd.f32 %v2038, %v2273
      %v2346 = vadd.f32 %v2039, %v2276
      %v2347 = vadd.f32 %v2040, %v2281
      %v2348 = vadd.f32 %v2041, %v2284
      %v2349 = vadd.f32 %v2042, %v2289
      %v2350 = vadd.f32 %v2043, %v2292
      %v2351 = vadd.f32 %v2044, %v2297
      %v2352 = vadd.f32 %v2045, %v2300
      %v2353 = vadd.f32 %v2046, %v2305
      %v2354 = vadd.f32 %v2047, %v2308
      %v2355 = vadd.f32 %v2048, %v2313
      %v2356 = vadd.f32 %v2049, %v2316
      %v2357 = vadd.f32 %v2050, %v2321
      %v2358 = vadd.f32 %v2051, %v2324
      %v2359 = vld [vmem:[%s2052 + $0x1] sm:$0xff]
      %v2360 = vld [vmem:[%s2052 + $0x9] sm:$0xff]
      %v2361 = vld [vmem:[%s2052 + $0x19] sm:$0xff]
      %v2362 = vld [vmem:[%s2052 + $0x21] sm:$0xff]
      %v2363 = vld [vmem:[%s2052 + $0x31] sm:$0xff]
      %v2364 = vld [vmem:[%s2052 + $0x39] sm:$0xff]
      %v2365 = vld [vmem:[%s2052 + $0x49] sm:$0xff]
      %v2366 = vld [vmem:[%s2052 + $0x51] sm:$0xff]
      %v2367 = vld [vmem:[%s2052 + $0x61] sm:$0xff]
      %v2368 = vld [vmem:[%s2052 + $0x69] sm:$0xff]
      %v2369 = vld [vmem:[%s2052 + $0x79] sm:$0xff]
      %v2370 = vld [vmem:[%s2052 + $0x81] sm:$0xff]
      %v2371 = vld [vmem:[%s2052 + $0x91] sm:$0xff]
      %v2372 = vld [vmem:[%s2052 + $0x99] sm:$0xff]
      %v2373 = vld [vmem:[%s2052 + $0xa9] sm:$0xff]
      %v2374 = vld [vmem:[%s2052 + $0xb1] sm:$0xff]
      %v2375 = vld [vmem:[%s2052 + $0xc1] sm:$0xff]
      %v2376 = vld [vmem:[%s2052 + $0xc9] sm:$0xff]
      %v2377 = vld [vmem:[%s2052 + $0xd9] sm:$0xff]
      %v2378 = vld [vmem:[%s2052 + $0xe1] sm:$0xff]
      %v2379 = vld [vmem:[%s2052 + $0xf1] sm:$0xff]
      %v2380 = vld [vmem:[%s2052 + $0xf9] sm:$0xff]
      %v2381 = vld [vmem:[%s2052 + $0x109] sm:$0xff]
      %v2382 = vld [vmem:[%s2052 + $0x111] sm:$0xff]
      %v2383 = vld [vmem:[%s2052 + $0x121] sm:$0xff]
      %v2384 = vld [vmem:[%s2052 + $0x129] sm:$0xff]
      %v2385 = vld [vmem:[%s2052 + $0x139] sm:$0xff]
      %v2386 = vld [vmem:[%s2052 + $0x141] sm:$0xff]
      %v2387 = vld [vmem:[%s2052 + $0x151] sm:$0xff]
      %v2388 = vld [vmem:[%s2052 + $0x159] sm:$0xff]
      %v2389 = vld [vmem:[%s2052 + $0x169] sm:$0xff]
      %v2390 = vld [vmem:[%s2052 + $0x171] sm:$0xff]
      %v2391 = vpack.c.bf16 %v2360, %v2359
      %v2392 = vpack.c.bf16 %v2362, %v2361
      %v2393 = vpack.c.bf16 %v2364, %v2363
      %v2394 = vpack.c.bf16 %v2366, %v2365
      %v2395 = vpack.c.bf16 %v2368, %v2367
      %v2396 = vpack.c.bf16 %v2370, %v2369
      %v2397 = vpack.c.bf16 %v2372, %v2371
      %v2398 = vpack.c.bf16 %v2374, %v2373
      %v2399 = vpack.c.bf16 %v2376, %v2375
      %v2400 = vpack.c.bf16 %v2378, %v2377
      %v2401 = vpack.c.bf16 %v2380, %v2379
      %v2402 = vpack.c.bf16 %v2382, %v2381
      %v2403 = vpack.c.bf16 %v2384, %v2383
      %v2404 = vpack.c.bf16 %v2386, %v2385
      %v2405 = vpack.c.bf16 %v2388, %v2387
      %v2406 = vpack.c.bf16 %v2390, %v2389
      %s2407 = scalar_lea.vmem %s1, 448
      %v2408 = vld [vmem:[%s2407] sm:$0xf]
      %v2409 = vld [vmem:[%s2407 + $0x4] sm:$0xf]
      %v2410 = vld [vmem:[%s2407 + $0x8] sm:$0xf]
      %v2411 = vld [vmem:[%s2407 + $0xc] sm:$0xf]
      %v2412 = vld [vmem:[%s2407 + $0x10] sm:$0xf]
      %v2413 = vld [vmem:[%s2407 + $0x14] sm:$0xf]
      %v2414 = vld [vmem:[%s2407 + $0x18] sm:$0xf]
      %v2415 = vld [vmem:[%s2407 + $0x1c] sm:$0xf]
      %v2416 = vld [vmem:[%s2407 + $0x20] sm:$0xf]
      %v2417 = vld [vmem:[%s2407 + $0x24] sm:$0xf]
      %v2418 = vld [vmem:[%s2407 + $0x28] sm:$0xf]
      %v2419 = vld [vmem:[%s2407 + $0x2c] sm:$0xf]
      %v2420 = vld [vmem:[%s2407 + $0x30] sm:$0xf]
      %v2421 = vld [vmem:[%s2407 + $0x34] sm:$0xf]
      %v2422 = vld [vmem:[%s2407 + $0x38] sm:$0xf]
      %v2423 = vld [vmem:[%s2407 + $0x3c] sm:$0xf]
      %v2440 = vunpack.c.l.b16 %v2408
      %v2441 = vunpack.c.l.b16 %v2409
      %v2442 = vunpack.c.l.b16 %v2410
      %v2443 = vunpack.c.l.b16 %v2411
      %v2444 = vunpack.c.l.b16 %v2412
      %v2445 = vunpack.c.l.b16 %v2413
      %v2446 = vunpack.c.l.b16 %v2414
      %v2447 = vunpack.c.l.b16 %v2415
      %v2448 = vunpack.c.l.b16 %v2416
      %v2449 = vunpack.c.l.b16 %v2417
      %v2450 = vunpack.c.l.b16 %v2418
      %v2451 = vunpack.c.l.b16 %v2419
      %v2452 = vunpack.c.l.b16 %v2420
      %v2453 = vunpack.c.l.b16 %v2421
      %v2454 = vunpack.c.l.b16 %v2422
      %v2455 = vunpack.c.l.b16 %v2423
      %v2456 = vpack.c.b16 %v2441, %v2440
      %v2457 = vpack.c.b16 %v2443, %v2442
      %v2458 = vpack.c.b16 %v2445, %v2444
      %v2459 = vpack.c.b16 %v2447, %v2446
      %v2460 = vpack.c.b16 %v2449, %v2448
      %v2461 = vpack.c.b16 %v2451, %v2450
      %v2462 = vpack.c.b16 %v2453, %v2452
      %v2463 = vpack.c.b16 %v2455, %v2454
      %2472 = vmatprep.subr.bf16.mxu0 0
      %2473 = vmatpush1.bf16.msra.mxu0 %v2456
      %2474 = vmatprep.subr.bf16.mxu0 0
      %2475 = vmatpush1.bf16.msra.mxu0 %v2457
      %2476 = vmatprep.subr.bf16.mxu0 0
      %2477 = vmatpush1.bf16.msra.mxu0 %v2458
      %2478 = vmatprep.subr.bf16.mxu0 0
      %2479 = vmatpush1.bf16.msra.mxu0 %v2459
      %2480 = vmatprep.subr.bf16.mxu0 0
      %2481 = vmatpush1.bf16.msra.mxu0 %v2460
      %2482 = vmatprep.subr.bf16.mxu0 0
      %2483 = vmatpush1.bf16.msra.mxu0 %v2461
      %2484 = vmatprep.subr.bf16.mxu0 0
      %2485 = vmatpush1.bf16.msra.mxu0 %v2462
      %2486 = vmatprep.subr.bf16.mxu0 0
      %2487 = vmatpush1.bf16.msra.mxu0 %v2463
      %2488 = vmatprep.subr.bf16.mxu0 0
      %2489 = vmatpush1.bf16.msra.mxu0 0
      %2490 = vmatprep.subr.bf16.mxu0 0
      %2491 = vmatpush1.bf16.msra.mxu0 0
      %2492 = vmatprep.subr.bf16.mxu0 0
      %2493 = vmatpush1.bf16.msra.mxu0 0
      %2494 = vmatprep.subr.bf16.mxu0 0
      %2495 = vmatpush1.bf16.msra.mxu0 0
      %2496 = vmatprep.subr.bf16.mxu0 0
      %2497 = vmatpush1.bf16.msra.mxu0 0
      %2498 = vmatprep.subr.bf16.mxu0 0
      %2499 = vmatpush1.bf16.msra.mxu0 0
      %2500 = vmatprep.subr.bf16.mxu0 0
      %2501 = vmatpush1.bf16.msra.mxu0 0
      %2502 = vmatprep.subr.bf16.mxu0 0
      %2503 = vmatpush1.bf16.msra.mxu0 0
      %2504 = vmatprep.mubr.bf16.mxu0 0
      %2505 = vmatmul.mubr.bf16.gmra.mrb[0].mxu0 %v2391
      %v2506 = vpop.f32.mrb[0].mxu0
      %v2507 = vadd.f32 0.0, %v2506
      %v2508 = vpop.f32.mrb[0].mxu0
      %v2509 = vpop.f32.mrb[0].mxu0
      %v2510 = vadd.f32 0.0, %v2509
      %v2511 = vpop.f32.mrb[0].mxu0
      %2512 = vmatprep.mubr.bf16.mxu0 0
      %2513 = vmatmul.mubr.bf16.gmra.mrb[0].mxu0 %v2392
      %v2514 = vpop.f32.mrb[0].mxu0
      %v2515 = vadd.f32 0.0, %v2514
      %v2516 = vpop.f32.mrb[0].mxu0
      %v2517 = vpop.f32.mrb[0].mxu0
      %v2518 = vadd.f32 0.0, %v2517
      %v2519 = vpop.f32.mrb[0].mxu0
      %2520 = vmatprep.mubr.bf16.mxu0 0
      %2521 = vmatmul.mubr.bf16.gmra.mrb[0].mxu0 %v2393
      %v2522 = vpop.f32.mrb[0].mxu0
      %v2523 = vadd.f32 0.0, %v2522
      %v2524 = vpop.f32.mrb[0].mxu0
      %v2525 = vpop.f32.mrb[0].mxu0
      %v2526 = vadd.f32 0.0, %v2525
      %v2527 = vpop.f32.mrb[0].mxu0
      %2528 = vmatprep.mubr.bf16.mxu0 0
      %2529 = vmatmul.mubr.bf16.gmra.mrb[0].mxu0 %v2394
      %v2530 = vpop.f32.mrb[0].mxu0
      %v2531 = vadd.f32 0.0, %v2530
      %v2532 = vpop.f32.mrb[0].mxu0
      %v2533 = vpop.f32.mrb[0].mxu0
      %v2534 = vadd.f32 0.0, %v2533
      %v2535 = vpop.f32.mrb[0].mxu0
      %2536 = vmatprep.mubr.bf16.mxu0 0
      %2537 = vmatmul.mubr.bf16.gmra.mrb[0].mxu0 %v2395
      %v2538 = vpop.f32.mrb[0].mxu0
      %v2539 = vadd.f32 0.0, %v2538
      %v2540 = vpop.f32.mrb[0].mxu0
      %v2541 = vpop.f32.mrb[0].mxu0
      %v2542 = vadd.f32 0.0, %v2541
      %v2543 = vpop.f32.mrb[0].mxu0
      %2544 = vmatprep.mubr.bf16.mxu0 0
      %2545 = vmatmul.mubr.bf16.gmra.mrb[0].mxu0 %v2396
      %v2546 = vpop.f32.mrb[0].mxu0
      %v2547 = vadd.f32 0.0, %v2546
      %v2548 = vpop.f32.mrb[0].mxu0
      %v2549 = vpop.f32.mrb[0].mxu0
      %v2550 = vadd.f32 0.0, %v2549
      %v2551 = vpop.f32.mrb[0].mxu0
      %2552 = vmatprep.mubr.bf16.mxu0 0
      %2553 = vmatmul.mubr.bf16.gmra.mrb[0].mxu0 %v2397
      %v2554 = vpop.f32.mrb[0].mxu0
      %v2555 = vadd.f32 0.0, %v2554
      %v2556 = vpop.f32.mrb[0].mxu0
      %v2557 = vpop.f32.mrb[0].mxu0
      %v2558 = vadd.f32 0.0, %v2557
      %v2559 = vpop.f32.mrb[0].mxu0
      %2560 = vmatprep.mubr.bf16.mxu0 0
      %2561 = vmatmul.mubr.bf16.gmra.mrb[0].mxu0 %v2398
      %v2562 = vpop.f32.mrb[0].mxu0
      %v2563 = vadd.f32 0.0, %v2562
      %v2564 = vpop.f32.mrb[0].mxu0
      %v2565 = vpop.f32.mrb[0].mxu0
      %v2566 = vadd.f32 0.0, %v2565
      %v2567 = vpop.f32.mrb[0].mxu0
      %2568 = vmatprep.mubr.bf16.mxu0 0
      %2569 = vmatmul.mubr.bf16.gmra.mrb[0].mxu0 %v2399
      %v2570 = vpop.f32.mrb[0].mxu0
      %v2571 = vadd.f32 0.0, %v2570
      %v2572 = vpop.f32.mrb[0].mxu0
      %v2573 = vpop.f32.mrb[0].mxu0
      %v2574 = vadd.f32 0.0, %v2573
      %v2575 = vpop.f32.mrb[0].mxu0
      %2576 = vmatprep.mubr.bf16.mxu0 0
      %2577 = vmatmul.mubr.bf16.gmra.mrb[0].mxu0 %v2400
      %v2578 = vpop.f32.mrb[0].mxu0
      %v2579 = vadd.f32 0.0, %v2578
      %v2580 = vpop.f32.mrb[0].mxu0
      %v2581 = vpop.f32.mrb[0].mxu0
      %v2582 = vadd.f32 0.0, %v2581
      %v2583 = vpop.f32.mrb[0].mxu0
      %2584 = vmatprep.mubr.bf16.mxu0 0
      %2585 = vmatmul.mubr.bf16.gmra.mrb[0].mxu0 %v2401
      %v2586 = vpop.f32.mrb[0].mxu0
      %v2587 = vadd.f32 0.0, %v2586
      %v2588 = vpop.f32.mrb[0].mxu0
      %v2589 = vpop.f32.mrb[0].mxu0
      %v2590 = vadd.f32 0.0, %v2589
      %v2591 = vpop.f32.mrb[0].mxu0
      %2592 = vmatprep.mubr.bf16.mxu0 0
      %2593 = vmatmul.mubr.bf16.gmra.mrb[0].mxu0 %v2402
      %v2594 = vpop.f32.mrb[0].mxu0
      %v2595 = vadd.f32 0.0, %v2594
      %v2596 = vpop.f32.mrb[0].mxu0
      %v2597 = vpop.f32.mrb[0].mxu0
      %v2598 = vadd.f32 0.0, %v2597
      %v2599 = vpop.f32.mrb[0].mxu0
      %2600 = vmatprep.mubr.bf16.mxu0 0
      %2601 = vmatmul.mubr.bf16.gmra.mrb[0].mxu0 %v2403
      %v2602 = vpop.f32.mrb[0].mxu0
      %v2603 = vadd.f32 0.0, %v2602
      %v2604 = vpop.f32.mrb[0].mxu0
      %v2605 = vpop.f32.mrb[0].mxu0
      %v2606 = vadd.f32 0.0, %v2605
      %v2607 = vpop.f32.mrb[0].mxu0
      %2608 = vmatprep.mubr.bf16.mxu0 0
      %2609 = vmatmul.mubr.bf16.gmra.mrb[0].mxu0 %v2404
      %v2610 = vpop.f32.mrb[0].mxu0
      %v2611 = vadd.f32 0.0, %v2610
      %v2612 = vpop.f32.mrb[0].mxu0
      %v2613 = vpop.f32.mrb[0].mxu0
      %v2614 = vadd.f32 0.0, %v2613
      %v2615 = vpop.f32.mrb[0].mxu0
      %2616 = vmatprep.mubr.bf16.mxu0 0
      %2617 = vmatmul.mubr.bf16.gmra.mrb[0].mxu0 %v2405
      %v2618 = vpop.f32.mrb[0].mxu0
      %v2619 = vadd.f32 0.0, %v2618
      %v2620 = vpop.f32.mrb[0].mxu0
      %v2621 = vpop.f32.mrb[0].mxu0
      %v2622 = vadd.f32 0.0, %v2621
      %v2623 = vpop.f32.mrb[0].mxu0
      %2624 = vmatprep.mubr.bf16.mxu0 0
      %2625 = vmatmul.mubr.bf16.gmra.mrb[0].mxu0 %v2406
      %v2626 = vpop.f32.mrb[0].mxu0
      %v2627 = vadd.f32 0.0, %v2626
      %v2628 = vpop.f32.mrb[0].mxu0
      %v2629 = vpop.f32.mrb[0].mxu0
      %v2630 = vadd.f32 0.0, %v2629
      %v2631 = vpop.f32.mrb[0].mxu0
      %2632 = vdwg.mxu0
      %v2633 = vadd.f32 %v2327, %v2507
      %v2634 = vadd.f32 %v2328, %v2510
      %v2635 = vadd.f32 %v2329, %v2515
      %v2636 = vadd.f32 %v2330, %v2518
      %v2637 = vadd.f32 %v2331, %v2523
      %v2638 = vadd.f32 %v2332, %v2526
      %v2639 = vadd.f32 %v2333, %v2531
      %v2640 = vadd.f32 %v2334, %v2534
      %v2641 = vadd.f32 %v2335, %v2539
      %v2642 = vadd.f32 %v2336, %v2542
      %v2643 = vadd.f32 %v2337, %v2547
      %v2644 = vadd.f32 %v2338, %v2550
      %v2645 = vadd.f32 %v2339, %v2555
      %v2646 = vadd.f32 %v2340, %v2558
      %v2647 = vadd.f32 %v2341, %v2563
      %v2648 = vadd.f32 %v2342, %v2566
      %v2649 = vadd.f32 %v2343, %v2571
      %v2650 = vadd.f32 %v2344, %v2574
      %v2651 = vadd.f32 %v2345, %v2579
      %v2652 = vadd.f32 %v2346, %v2582
      %v2653 = vadd.f32 %v2347, %v2587
      %v2654 = vadd.f32 %v2348, %v2590
      %v2655 = vadd.f32 %v2349, %v2595
      %v2656 = vadd.f32 %v2350, %v2598
      %v2657 = vadd.f32 %v2351, %v2603
      %v2658 = vadd.f32 %v2352, %v2606
      %v2659 = vadd.f32 %v2353, %v2611
      %v2660 = vadd.f32 %v2354, %v2614
      %v2661 = vadd.f32 %v2355, %v2619
      %v2662 = vadd.f32 %v2356, %v2622
      %v2663 = vadd.f32 %v2357, %v2627
      %v2664 = vadd.f32 %v2358, %v2630
      %v2665 = vld [vmem:[%s2052 + $0x2] sm:$0xff]
      %v2666 = vld [vmem:[%s2052 + $0xa] sm:$0xff]
      %v2667 = vld [vmem:[%s2052 + $0x1a] sm:$0xff]
      %v2668 = vld [vmem:[%s2052 + $0x22] sm:$0xff]
      %v2669 = vld [vmem:[%s2052 + $0x32] sm:$0xff]
      %v2670 = vld [vmem:[%s2052 + $0x3a] sm:$0xff]
      %v2671 = vld [vmem:[%s2052 + $0x4a] sm:$0xff]
      %v2672 = vld [vmem:[%s2052 + $0x52] sm:$0xff]
      %v2673 = vld [vmem:[%s2052 + $0x62] sm:$0xff]
      %v2674 = vld [vmem:[%s2052 + $0x6a] sm:$0xff]
      %v2675 = vld [vmem:[%s2052 + $0x7a] sm:$0xff]
      %v2676 = vld [vmem:[%s2052 + $0x82] sm:$0xff]
      %v2677 = vld [vmem:[%s2052 + $0x92] sm:$0xff]
      %v2678 = vld [vmem:[%s2052 + $0x9a] sm:$0xff]
      %v2679 = vld [vmem:[%s2052 + $0xaa] sm:$0xff]
      %v2680 = vld [vmem:[%s2052 + $0xb2] sm:$0xff]
      %v2681 = vld [vmem:[%s2052 + $0xc2] sm:$0xff]
      %v2682 = vld [vmem:[%s2052 + $0xca] sm:$0xff]
      %v2683 = vld [vmem:[%s2052 + $0xda] sm:$0xff]
      %v2684 = vld [vmem:[%s2052 + $0xe2] sm:$0xff]
      %v2685 = vld [vmem:[%s2052 + $0xf2] sm:$0xff]
      %v2686 = vld [vmem:[%s2052 + $0xfa] sm:$0xff]
      %v2687 = vld [vmem:[%s2052 + $0x10a] sm:$0xff]
      %v2688 = vld [vmem:[%s2052 + $0x112] sm:$0xff]
      %v2689 = vld [vmem:[%s2052 + $0x122] sm:$0xff]
      %v2690 = vld [vmem:[%s2052 + $0x12a] sm:$0xff]
      %v2691 = vld [vmem:[%s2052 + $0x13a] sm:$0xff]
      %v2692 = vld [vmem:[%s2052 + $0x142] sm:$0xff]
      %v2693 = vld [vmem:[%s2052 + $0x152] sm:$0xff]
      %v2694 = vld [vmem:[%s2052 + $0x15a] sm:$0xff]
      %v2695 = vld [vmem:[%s2052 + $0x16a] sm:$0xff]
      %v2696 = vld [vmem:[%s2052 + $0x172] sm:$0xff]
      %v2697 = vpack.c.bf16 %v2666, %v2665
      %v2698 = vpack.c.bf16 %v2668, %v2667
      %v2699 = vpack.c.bf16 %v2670, %v2669
      %v2700 = vpack.c.bf16 %v2672, %v2671
      %v2701 = vpack.c.bf16 %v2674, %v2673
      %v2702 = vpack.c.bf16 %v2676, %v2675
      %v2703 = vpack.c.bf16 %v2678, %v2677
      %v2704 = vpack.c.bf16 %v2680, %v2679
      %v2705 = vpack.c.bf16 %v2682, %v2681
      %v2706 = vpack.c.bf16 %v2684, %v2683
      %v2707 = vpack.c.bf16 %v2686, %v2685
      %v2708 = vpack.c.bf16 %v2688, %v2687
      %v2709 = vpack.c.bf16 %v2690, %v2689
      %v2710 = vpack.c.bf16 %v2692, %v2691
      %v2711 = vpack.c.bf16 %v2694, %v2693
      %v2712 = vpack.c.bf16 %v2696, %v2695
      %s2713 = scalar_lea.vmem %s1, 512
      %v2714 = vld [vmem:[%s2713] sm:$0xf]
      %v2715 = vld [vmem:[%s2713 + $0x4] sm:$0xf]
      %v2716 = vld [vmem:[%s2713 + $0x8] sm:$0xf]
      %v2717 = vld [vmem:[%s2713 + $0xc] sm:$0xf]
      %v2718 = vld [vmem:[%s2713 + $0x10] sm:$0xf]
      %v2719 = vld [vmem:[%s2713 + $0x14] sm:$0xf]
      %v2720 = vld [vmem:[%s2713 + $0x18] sm:$0xf]
      %v2721 = vld [vmem:[%s2713 + $0x1c] sm:$0xf]
      %v2722 = vld [vmem:[%s2713 + $0x20] sm:$0xf]
      %v2723 = vld [vmem:[%s2713 + $0x24] sm:$0xf]
      %v2724 = vld [vmem:[%s2713 + $0x28] sm:$0xf]
      %v2725 = vld [vmem:[%s2713 + $0x2c] sm:$0xf]
      %v2726 = vld [vmem:[%s2713 + $0x30] sm:$0xf]
      %v2727 = vld [vmem:[%s2713 + $0x34] sm:$0xf]
      %v2728 = vld [vmem:[%s2713 + $0x38] sm:$0xf]
      %v2729 = vld [vmem:[%s2713 + $0x3c] sm:$0xf]
      %v2746 = vunpack.c.l.b16 %v2714
      %v2747 = vunpack.c.l.b16 %v2715
      %v2748 = vunpack.c.l.b16 %v2716
      %v2749 = vunpack.c.l.b16 %v2717
      %v2750 = vunpack.c.l.b16 %v2718
      %v2751 = vunpack.c.l.b16 %v2719
      %v2752 = vunpack.c.l.b16 %v2720
      %v2753 = vunpack.c.l.b16 %v2721
      %v2754 = vunpack.c.l.b16 %v2722
      %v2755 = vunpack.c.l.b16 %v2723
      %v2756 = vunpack.c.l.b16 %v2724
      %v2757 = vunpack.c.l.b16 %v2725
      %v2758 = vunpack.c.l.b16 %v2726
      %v2759 = vunpack.c.l.b16 %v2727
      %v2760 = vunpack.c.l.b16 %v2728
      %v2761 = vunpack.c.l.b16 %v2729
      %v2762 = vpack.c.b16 %v2747, %v2746
      %v2763 = vpack.c.b16 %v2749, %v2748
      %v2764 = vpack.c.b16 %v2751, %v2750
      %v2765 = vpack.c.b16 %v2753, %v2752
      %v2766 = vpack.c.b16 %v2755, %v2754
      %v2767 = vpack.c.b16 %v2757, %v2756
      %v2768 = vpack.c.b16 %v2759, %v2758
      %v2769 = vpack.c.b16 %v2761, %v2760
      %2778 = vmatprep.subr.bf16.mxu0 0
      %2779 = vmatpush1.bf16.msra.mxu0 %v2762
      %2780 = vmatprep.subr.bf16.mxu0 0
      %2781 = vmatpush1.bf16.msra.mxu0 %v2763
      %2782 = vmatprep.subr.bf16.mxu0 0
      %2783 = vmatpush1.bf16.msra.mxu0 %v2764
      %2784 = vmatprep.subr.bf16.mxu0 0
      %2785 = vmatpush1.bf16.msra.mxu0 %v2765
      %2786 = vmatprep.subr.bf16.mxu0 0
      %2787 = vmatpush1.bf16.msra.mxu0 %v2766
      %2788 = vmatprep.subr.bf16.mxu0 0
      %2789 = vmatpush1.bf16.msra.mxu0 %v2767
      %2790 = vmatprep.subr.bf16.mxu0 0
      %2791 = vmatpush1.bf16.msra.mxu0 %v2768
      %2792 = vmatprep.subr.bf16.mxu0 0
      %2793 = vmatpush1.bf16.msra.mxu0 %v2769
      %2794 = vmatprep.subr.bf16.mxu0 0
      %2795 = vmatpush1.bf16.msra.mxu0 0
      %2796 = vmatprep.subr.bf16.mxu0 0
      %2797 = vmatpush1.bf16.msra.mxu0 0
      %2798 = vmatprep.subr.bf16.mxu0 0
      %2799 = vmatpush1.bf16.msra.mxu0 0
      %2800 = vmatprep.subr.bf16.mxu0 0
      %2801 = vmatpush1.bf16.msra.mxu0 0
      %2802 = vmatprep.subr.bf16.mxu0 0
      %2803 = vmatpush1.bf16.msra.mxu0 0
      %2804 = vmatprep.subr.bf16.mxu0 0
      %2805 = vmatpush1.bf16.msra.mxu0 0
      %2806 = vmatprep.subr.bf16.mxu0 0
      %2807 = vmatpush1.bf16.msra.mxu0 0
      %2808 = vmatprep.subr.bf16.mxu0 0
      %2809 = vmatpush1.bf16.msra.mxu0 0
      %2810 = vmatprep.mubr.bf16.mxu0 0
      %2811 = vmatmul.mubr.bf16.gmra.mrb[0].mxu0 %v2697
      %v2812 = vpop.f32.mrb[0].mxu0
      %v2813 = vadd.f32 0.0, %v2812
      %v2814 = vpop.f32.mrb[0].mxu0
      %v2815 = vpop.f32.mrb[0].mxu0
      %v2816 = vadd.f32 0.0, %v2815
      %v2817 = vpop.f32.mrb[0].mxu0
      %2818 = vmatprep.mubr.bf16.mxu0 0
      %2819 = vmatmul.mubr.bf16.gmra.mrb[0].mxu0 %v2698
      %v2820 = vpop.f32.mrb[0].mxu0
      %v2821 = vadd.f32 0.0, %v2820
      %v2822 = vpop.f32.mrb[0].mxu0
      %v2823 = vpop.f32.mrb[0].mxu0
      %v2824 = vadd.f32 0.0, %v2823
      %v2825 = vpop.f32.mrb[0].mxu0
      %2826 = vmatprep.mubr.bf16.mxu0 0
      %2827 = vmatmul.mubr.bf16.gmra.mrb[0].mxu0 %v2699
      %v2828 = vpop.f32.mrb[0].mxu0
      %v2829 = vadd.f32 0.0, %v2828
      %v2830 = vpop.f32.mrb[0].mxu0
      %v2831 = vpop.f32.mrb[0].mxu0
      %v2832 = vadd.f32 0.0, %v2831
      %v2833 = vpop.f32.mrb[0].mxu0
      %2834 = vmatprep.mubr.bf16.mxu0 0
      %2835 = vmatmul.mubr.bf16.gmra.mrb[0].mxu0 %v2700
      %v2836 = vpop.f32.mrb[0].mxu0
      %v2837 = vadd.f32 0.0, %v2836
      %v2838 = vpop.f32.mrb[0].mxu0
      %v2839 = vpop.f32.mrb[0].mxu0
      %v2840 = vadd.f32 0.0, %v2839
      %v2841 = vpop.f32.mrb[0].mxu0
      %2842 = vmatprep.mubr.bf16.mxu0 0
      %2843 = vmatmul.mubr.bf16.gmra.mrb[0].mxu0 %v2701
      %v2844 = vpop.f32.mrb[0].mxu0
      %v2845 = vadd.f32 0.0, %v2844
      %v2846 = vpop.f32.mrb[0].mxu0
      %v2847 = vpop.f32.mrb[0].mxu0
      %v2848 = vadd.f32 0.0, %v2847
      %v2849 = vpop.f32.mrb[0].mxu0
      %2850 = vmatprep.mubr.bf16.mxu0 0
      %2851 = vmatmul.mubr.bf16.gmra.mrb[0].mxu0 %v2702
      %v2852 = vpop.f32.mrb[0].mxu0
      %v2853 = vadd.f32 0.0, %v2852
      %v2854 = vpop.f32.mrb[0].mxu0
      %v2855 = vpop.f32.mrb[0].mxu0
      %v2856 = vadd.f32 0.0, %v2855
      %v2857 = vpop.f32.mrb[0].mxu0
      %2858 = vmatprep.mubr.bf16.mxu0 0
      %2859 = vmatmul.mubr.bf16.gmra.mrb[0].mxu0 %v2703
      %v2860 = vpop.f32.mrb[0].mxu0
      %v2861 = vadd.f32 0.0, %v2860
      %v2862 = vpop.f32.mrb[0].mxu0
      %v2863 = vpop.f32.mrb[0].mxu0
      %v2864 = vadd.f32 0.0, %v2863
      %v2865 = vpop.f32.mrb[0].mxu0
      %2866 = vmatprep.mubr.bf16.mxu0 0
      %2867 = vmatmul.mubr.bf16.gmra.mrb[0].mxu0 %v2704
      %v2868 = vpop.f32.mrb[0].mxu0
      %v2869 = vadd.f32 0.0, %v2868
      %v2870 = vpop.f32.mrb[0].mxu0
      %v2871 = vpop.f32.mrb[0].mxu0
      %v2872 = vadd.f32 0.0, %v2871
      %v2873 = vpop.f32.mrb[0].mxu0
      %2874 = vmatprep.mubr.bf16.mxu0 0
      %2875 = vmatmul.mubr.bf16.gmra.mrb[0].mxu0 %v2705
      %v2876 = vpop.f32.mrb[0].mxu0
      %v2877 = vadd.f32 0.0, %v2876
      %v2878 = vpop.f32.mrb[0].mxu0
      %v2879 = vpop.f32.mrb[0].mxu0
      %v2880 = vadd.f32 0.0, %v2879
      %v2881 = vpop.f32.mrb[0].mxu0
      %2882 = vmatprep.mubr.bf16.mxu0 0
      %2883 = vmatmul.mubr.bf16.gmra.mrb[0].mxu0 %v2706
      %v2884 = vpop.f32.mrb[0].mxu0
      %v2885 = vadd.f32 0.0, %v2884
      %v2886 = vpop.f32.mrb[0].mxu0
      %v2887 = vpop.f32.mrb[0].mxu0
      %v2888 = vadd.f32 0.0, %v2887
      %v2889 = vpop.f32.mrb[0].mxu0
      %2890 = vmatprep.mubr.bf16.mxu0 0
      %2891 = vmatmul.mubr.bf16.gmra.mrb[0].mxu0 %v2707
      %v2892 = vpop.f32.mrb[0].mxu0
      %v2893 = vadd.f32 0.0, %v2892
      %v2894 = vpop.f32.mrb[0].mxu0
      %v2895 = vpop.f32.mrb[0].mxu0
      %v2896 = vadd.f32 0.0, %v2895
      %v2897 = vpop.f32.mrb[0].mxu0
      %2898 = vmatprep.mubr.bf16.mxu0 0
      %2899 = vmatmul.mubr.bf16.gmra.mrb[0].mxu0 %v2708
      %v2900 = vpop.f32.mrb[0].mxu0
      %v2901 = vadd.f32 0.0, %v2900
      %v2902 = vpop.f32.mrb[0].mxu0
      %v2903 = vpop.f32.mrb[0].mxu0
      %v2904 = vadd.f32 0.0, %v2903
      %v2905 = vpop.f32.mrb[0].mxu0
      %2906 = vmatprep.mubr.bf16.mxu0 0
      %2907 = vmatmul.mubr.bf16.gmra.mrb[0].mxu0 %v2709
      %v2908 = vpop.f32.mrb[0].mxu0
      %v2909 = vadd.f32 0.0, %v2908
      %v2910 = vpop.f32.mrb[0].mxu0
      %v2911 = vpop.f32.mrb[0].mxu0
      %v2912 = vadd.f32 0.0, %v2911
      %v2913 = vpop.f32.mrb[0].mxu0
      %2914 = vmatprep.mubr.bf16.mxu0 0
      %2915 = vmatmul.mubr.bf16.gmra.mrb[0].mxu0 %v2710
      %v2916 = vpop.f32.mrb[0].mxu0
      %v2917 = vadd.f32 0.0, %v2916
      %v2918 = vpop.f32.mrb[0].mxu0
      %v2919 = vpop.f32.mrb[0].mxu0
      %v2920 = vadd.f32 0.0, %v2919
      %v2921 = vpop.f32.mrb[0].mxu0
      %2922 = vmatprep.mubr.bf16.mxu0 0
      %2923 = vmatmul.mubr.bf16.gmra.mrb[0].mxu0 %v2711
      %v2924 = vpop.f32.mrb[0].mxu0
      %v2925 = vadd.f32 0.0, %v2924
      %v2926 = vpop.f32.mrb[0].mxu0
      %v2927 = vpop.f32.mrb[0].mxu0
      %v2928 = vadd.f32 0.0, %v2927
      %v2929 = vpop.f32.mrb[0].mxu0
      %2930 = vmatprep.mubr.bf16.mxu0 0
      %2931 = vmatmul.mubr.bf16.gmra.mrb[0].mxu0 %v2712
      %v2932 = vpop.f32.mrb[0].mxu0
      %v2933 = vadd.f32 0.0, %v2932
      %v2934 = vpop.f32.mrb[0].mxu0
      %v2935 = vpop.f32.mrb[0].mxu0
      %v2936 = vadd.f32 0.0, %v2935
      %v2937 = vpop.f32.mrb[0].mxu0
      %2938 = vdwg.mxu0
      %v2939 = vadd.f32 %v2633, %v2813
      %v2940 = vadd.f32 %v2634, %v2816
      %v2941 = vadd.f32 %v2635, %v2821
      %v2942 = vadd.f32 %v2636, %v2824
      %v2943 = vadd.f32 %v2637, %v2829
      %v2944 = vadd.f32 %v2638, %v2832
      %v2945 = vadd.f32 %v2639, %v2837
      %v2946 = vadd.f32 %v2640, %v2840
      %v2947 = vadd.f32 %v2641, %v2845
      %v2948 = vadd.f32 %v2642, %v2848
      %v2949 = vadd.f32 %v2643, %v2853
      %v2950 = vadd.f32 %v2644, %v2856
      %v2951 = vadd.f32 %v2645, %v2861
      %v2952 = vadd.f32 %v2646, %v2864
      %v2953 = vadd.f32 %v2647, %v2869
      %v2954 = vadd.f32 %v2648, %v2872
      %v2955 = vadd.f32 %v2649, %v2877
      %v2956 = vadd.f32 %v2650, %v2880
      %v2957 = vadd.f32 %v2651, %v2885
      %v2958 = vadd.f32 %v2652, %v2888
      %v2959 = vadd.f32 %v2653, %v2893
      %v2960 = vadd.f32 %v2654, %v2896
      %v2961 = vadd.f32 %v2655, %v2901
      %v2962 = vadd.f32 %v2656, %v2904
      %v2963 = vadd.f32 %v2657, %v2909
      %v2964 = vadd.f32 %v2658, %v2912
      %v2965 = vadd.f32 %v2659, %v2917
      %v2966 = vadd.f32 %v2660, %v2920
      %v2967 = vadd.f32 %v2661, %v2925
      %v2968 = vadd.f32 %v2662, %v2928
      %v2969 = vadd.f32 %v2663, %v2933
      %v2970 = vadd.f32 %v2664, %v2936
      %v2971 = vld [vmem:[%s2] sm:$0x1]
      %v2973 = vlaneseq
      %v2974 = vshrl.u32 %v2973, 7
      %v2975 = vsub.s32 0, %v2974
      %v2976 = vrot.slane %v2971, %v2975
      %v2978 = vadd.f32 %v2939, %v2976
      %v2979 = vadd.f32 %v2940, %v2976
      %v2980 = vadd.f32 %v2941, %v2976
      %v2981 = vadd.f32 %v2942, %v2976
      %v2982 = vadd.f32 %v2943, %v2976
      %v2983 = vadd.f32 %v2944, %v2976
      %v2984 = vadd.f32 %v2945, %v2976
      %v2985 = vadd.f32 %v2946, %v2976
      %v2986 = vadd.f32 %v2947, %v2976
      %v2987 = vadd.f32 %v2948, %v2976
      %v2988 = vadd.f32 %v2949, %v2976
      %v2989 = vadd.f32 %v2950, %v2976
      %v2990 = vadd.f32 %v2951, %v2976
      %v2991 = vadd.f32 %v2952, %v2976
      %v2992 = vadd.f32 %v2953, %v2976
      %v2993 = vadd.f32 %v2954, %v2976
      %v2994 = vadd.f32 %v2955, %v2976
      %v2995 = vadd.f32 %v2956, %v2976
      %v2996 = vadd.f32 %v2957, %v2976
      %v2997 = vadd.f32 %v2958, %v2976
      %v2998 = vadd.f32 %v2959, %v2976
      %v2999 = vadd.f32 %v2960, %v2976
      %v3000 = vadd.f32 %v2961, %v2976
      %v3001 = vadd.f32 %v2962, %v2976
      %v3002 = vadd.f32 %v2963, %v2976
      %v3003 = vadd.f32 %v2964, %v2976
      %v3004 = vadd.f32 %v2965, %v2976
      %v3005 = vadd.f32 %v2966, %v2976
      %v3006 = vadd.f32 %v2967, %v2976
      %v3007 = vadd.f32 %v2968, %v2976
      %v3008 = vadd.f32 %v2969, %v2976
      %v3009 = vadd.f32 %v2970, %v2976
      %v3010 = vmax.f32 %v2978, 0.0
      %v3011 = vmax.f32 %v2979, 0.0
      %v3012 = vmax.f32 %v2980, 0.0
      %v3013 = vmax.f32 %v2981, 0.0
      %v3014 = vmax.f32 %v2982, 0.0
      %v3015 = vmax.f32 %v2983, 0.0
      %v3016 = vmax.f32 %v2984, 0.0
      %v3017 = vmax.f32 %v2985, 0.0
      %v3018 = vmax.f32 %v2986, 0.0
      %v3019 = vmax.f32 %v2987, 0.0
      %v3020 = vmax.f32 %v2988, 0.0
      %v3021 = vmax.f32 %v2989, 0.0
      %v3022 = vmax.f32 %v2990, 0.0
      %v3023 = vmax.f32 %v2991, 0.0
      %v3024 = vmax.f32 %v2992, 0.0
      %v3025 = vmax.f32 %v2993, 0.0
      %v3026 = vmax.f32 %v2994, 0.0
      %v3027 = vmax.f32 %v2995, 0.0
      %v3028 = vmax.f32 %v2996, 0.0
      %v3029 = vmax.f32 %v2997, 0.0
      %v3030 = vmax.f32 %v2998, 0.0
      %v3031 = vmax.f32 %v2999, 0.0
      %v3032 = vmax.f32 %v3000, 0.0
      %v3033 = vmax.f32 %v3001, 0.0
      %v3034 = vmax.f32 %v3002, 0.0
      %v3035 = vmax.f32 %v3003, 0.0
      %v3036 = vmax.f32 %v3004, 0.0
      %v3037 = vmax.f32 %v3005, 0.0
      %v3038 = vmax.f32 %v3006, 0.0
      %v3039 = vmax.f32 %v3007, 0.0
      %v3040 = vmax.f32 %v3008, 0.0
      %v3041 = vmax.f32 %v3009, 0.0
      %v3042 = vpack.c.bf16 %v3011, %v3010
      %v3043 = vpack.c.bf16 %v3013, %v3012
      %v3044 = vpack.c.bf16 %v3015, %v3014
      %v3045 = vpack.c.bf16 %v3017, %v3016
      %v3046 = vpack.c.bf16 %v3019, %v3018
      %v3047 = vpack.c.bf16 %v3021, %v3020
      %v3048 = vpack.c.bf16 %v3023, %v3022
      %v3049 = vpack.c.bf16 %v3025, %v3024
      %v3050 = vpack.c.bf16 %v3027, %v3026
      %v3051 = vpack.c.bf16 %v3029, %v3028
      %v3052 = vpack.c.bf16 %v3031, %v3030
      %v3053 = vpack.c.bf16 %v3033, %v3032
      %v3054 = vpack.c.bf16 %v3035, %v3034
      %v3055 = vpack.c.bf16 %v3037, %v3036
      %v3056 = vpack.c.bf16 %v3039, %v3038
      %v3057 = vpack.c.bf16 %v3041, %v3040
      %v3058 = vld [vmem:[%s3] sm:$0xf]
      %v3059 = vld [vmem:[%s3 + $0x4] sm:$0xf]
      %v3060 = vld [vmem:[%s3 + $0x8] sm:$0xf]
      %v3061 = vld [vmem:[%s3 + $0xc] sm:$0xf]
      %v3062 = vld [vmem:[%s3 + $0x10] sm:$0xf]
      %v3063 = vld [vmem:[%s3 + $0x14] sm:$0xf]
      %v3064 = vld [vmem:[%s3 + $0x18] sm:$0xf]
      %v3065 = vld [vmem:[%s3 + $0x1c] sm:$0xf]
      %v3066 = vld [vmem:[%s3 + $0x20] sm:$0xf]
      %v3067 = vld [vmem:[%s3 + $0x24] sm:$0xf]
      %v3068 = vld [vmem:[%s3 + $0x28] sm:$0xf]
      %v3069 = vld [vmem:[%s3 + $0x2c] sm:$0xf]
      %v3070 = vld [vmem:[%s3 + $0x30] sm:$0xf]
      %v3071 = vld [vmem:[%s3 + $0x34] sm:$0xf]
      %v3072 = vld [vmem:[%s3 + $0x38] sm:$0xf]
      %v3073 = vld [vmem:[%s3 + $0x3c] sm:$0xf]
      %v3074 = vld [vmem:[%s4] sm:$0x1]
      %v3076 = vlaneseq
      %v3077 = vshrl.u32 %v3076, 7
      %v3078 = vsub.s32 0, %v3077
      %v3079 = vrot.slane %v3074, %v3078
      %v3097 = vunpack.c.l.b16 %v3058
      %v3098 = vunpack.c.l.b16 %v3059
      %v3099 = vunpack.c.l.b16 %v3060
      %v3100 = vunpack.c.l.b16 %v3061
      %v3101 = vunpack.c.l.b16 %v3062
      %v3102 = vunpack.c.l.b16 %v3063
      %v3103 = vunpack.c.l.b16 %v3064
      %v3104 = vunpack.c.l.b16 %v3065
      %v3105 = vunpack.c.l.b16 %v3066
      %v3106 = vunpack.c.l.b16 %v3067
      %v3107 = vunpack.c.l.b16 %v3068
      %v3108 = vunpack.c.l.b16 %v3069
      %v3109 = vunpack.c.l.b16 %v3070
      %v3110 = vunpack.c.l.b16 %v3071
      %v3111 = vunpack.c.l.b16 %v3072
      %v3112 = vunpack.c.l.b16 %v3073
      %v3113 = vpack.c.b16 %v3098, %v3097
      %v3114 = vpack.c.b16 %v3100, %v3099
      %v3115 = vpack.c.b16 %v3102, %v3101
      %v3116 = vpack.c.b16 %v3104, %v3103
      %v3117 = vpack.c.b16 %v3106, %v3105
      %v3118 = vpack.c.b16 %v3108, %v3107
      %v3119 = vpack.c.b16 %v3110, %v3109
      %v3120 = vpack.c.b16 %v3112, %v3111
      %3129 = vmatprep.subr.bf16.mxu0 0
      %3130 = vmatpush1.bf16.msra.mxu0 %v3113
      %3131 = vmatprep.subr.bf16.mxu0 0
      %3132 = vmatpush1.bf16.msra.mxu0 %v3114
      %3133 = vmatprep.subr.bf16.mxu0 0
      %3134 = vmatpush1.bf16.msra.mxu0 %v3115
      %3135 = vmatprep.subr.bf16.mxu0 0
      %3136 = vmatpush1.bf16.msra.mxu0 %v3116
      %3137 = vmatprep.subr.bf16.mxu0 0
      %3138 = vmatpush1.bf16.msra.mxu0 %v3117
      %3139 = vmatprep.subr.bf16.mxu0 0
      %3140 = vmatpush1.bf16.msra.mxu0 %v3118
      %3141 = vmatprep.subr.bf16.mxu0 0
      %3142 = vmatpush1.bf16.msra.mxu0 %v3119
      %3143 = vmatprep.subr.bf16.mxu0 0
      %3144 = vmatpush1.bf16.msra.mxu0 %v3120
      %3145 = vmatprep.subr.bf16.mxu0 0
      %3146 = vmatpush1.bf16.msra.mxu0 0
      %3147 = vmatprep.subr.bf16.mxu0 0
      %3148 = vmatpush1.bf16.msra.mxu0 0
      %3149 = vmatprep.subr.bf16.mxu0 0
      %3150 = vmatpush1.bf16.msra.mxu0 0
      %3151 = vmatprep.subr.bf16.mxu0 0
      %3152 = vmatpush1.bf16.msra.mxu0 0
      %3153 = vmatprep.subr.bf16.mxu0 0
      %3154 = vmatpush1.bf16.msra.mxu0 0
      %3155 = vmatprep.subr.bf16.mxu0 0
      %3156 = vmatpush1.bf16.msra.mxu0 0
      %3157 = vmatprep.subr.bf16.mxu0 0
      %3158 = vmatpush1.bf16.msra.mxu0 0
      %3159 = vmatprep.subr.bf16.mxu0 0
      %3160 = vmatpush1.bf16.msra.mxu0 0
      %3161 = vmatprep.mubr.bf16.mxu0 0
      %3162 = vmatmul.mubr.bf16.gmra.mrb[0].mxu0 %v3042
      %v3163 = vpop.f32.mrb[0].mxu0
      %v3164 = vadd.f32 %v3079, %v3163
      %v3165 = vpop.f32.mrb[0].mxu0
      %v3166 = vpop.f32.mrb[0].mxu0
      %v3167 = vadd.f32 %v3079, %v3166
      %v3168 = vpop.f32.mrb[0].mxu0
      %3169 = vmatprep.mubr.bf16.mxu0 0
      %3170 = vmatmul.mubr.bf16.gmra.mrb[0].mxu0 %v3043
      %v3171 = vpop.f32.mrb[0].mxu0
      %v3172 = vadd.f32 %v3079, %v3171
      %v3173 = vpop.f32.mrb[0].mxu0
      %v3174 = vpop.f32.mrb[0].mxu0
      %v3175 = vadd.f32 %v3079, %v3174
      %v3176 = vpop.f32.mrb[0].mxu0
      %3177 = vmatprep.mubr.bf16.mxu0 0
      %3178 = vmatmul.mubr.bf16.gmra.mrb[0].mxu0 %v3044
      %v3179 = vpop.f32.mrb[0].mxu0
      %v3180 = vadd.f32 %v3079, %v3179
      %v3181 = vpop.f32.mrb[0].mxu0
      %v3182 = vpop.f32.mrb[0].mxu0
      %v3183 = vadd.f32 %v3079, %v3182
      %v3184 = vpop.f32.mrb[0].mxu0
      %3185 = vmatprep.mubr.bf16.mxu0 0
      %3186 = vmatmul.mubr.bf16.gmra.mrb[0].mxu0 %v3045
      %v3187 = vpop.f32.mrb[0].mxu0
      %v3188 = vadd.f32 %v3079, %v3187
      %v3189 = vpop.f32.mrb[0].mxu0
      %v3190 = vpop.f32.mrb[0].mxu0
      %v3191 = vadd.f32 %v3079, %v3190
      %v3192 = vpop.f32.mrb[0].mxu0
      %3193 = vmatprep.mubr.bf16.mxu0 0
      %3194 = vmatmul.mubr.bf16.gmra.mrb[0].mxu0 %v3046
      %v3195 = vpop.f32.mrb[0].mxu0
      %v3196 = vadd.f32 %v3079, %v3195
      %v3197 = vpop.f32.mrb[0].mxu0
      %v3198 = vpop.f32.mrb[0].mxu0
      %v3199 = vadd.f32 %v3079, %v3198
      %v3200 = vpop.f32.mrb[0].mxu0
      %3201 = vmatprep.mubr.bf16.mxu0 0
      %3202 = vmatmul.mubr.bf16.gmra.mrb[0].mxu0 %v3047
      %v3203 = vpop.f32.mrb[0].mxu0
      %v3204 = vadd.f32 %v3079, %v3203
      %v3205 = vpop.f32.mrb[0].mxu0
      %v3206 = vpop.f32.mrb[0].mxu0
      %v3207 = vadd.f32 %v3079, %v3206
      %v3208 = vpop.f32.mrb[0].mxu0
      %3209 = vmatprep.mubr.bf16.mxu0 0
      %3210 = vmatmul.mubr.bf16.gmra.mrb[0].mxu0 %v3048
      %v3211 = vpop.f32.mrb[0].mxu0
      %v3212 = vadd.f32 %v3079, %v3211
      %v3213 = vpop.f32.mrb[0].mxu0
      %v3214 = vpop.f32.mrb[0].mxu0
      %v3215 = vadd.f32 %v3079, %v3214
      %v3216 = vpop.f32.mrb[0].mxu0
      %3217 = vmatprep.mubr.bf16.mxu0 0
      %3218 = vmatmul.mubr.bf16.gmra.mrb[0].mxu0 %v3049
      %v3219 = vpop.f32.mrb[0].mxu0
      %v3220 = vadd.f32 %v3079, %v3219
      %v3221 = vpop.f32.mrb[0].mxu0
      %v3222 = vpop.f32.mrb[0].mxu0
      %v3223 = vadd.f32 %v3079, %v3222
      %v3224 = vpop.f32.mrb[0].mxu0
      %3225 = vmatprep.mubr.bf16.mxu0 0
      %3226 = vmatmul.mubr.bf16.gmra.mrb[0].mxu0 %v3050
      %v3227 = vpop.f32.mrb[0].mxu0
      %v3228 = vadd.f32 %v3079, %v3227
      %v3229 = vpop.f32.mrb[0].mxu0
      %v3230 = vpop.f32.mrb[0].mxu0
      %v3231 = vadd.f32 %v3079, %v3230
      %v3232 = vpop.f32.mrb[0].mxu0
      %3233 = vmatprep.mubr.bf16.mxu0 0
      %3234 = vmatmul.mubr.bf16.gmra.mrb[0].mxu0 %v3051
      %v3235 = vpop.f32.mrb[0].mxu0
      %v3236 = vadd.f32 %v3079, %v3235
      %v3237 = vpop.f32.mrb[0].mxu0
      %v3238 = vpop.f32.mrb[0].mxu0
      %v3239 = vadd.f32 %v3079, %v3238
      %v3240 = vpop.f32.mrb[0].mxu0
      %3241 = vmatprep.mubr.bf16.mxu0 0
      %3242 = vmatmul.mubr.bf16.gmra.mrb[0].mxu0 %v3052
      %v3243 = vpop.f32.mrb[0].mxu0
      %v3244 = vadd.f32 %v3079, %v3243
      %v3245 = vpop.f32.mrb[0].mxu0
      %v3246 = vpop.f32.mrb[0].mxu0
      %v3247 = vadd.f32 %v3079, %v3246
      %v3248 = vpop.f32.mrb[0].mxu0
      %3249 = vmatprep.mubr.bf16.mxu0 0
      %3250 = vmatmul.mubr.bf16.gmra.mrb[0].mxu0 %v3053
      %v3251 = vpop.f32.mrb[0].mxu0
      %v3252 = vadd.f32 %v3079, %v3251
      %v3253 = vpop.f32.mrb[0].mxu0
      %v3254 = vpop.f32.mrb[0].mxu0
      %v3255 = vadd.f32 %v3079, %v3254
      %v3256 = vpop.f32.mrb[0].mxu0
      %3257 = vmatprep.mubr.bf16.mxu0 0
      %3258 = vmatmul.mubr.bf16.gmra.mrb[0].mxu0 %v3054
      %v3259 = vpop.f32.mrb[0].mxu0
      %v3260 = vadd.f32 %v3079, %v3259
      %v3261 = vpop.f32.mrb[0].mxu0
      %v3262 = vpop.f32.mrb[0].mxu0
      %v3263 = vadd.f32 %v3079, %v3262
      %v3264 = vpop.f32.mrb[0].mxu0
      %3265 = vmatprep.mubr.bf16.mxu0 0
      %3266 = vmatmul.mubr.bf16.gmra.mrb[0].mxu0 %v3055
      %v3267 = vpop.f32.mrb[0].mxu0
      %v3268 = vadd.f32 %v3079, %v3267
      %v3269 = vpop.f32.mrb[0].mxu0
      %v3270 = vpop.f32.mrb[0].mxu0
      %v3271 = vadd.f32 %v3079, %v3270
      %v3272 = vpop.f32.mrb[0].mxu0
      %3273 = vmatprep.mubr.bf16.mxu0 0
      %3274 = vmatmul.mubr.bf16.gmra.mrb[0].mxu0 %v3056
      %v3275 = vpop.f32.mrb[0].mxu0
      %v3276 = vadd.f32 %v3079, %v3275
      %v3277 = vpop.f32.mrb[0].mxu0
      %v3278 = vpop.f32.mrb[0].mxu0
      %v3279 = vadd.f32 %v3079, %v3278
      %v3280 = vpop.f32.mrb[0].mxu0
      %3281 = vmatprep.mubr.bf16.mxu0 0
      %3282 = vmatmul.mubr.bf16.gmra.mrb[0].mxu0 %v3057
      %v3283 = vpop.f32.mrb[0].mxu0
      %v3284 = vadd.f32 %v3079, %v3283
      %v3285 = vpop.f32.mrb[0].mxu0
      %v3286 = vpop.f32.mrb[0].mxu0
      %v3287 = vadd.f32 %v3079, %v3286
      %v3288 = vpop.f32.mrb[0].mxu0
      %3289 = vdwg.mxu0
      %v3290 = vmax.f32 %v3164, 0.0
      %v3291 = vmax.f32 %v3167, 0.0
      %v3292 = vmax.f32 %v3172, 0.0
      %v3293 = vmax.f32 %v3175, 0.0
      %v3294 = vmax.f32 %v3180, 0.0
      %v3295 = vmax.f32 %v3183, 0.0
      %v3296 = vmax.f32 %v3188, 0.0
      %v3297 = vmax.f32 %v3191, 0.0
      %v3298 = vmax.f32 %v3196, 0.0
      %v3299 = vmax.f32 %v3199, 0.0
      %v3300 = vmax.f32 %v3204, 0.0
      %v3301 = vmax.f32 %v3207, 0.0
      %v3302 = vmax.f32 %v3212, 0.0
      %v3303 = vmax.f32 %v3215, 0.0
      %v3304 = vmax.f32 %v3220, 0.0
      %v3305 = vmax.f32 %v3223, 0.0
      %v3306 = vmax.f32 %v3228, 0.0
      %v3307 = vmax.f32 %v3231, 0.0
      %v3308 = vmax.f32 %v3236, 0.0
      %v3309 = vmax.f32 %v3239, 0.0
      %v3310 = vmax.f32 %v3244, 0.0
      %v3311 = vmax.f32 %v3247, 0.0
      %v3312 = vmax.f32 %v3252, 0.0
      %v3313 = vmax.f32 %v3255, 0.0
      %v3314 = vmax.f32 %v3260, 0.0
      %v3315 = vmax.f32 %v3263, 0.0
      %v3316 = vmax.f32 %v3268, 0.0
      %v3317 = vmax.f32 %v3271, 0.0
      %v3318 = vmax.f32 %v3276, 0.0
      %v3319 = vmax.f32 %v3279, 0.0
      %v3320 = vmax.f32 %v3284, 0.0
      %v3321 = vmax.f32 %v3287, 0.0
      %v3322 = vld [vmem:[%s5] sm:$0x1]
      %v3324 = vlaneseq
      %v3325 = vshrl.u32 %v3324, 7
      %v3326 = vsub.s32 0, %v3325
      %v3327 = vrot.slane %v3322, %v3326
      %v3329 = vmul.f32 %v3290, %v3327
      %v3330 = vmul.f32 %v3291, %v3327
      %v3331 = vmul.f32 %v3292, %v3327
      %v3332 = vmul.f32 %v3293, %v3327
      %v3333 = vmul.f32 %v3294, %v3327
      %v3334 = vmul.f32 %v3295, %v3327
      %v3335 = vmul.f32 %v3296, %v3327
      %v3336 = vmul.f32 %v3297, %v3327
      %v3337 = vmul.f32 %v3298, %v3327
      %v3338 = vmul.f32 %v3299, %v3327
      %v3339 = vmul.f32 %v3300, %v3327
      %v3340 = vmul.f32 %v3301, %v3327
      %v3341 = vmul.f32 %v3302, %v3327
      %v3342 = vmul.f32 %v3303, %v3327
      %v3343 = vmul.f32 %v3304, %v3327
      %v3344 = vmul.f32 %v3305, %v3327
      %v3345 = vmul.f32 %v3306, %v3327
      %v3346 = vmul.f32 %v3307, %v3327
      %v3347 = vmul.f32 %v3308, %v3327
      %v3348 = vmul.f32 %v3309, %v3327
      %v3349 = vmul.f32 %v3310, %v3327
      %v3350 = vmul.f32 %v3311, %v3327
      %v3351 = vmul.f32 %v3312, %v3327
      %v3352 = vmul.f32 %v3313, %v3327
      %v3353 = vmul.f32 %v3314, %v3327
      %v3354 = vmul.f32 %v3315, %v3327
      %v3355 = vmul.f32 %v3316, %v3327
      %v3356 = vmul.f32 %v3317, %v3327
      %v3357 = vmul.f32 %v3318, %v3327
      %v3358 = vmul.f32 %v3319, %v3327
      %v3359 = vmul.f32 %v3320, %v3327
      %v3360 = vmul.f32 %v3321, %v3327
      %v3361 = vld [vmem:[%s6] sm:$0x1]
      %v3363 = vlaneseq
      %v3364 = vshrl.u32 %v3363, 7
      %v3365 = vsub.s32 0, %v3364
      %v3366 = vrot.slane %v3361, %v3365
      %v3368 = vadd.f32 %v3329, %v3366
      %v3369 = vadd.f32 %v3330, %v3366
      %v3370 = vadd.f32 %v3331, %v3366
      %v3371 = vadd.f32 %v3332, %v3366
      %v3372 = vadd.f32 %v3333, %v3366
      %v3373 = vadd.f32 %v3334, %v3366
      %v3374 = vadd.f32 %v3335, %v3366
      %v3375 = vadd.f32 %v3336, %v3366
      %v3376 = vadd.f32 %v3337, %v3366
      %v3377 = vadd.f32 %v3338, %v3366
      %v3378 = vadd.f32 %v3339, %v3366
      %v3379 = vadd.f32 %v3340, %v3366
      %v3380 = vadd.f32 %v3341, %v3366
      %v3381 = vadd.f32 %v3342, %v3366
      %v3382 = vadd.f32 %v3343, %v3366
      %v3383 = vadd.f32 %v3344, %v3366
      %v3384 = vadd.f32 %v3345, %v3366
      %v3385 = vadd.f32 %v3346, %v3366
      %v3386 = vadd.f32 %v3347, %v3366
      %v3387 = vadd.f32 %v3348, %v3366
      %v3388 = vadd.f32 %v3349, %v3366
      %v3389 = vadd.f32 %v3350, %v3366
      %v3390 = vadd.f32 %v3351, %v3366
      %v3391 = vadd.f32 %v3352, %v3366
      %v3392 = vadd.f32 %v3353, %v3366
      %v3393 = vadd.f32 %v3354, %v3366
      %v3394 = vadd.f32 %v3355, %v3366
      %v3395 = vadd.f32 %v3356, %v3366
      %v3396 = vadd.f32 %v3357, %v3366
      %v3397 = vadd.f32 %v3358, %v3366
      %v3398 = vadd.f32 %v3359, %v3366
      %v3399 = vadd.f32 %v3360, %v3366
      %3400 = vst [vmem:[#allocation2] sm:$0xff] %v3368
      %3401 = vst [vmem:[#allocation2 + $0x8] sm:$0xff] %v3369
      %3402 = vst [vmem:[#allocation2 + $0x10] sm:$0xff] %v3370
      %3403 = vst [vmem:[#allocation2 + $0x18] sm:$0xff] %v3371
      %3404 = vst [vmem:[#allocation2 + $0x20] sm:$0xff] %v3372
      %3405 = vst [vmem:[#allocation2 + $0x28] sm:$0xff] %v3373
      %3406 = vst [vmem:[#allocation2 + $0x30] sm:$0xff] %v3374
      %3407 = vst [vmem:[#allocation2 + $0x38] sm:$0xff] %v3375
      %3408 = vst [vmem:[#allocation2 + $0x40] sm:$0xff] %v3376
      %3409 = vst [vmem:[#allocation2 + $0x48] sm:$0xff] %v3377
      %3410 = vst [vmem:[#allocation2 + $0x50] sm:$0xff] %v3378
      %3411 = vst [vmem:[#allocation2 + $0x58] sm:$0xff] %v3379
      %3412 = vst [vmem:[#allocation2 + $0x60] sm:$0xff] %v3380
      %3413 = vst [vmem:[#allocation2 + $0x68] sm:$0xff] %v3381
      %3414 = vst [vmem:[#allocation2 + $0x70] sm:$0xff] %v3382
      %3415 = vst [vmem:[#allocation2 + $0x78] sm:$0xff] %v3383
      %3416 = vst [vmem:[#allocation2 + $0x80] sm:$0xff] %v3384
      %3417 = vst [vmem:[#allocation2 + $0x88] sm:$0xff] %v3385
      %3418 = vst [vmem:[#allocation2 + $0x90] sm:$0xff] %v3386
      %3419 = vst [vmem:[#allocation2 + $0x98] sm:$0xff] %v3387
      %3420 = vst [vmem:[#allocation2 + $0xa0] sm:$0xff] %v3388
      %3421 = vst [vmem:[#allocation2 + $0xa8] sm:$0xff] %v3389
      %3422 = vst [vmem:[#allocation2 + $0xb0] sm:$0xff] %v3390
      %3423 = vst [vmem:[#allocation2 + $0xb8] sm:$0xff] %v3391
      %3424 = vst [vmem:[#allocation2 + $0xc0] sm:$0xff] %v3392
      %3425 = vst [vmem:[#allocation2 + $0xc8] sm:$0xff] %v3393
      %3426 = vst [vmem:[#allocation2 + $0xd0] sm:$0xff] %v3394
      %3427 = vst [vmem:[#allocation2 + $0xd8] sm:$0xff] %v3395
      %3428 = vst [vmem:[#allocation2 + $0xe0] sm:$0xff] %v3396
      %3429 = vst [vmem:[#allocation2 + $0xe8] sm:$0xff] %v3397
      %3430 = vst [vmem:[#allocation2 + $0xf0] sm:$0xff] %v3398
      %3431 = vst [vmem:[#allocation2 + $0xf8] sm:$0xff] %v3399
      %v3432 = vld [vmem:[#allocation2] ss:$2 sm:$0xff]
      %s3433 = scalar_lea.vmem [#allocation2], 32
      %v3434 = vld [vmem:[%s3433] ss:$2 sm:$0xff]
      %s3435 = scalar_lea.vmem [#allocation2], 64
      %v3436 = vld [vmem:[%s3435] ss:$2 sm:$0xff]
      %s3437 = scalar_lea.vmem [#allocation2], 96
      %v3438 = vld [vmem:[%s3437] ss:$2 sm:$0xff]
      %s3439 = scalar_lea.vmem [#allocation2], 128
      %v3440 = vld [vmem:[%s3439] ss:$2 sm:$0xff]
      %s3441 = scalar_lea.vmem [#allocation2], 160
      %v3442 = vld [vmem:[%s3441] ss:$2 sm:$0xff]
      %s3443 = scalar_lea.vmem [#allocation2], 192
      %v3444 = vld [vmem:[%s3443] ss:$2 sm:$0xff]
      %s3445 = scalar_lea.vmem [#allocation2], 224
      %v3446 = vld [vmem:[%s3445] ss:$2 sm:$0xff]
      %s3447 = scalar_lea.vmem [#allocation2], 1
      %v3448 = vld [vmem:[%s3447] ss:$2 sm:$0xff]
      %s3449 = scalar_lea.vmem [#allocation2], 33
      %v3450 = vld [vmem:[%s3449] ss:$2 sm:$0xff]
      %s3451 = scalar_lea.vmem [#allocation2], 65
      %v3452 = vld [vmem:[%s3451] ss:$2 sm:$0xff]
      %s3453 = scalar_lea.vmem [#allocation2], 97
      %v3454 = vld [vmem:[%s3453] ss:$2 sm:$0xff]
      %s3455 = scalar_lea.vmem [#allocation2], 129
      %v3456 = vld [vmem:[%s3455] ss:$2 sm:$0xff]
      %s3457 = scalar_lea.vmem [#allocation2], 161
      %v3458 = vld [vmem:[%s3457] ss:$2 sm:$0xff]
      %s3459 = scalar_lea.vmem [#allocation2], 193
      %v3460 = vld [vmem:[%s3459] ss:$2 sm:$0xff]
      %s3461 = scalar_lea.vmem [#allocation2], 225
      %v3462 = vld [vmem:[%s3461] ss:$2 sm:$0xff]
      %v3463 = vmax.f32 %v3432, %v3448
      %v3464 = vmax.f32 %v3434, %v3450
      %v3465 = vmax.f32 %v3436, %v3452
      %v3466 = vmax.f32 %v3438, %v3454
      %v3467 = vmax.f32 %v3440, %v3456
      %v3468 = vmax.f32 %v3442, %v3458
      %v3469 = vmax.f32 %v3444, %v3460
      %v3470 = vmax.f32 %v3446, %v3462
      %s3471 = scalar_lea.vmem [#allocation2], 16
      %v3472 = vld [vmem:[%s3471] ss:$2 sm:$0xff]
      %s3473 = scalar_lea.vmem %s3471, 32 [#allocation2]
      %v3474 = vld [vmem:[%s3473] ss:$2 sm:$0xff]
      %s3475 = scalar_lea.vmem %s3471, 64 [#allocation2]
      %v3476 = vld [vmem:[%s3475] ss:$2 sm:$0xff]
      %s3477 = scalar_lea.vmem %s3471, 96 [#allocation2]
      %v3478 = vld [vmem:[%s3477] ss:$2 sm:$0xff]
      %s3479 = scalar_lea.vmem %s3471, 128 [#allocation2]
      %v3480 = vld [vmem:[%s3479] ss:$2 sm:$0xff]
      %s3481 = scalar_lea.vmem %s3471, 160 [#allocation2]
      %v3482 = vld [vmem:[%s3481] ss:$2 sm:$0xff]
      %s3483 = scalar_lea.vmem %s3471, 192 [#allocation2]
      %v3484 = vld [vmem:[%s3483] ss:$2 sm:$0xff]
      %s3485 = scalar_lea.vmem %s3471, 224 [#allocation2]
      %v3486 = vld [vmem:[%s3485] ss:$2 sm:$0xff]
      %v3487 = vmax.f32 %v3463, %v3472
      %v3488 = vmax.f32 %v3464, %v3474
      %v3489 = vmax.f32 %v3465, %v3476
      %v3490 = vmax.f32 %v3466, %v3478
      %v3491 = vmax.f32 %v3467, %v3480
      %v3492 = vmax.f32 %v3468, %v3482
      %v3493 = vmax.f32 %v3469, %v3484
      %v3494 = vmax.f32 %v3470, %v3486
      %s3495 = scalar_lea.vmem %s3471, 1 [#allocation2]
      %v3496 = vld [vmem:[%s3495] ss:$2 sm:$0xff]
      %s3497 = scalar_lea.vmem %s3471, 33 [#allocation2]
      %v3498 = vld [vmem:[%s3497] ss:$2 sm:$0xff]
      %s3499 = scalar_lea.vmem %s3471, 65 [#allocation2]
      %v3500 = vld [vmem:[%s3499] ss:$2 sm:$0xff]
      %s3501 = scalar_lea.vmem %s3471, 97 [#allocation2]
      %v3502 = vld [vmem:[%s3501] ss:$2 sm:$0xff]
      %s3503 = scalar_lea.vmem %s3471, 129 [#allocation2]
      %v3504 = vld [vmem:[%s3503] ss:$2 sm:$0xff]
      %s3505 = scalar_lea.vmem %s3471, 161 [#allocation2]
      %v3506 = vld [vmem:[%s3505] ss:$2 sm:$0xff]
      %s3507 = scalar_lea.vmem %s3471, 193 [#allocation2]
      %v3508 = vld [vmem:[%s3507] ss:$2 sm:$0xff]
      %s3509 = scalar_lea.vmem %s3471, 225 [#allocation2]
      %v3510 = vld [vmem:[%s3509] ss:$2 sm:$0xff]
      %v3511 = vmax.f32 %v3487, %v3496
      %v3512 = vmax.f32 %v3488, %v3498
      %v3513 = vmax.f32 %v3489, %v3500
      %v3514 = vmax.f32 %v3490, %v3502
      %v3515 = vmax.f32 %v3491, %v3504
      %v3516 = vmax.f32 %v3492, %v3506
      %v3517 = vmax.f32 %v3493, %v3508
      %v3518 = vmax.f32 %v3494, %v3510
      %3519 = vst [vmem:[%s278] sm:$0xff] %v3511
      %3520 = vst [vmem:[%s278 + $0x8] sm:$0xff] %v3512
      %3521 = vst [vmem:[%s278 + $0x10] sm:$0xff] %v3513
      %3522 = vst [vmem:[%s278 + $0x18] sm:$0xff] %v3514
      %3523 = vst [vmem:[%s278 + $0x20] sm:$0xff] %v3515
      %3524 = vst [vmem:[%s278 + $0x28] sm:$0xff] %v3516
      %3525 = vst [vmem:[%s278 + $0x30] sm:$0xff] %v3517
      %3526 = vst [vmem:[%s278 + $0x38] sm:$0xff] %v3518
      %p3527 = scmp.lt.s32.totalorder %s18, 1
      %s3528 = scalar_select %p3527, %s18, 1
      %s3529 = smul.addr %s3528, 8
      %s3530 = smul.addr %s3529, 8
      %s3531 = scalar_lea.vmem %s7, %s3530
      // Predicated region
      $region49: #{nin_forward.2} parent=47 // pred_check
        %p3532 = pneg %p188
      $region50: #{nin_forward.2} parent=47 // pred_check_branch
        %3534 = sbr.rel (%p3532) target = $region52
      $region51: #{nin_forward.2} parent=47 // pred_region
        _
      $region52: #{nin_forward.2} parent=47 // pred_fallthru
        _
    $region48: #{nin_forward.2} parent=5 // pred_fallthru
      _
    %p3535 = scmp.le.s32.totalorder 2, %s13
    // Predicated region
    $region53: #{nin_forward.2} parent=5 // pred_check
      %p3536 = pneg %p3535
    $region54: #{nin_forward.2} parent=5 // pred_check_branch
      %3538 = sbr.rel (%p3536) target = $region56
    $region55: #{nin_forward.2} parent=5 // pred_region
      %s3539 = ssub.s32 %s13, 2
      // Predicated region
      $region57: #{nin_forward.2} parent=55 // pred_check
        %p3540 = pneg %p194
      $region58: #{nin_forward.2} parent=55 // pred_check_branch
        %3542 = sbr.rel (%p3540) target = $region60
      $region59: #{nin_forward.2} parent=55 // pred_region
        %p3543 = scmp.lt.s32.totalorder %s19, 1
        %s3544 = scalar_select %p3543, %s19, 1
        %s3545 = smul.addr %s3544, 8
        %s3546 = smul.addr %s3545, 8
        %s3547 = scalar_lea.vmem %s7, %s3546
      $region60: #{nin_forward.2} parent=55 // pred_fallthru
        _
    $region56: #{nin_forward.2} parent=5 // pred_fallthru
      _
  $region6: #{nin_forward.2} parent=0 // loop_footer
    %s17 = sadd.s32 1, %s13
  $region7: #{nin_forward.2} parent=0 // loop_footer_branch
    %12 = sbr.rel target = $region3
  $region8: #{nin_forward.2} parent=0 // loop_exit
    _

</llo_original>
